<compile_context>
chip_gen: v5e
topology: v5e:2x2
jax: 0.10.0
libtpu: 0.0.40
codegen_flags: <defaults>
</compile_context>

<pallas_src>
import functools

import jax
import jax.numpy as jnp
from jax.experimental import pallas as pl
from jax.experimental.pallas import tpu as pltpu


# ----------------------------------------------------------------------------
# Per-generation budgets
# ----------------------------------------------------------------------------
def _default_vmem_limit():
    try:
        cap = pltpu.get_tpu_info().vmem_capacity_bytes   # 128 MiB v5e/v6e, 64 MiB v7x
    except Exception:
        cap = 64 << 20
    return max(32 << 20, min(cap * 3 // 4, 96 << 20))


_VMEM_LIMIT = _default_vmem_limit()
_EPI_TILE_BYTES = max(4 << 20, _VMEM_LIMIT // 8)   # per-stream epilogue tile budget


def _cp(*sems):
    return pltpu.CompilerParams(dimension_semantics=sems,
                                vmem_limit_bytes=_VMEM_LIMIT)


def _round_up(x, m):
    return (x + m - 1) // m * m


def _pad_last(a, target):
    pad = target - a.shape[-1]
    if pad == 0:
        return a
    return jnp.pad(a, [(0, 0)] * (a.ndim - 1) + [(0, pad)])


# ----------------------------------------------------------------------------
# Pallas kernels
# ----------------------------------------------------------------------------
def conv3x3_bn_stats_kernel(*refs, stride, wo, tr, cin_p):
    """Fused 3x3 conv (padding=1) + BatchNorm batch-stat partials, one tile.

    Grid = (batch, cout-tile, row-tile).  The 9 taps are gathered from the
    stride-phase-split padded input (unstrided static windows + a dynamic row
    offset per tile) and K-folded into a single MXU matmul.

      phase_refs : (1, PH, PW, cin_p) bf16  stride-phases of the padded input
      w_ref      : (9*cin_p, t_cout)  bf16  im2col-ordered weights
      y_ref      : (tr*wo, t_cout)    bf16  raw conv output tile
      sum_ref    : (1, 1, t_cout)     f32   partial channel sum (this tile)
      sq_ref     : (1, 1, t_cout)     f32   partial channel sum of squares
    """
    nphase = stride * stride
    phase_refs = refs[:nphase]
    w_ref = refs[nphase]
    y_ref, sum_ref, sq_ref = refs[nphase + 1:]

    r = pl.program_id(2)                       # row-tile axis (innermost)
    row0 = pl.multiple_of(r * tr, tr)
    m = tr * wo

    taps = []
    for kh in range(3):
        for kw in range(3):
            a, b = kh % stride, kw % stride
            qh, qw = kh // stride, kw // stride
            p = phase_refs[a * stride + b]
            tap = p[0, pl.ds(row0 + qh, tr), qw:qw + wo, :]   # (tr, wo, cin_p) bf16
            taps.append(tap.reshape(m, cin_p))
    im2col = jnp.concatenate(taps, axis=-1)                   # (m, 9*cin_p) bf16

    acc = jnp.dot(im2col, w_ref[...], preferred_element_type=jnp.float32)
    y_ref[...] = acc.astype(y_ref.dtype)
    sum_ref[...] = jnp.sum(acc, axis=0, keepdims=True)[None]
    sq_ref[...] = jnp.sum(acc * acc, axis=0, keepdims=True)[None]


def bn_act_kernel(y_ref, sc_ref, sh_ref, o_ref):
    # relu(y * scale + shift)  -- BN1 epilogue (f32 math, bf16 store)
    y = y_ref[...].astype(jnp.float32)
    o_ref[...] = jnp.maximum(y * sc_ref[...] + sh_ref[...], 0.0).astype(o_ref.dtype)


def bn_add_act_kernel(y_ref, sc_ref, sh_ref, res_ref, o_ref):
    # relu(y * scale + shift + residual)  -- identity shortcut
    y = y_ref[...].astype(jnp.float32)
    res = res_ref[...].astype(jnp.float32)
    o_ref[...] = jnp.maximum(y * sc_ref[...] + sh_ref[...] + res, 0.0
                             ).astype(o_ref.dtype)


def bn_conv1x1_add_act_kernel(y_ref, sc_ref, sh_ref, xs_ref, w_ref, b_ref, o_ref):
    # relu(y * scale + shift + (xs @ w + b))  -- fused 1x1-conv shortcut
    res = jnp.dot(xs_ref[...], w_ref[...],
                  preferred_element_type=jnp.float32) + b_ref[...]
    y = y_ref[...].astype(jnp.float32)
    o_ref[...] = jnp.maximum(y * sc_ref[...] + sh_ref[...] + res, 0.0
                             ).astype(o_ref.dtype)


# ----------------------------------------------------------------------------
# Tile selection helpers
# ----------------------------------------------------------------------------
def _pick_row_tile(ho, wo, cout_p, acc_budget=1 << 20):
    """Largest row tile (divisor of ho) whose f32 accumulator fits the budget,
    with (tr*wo) % 8 == 0 (sublane-aligned y blocks); prefer >=2 row tiles."""
    cap = max(1, acc_budget // max(1, wo * cout_p * 4))
    cands = [t for t in range(1, ho + 1) if ho % t == 0 and (t * wo) % 8 == 0]
    if not cands:
        return ho
    fit = [t for t in cands if t <= cap] or [cands[0]]
    tr = max(fit)
    if tr == ho:                       # keep the grid long enough to pipeline
        smaller = [t for t in fit if t < ho]
        if smaller:
            tr = max(smaller)
    return tr


def _row_tile(m, c):
    # ~16 bytes/row/channel covers f32 output + bf16 inputs, double-buffered.
    for t in (8192, 4096, 2048, 1024, 512, 256, 128, 64, 32, 16, 8):
        if m % t == 0 and t * c * 16 <= _EPI_TILE_BYTES:
            return t
    return m


# ----------------------------------------------------------------------------
# pallas_call wrappers
# ----------------------------------------------------------------------------
def conv3x3_bn_stats(x_nhwc, w_hwio, stride):
    """3x3 conv, padding=1, no bias (exactly folded into training-mode BN),
    plus per-(batch, row-tile) partial channel sums / sums of squares."""
    x = x_nhwc.astype(jnp.bfloat16)
    n, h, wdim, cin_p = x.shape
    cout_p = w_hwio.shape[-1]
    ho = (h + 2 - 3) // stride + 1
    wo = (wdim + 2 - 3) // stride + 1

    # TODO(synk): the spatial zero-pad + stride-phase split below remain thin
    # XLA passes over the bf16 input; folding halo handling into the kernel
    # (manual row-window DMA) would remove them but is not done here.
    xp = jnp.pad(x, ((0, 0), (1, 1), (1, 1), (0, 0)))
    ph = 2 // stride + ho
    pw = 2 // stride + wo
    if stride == 1:
        phases = [xp]
    else:
        phases = []
        for a in range(stride):
            for b in range(stride):
                p = xp[:, a::stride, b::stride, :]
                p = p[:, :min(p.shape[1], ph), :min(p.shape[2], pw), :]
                dh, dw = ph - p.shape[1], pw - p.shape[2]
                if dh or dw:
                    p = jnp.pad(p, ((0, 0), (0, dh), (0, dw), (0, 0)))
                phases.append(p)
    nphase = len(phases)

    tr = _pick_row_tile(ho, wo, cout_p)
    nrt = ho // tr
    m_t = tr * wo

    t_cout = min(cout_p, 512)
    while cout_p % t_cout:
        t_cout -= 128
    ncout = cout_p // t_cout

    w2col = w_hwio.reshape(9 * cin_p, cout_p).astype(jnp.bfloat16)

    kern = functools.partial(conv3x3_bn_stats_kernel, stride=stride,
                             wo=wo, tr=tr, cin_p=cin_p)
    phase_spec = pl.BlockSpec((1, ph, pw, cin_p), lambda i, c, r: (i, 0, 0, 0))
    y, psum, psq = pl.pallas_call(
        kern,
        out_shape=(jax.ShapeDtypeStruct((n * ho * wo, cout_p), jnp.bfloat16),
                   jax.ShapeDtypeStruct((n * nrt, 1, cout_p), jnp.float32),
                   jax.ShapeDtypeStruct((n * nrt, 1, cout_p), jnp.float32)),
        grid=(n, ncout, nrt),
        in_specs=[phase_spec] * nphase
                 + [pl.BlockSpec((9 * cin_p, t_cout), lambda i, c, r: (0, c))],
        out_specs=(
            pl.BlockSpec((m_t, t_cout), lambda i, c, r, nrt=nrt: (i * nrt + r, c)),
            pl.BlockSpec((1, 1, t_cout), lambda i, c, r, nrt=nrt: (i * nrt + r, 0, c)),
            pl.BlockSpec((1, 1, t_cout), lambda i, c, r, nrt=nrt: (i * nrt + r, 0, c)),
        ),
        compiler_params=_cp("parallel", "parallel", "parallel"),
    )(*phases, w2col)
    return y, psum, psq, (n, ho, wo)


def bn_act(y, scale, shift):
    m, c = y.shape
    tm = _row_tile(m, c)
    return pl.pallas_call(
        bn_act_kernel,
        out_shape=jax.ShapeDtypeStruct((m, c), jnp.bfloat16),
        grid=(m // tm,),
        in_specs=[pl.BlockSpec((tm, c), lambda i: (i, 0)),
                  pl.BlockSpec((1, c), lambda i: (0, 0)),
                  pl.BlockSpec((1, c), lambda i: (0, 0))],
        out_specs=pl.BlockSpec((tm, c), lambda i: (i, 0)),
        compiler_params=_cp("parallel"),
    )(y, scale, shift)


def bn_add_act(y, scale, shift, res):
    m, c = y.shape
    tm = _row_tile(m, c)
    return pl.pallas_call(
        bn_add_act_kernel,
        out_shape=jax.ShapeDtypeStruct((m, c), jnp.float32),
        grid=(m // tm,),
        in_specs=[pl.BlockSpec((tm, c), lambda i: (i, 0)),
                  pl.BlockSpec((1, c), lambda i: (0, 0)),
                  pl.BlockSpec((1, c), lambda i: (0, 0)),
                  pl.BlockSpec((tm, c), lambda i: (i, 0))],
        out_specs=pl.BlockSpec((tm, c), lambda i: (i, 0)),
        compiler_params=_cp("parallel"),
    )(y, scale, shift, res)


def bn_conv1x1_add_act(y, scale, shift, xs, w, b):
    m, c = y.shape
    cin = xs.shape[-1]
    tm = _row_tile(m, c)
    return pl.pallas_call(
        bn_conv1x1_add_act_kernel,
        out_shape=jax.ShapeDtypeStruct((m, c), jnp.float32),
        grid=(m // tm,),
        in_specs=[pl.BlockSpec((tm, c), lambda i: (i, 0)),
                  pl.BlockSpec((1, c), lambda i: (0, 0)),
                  pl.BlockSpec((1, c), lambda i: (0, 0)),
                  pl.BlockSpec((tm, cin), lambda i: (i, 0)),
                  pl.BlockSpec((cin, c), lambda i: (0, 0)),
                  pl.BlockSpec((1, c), lambda i: (0, 0))],
        out_specs=pl.BlockSpec((tm, c), lambda i: (i, 0)),
        compiler_params=_cp("parallel"),
    )(y, scale, shift, xs, w, b)


# ----------------------------------------------------------------------------
# Glue: BN scale/shift folding, full forward
# ----------------------------------------------------------------------------
def bn_scale_shift(psum, psq, count, gamma, beta, eps=1e-5):
    # Tiny per-channel math: combine per-tile partials, fold BN into scale/shift.
    s = jnp.sum(psum, axis=0)                            # (1, C)
    q = jnp.sum(psq, axis=0)                             # (1, C)
    mean = s / count
    var = jnp.maximum(q / count - mean * mean, 0.0)      # guard cancellation
    inv = gamma / jnp.sqrt(var + eps)
    return inv, beta - mean * inv


def residual_forward(x_nchw, params, use_1x1conv, stride):
    x = jnp.transpose(x_nchw, (0, 2, 3, 1))              # NCHW -> NHWC
    n, h, w, cin = x.shape
    cout = params["w1"].shape[-1]
    cin_p, cout_p = _round_up(cin, 128), _round_up(cout, 128)

    # Single bf16 cast + channel pad of the input -> lane-dense streams throughout.
    xb = _pad_last(x.astype(jnp.bfloat16), cin_p)

    w1p = jnp.pad(params["w1"], ((0, 0), (0, 0), (0, cin_p - cin), (0, cout_p - cout)))
    w2p = jnp.pad(params["w2"], ((0, 0), (0, 0), (0, cout_p - cout), (0, cout_p - cout)))
    g1p, be1p = _pad_last(params["g1"], cout_p), _pad_last(params["be1"], cout_p)
    g2p, be2p = _pad_last(params["g2"], cout_p), _pad_last(params["be2"], cout_p)

    # conv1 -> bn1 -> relu  (conv bias is exactly absorbed by batch-stat BN)
    y1, s1, q1, (_, h1, w1o) = conv3x3_bn_stats(xb, w1p, stride)
    cnt = float(n * h1 * w1o)
    sc1, sh1 = bn_scale_shift(s1, q1, cnt, g1p, be1p)
    y1a = bn_act(y1, sc1, sh1)                           # bf16, lane-dense
    # TODO(synk): folding this affine+ReLU into conv2's tap loads would save one
    # HBM round trip but needs explicit masking of the zero halo; not done here.

    # conv2 -> bn2
    y2, s2, q2, _ = conv3x3_bn_stats(y1a.reshape(n, h1, w1o, cout_p), w2p, 1)
    sc2, sh2 = bn_scale_shift(s2, q2, cnt, g2p, be2p)

    # shortcut + add + relu, single fused epilogue
    if use_1x1conv:
        xs = xb[:, ::stride, ::stride, :].reshape(n * h1 * w1o, cin_p)
        w3p = jnp.pad(params["w3"],
                      ((0, 0), (0, 0), (0, cin_p - cin), (0, cout_p - cout)))
        b3p = jnp.pad(params["b3"], (0, cout_p - cout)).reshape(1, cout_p)
        out = bn_conv1x1_add_act(y2, sc2, sh2, xs,
                                 w3p.reshape(cin_p, cout_p).astype(jnp.bfloat16),
                                 b3p)
    else:
        assert cin == cout and stride == 1, "identity shortcut needs matching shape"
        out = bn_add_act(y2, sc2, sh2, xb.reshape(n * h1 * w1o, cin_p))

    out = out.reshape(n, h1, w1o, cout_p)[:, :, :, :cout]
    return jnp.transpose(out, (0, 3, 1, 2))              # NHWC -> NCHW


# ----------------------------------------------------------------------------
# Pure-XLA reference (training-mode BatchNorm), parameter init, demo
# ----------------------------------------------------------------------------
def residual_reference(x_nchw, params, use_1x1conv, stride, eps=1e-5):
    def conv(x, w, b, s, pad):
        y = jax.lax.conv_general_dilated(
            x, w, window_strides=(s, s), padding=pad,
            dimension_numbers=("NHWC", "HWIO", "NHWC"))
        return y + b.reshape(1, 1, 1, -1)

    def bn(y, gamma, beta):
        mean = jnp.mean(y, axis=(0, 1, 2), keepdims=True)
        var = jnp.mean((y - mean) ** 2, axis=(0, 1, 2), keepdims=True)
        return ((y - mean) / jnp.sqrt(var + eps)) * gamma.reshape(1, 1, 1, -1) \
            + beta.reshape(1, 1, 1, -1)

    x = jnp.transpose(x_nchw, (0, 2, 3, 1)).astype(jnp.float32)
    y = jax.nn.relu(bn(conv(x, params["w1"], params["b1"], stride, ((1, 1), (1, 1))),
                       params["g1"], params["be1"]))
    y = bn(conv(y, params["w2"], params["b2"], 1, ((1, 1), (1, 1))),
           params["g2"], params["be2"])
    if use_1x1conv:
        sc = conv(x, params["w3"], params["b3"], stride, "VALID")
    else:
        sc = x
    return jnp.transpose(jax.nn.relu(y + sc), (0, 3, 1, 2))


def init_params(cin, cout, use_1x1conv, keys):
    p = {
        "w1": jax.random.normal(keys[0], (3, 3, cin, cout), jnp.float32) * 0.1,
        "b1": jax.random.normal(keys[1], (cout,), jnp.float32) * 0.1,   # folded into BN
        "w2": jax.random.normal(keys[2], (3, 3, cout, cout), jnp.float32) * 0.1,
        "b2": jax.random.normal(keys[3], (cout,), jnp.float32) * 0.1,   # folded into BN
        "g1": jnp.ones((1, cout), jnp.float32),
        "be1": jnp.zeros((1, cout), jnp.float32),
        "g2": jnp.ones((1, cout), jnp.float32),
        "be2": jnp.zeros((1, cout), jnp.float32),
    }
    if use_1x1conv:
        p["w3"] = jax.random.normal(keys[4], (1, 1, cin, cout), jnp.float32) * 0.1
        p["b3"] = jax.random.normal(keys[5], (cout,), jnp.float32) * 0.1
    return p


if __name__ == "__main__":
    key = jax.random.PRNGKey(0)
    keys = jax.random.split(key, 8)

    N, Cin, H, W = 2, 4, 16, 16
    Cout = 8
    x = jax.random.normal(keys[7], (N, Cin, H, W), dtype=jnp.float32)

    fwd = jax.jit(residual_forward, static_argnames=("use_1x1conv", "stride"))

    # Config 1: identity shortcut (input_channels == num_channels, stride=1)
    p_id = init_params(Cin, Cin, False, keys[:6])
    out1 = fwd(x, p_id, use_1x1conv=False, stride=1)

    # Config 2: 1x1-conv shortcut with stride=2 (downsample + channel change)
    p_ds = init_params(Cin, Cout, True, keys[:6])
    out2 = fwd(x, p_ds, use_1x1conv=True, stride=2)

    jax.block_until_ready((out1, out2))
    assert out1.shape == (N, Cin, H, W), out1.shape
    assert out2.shape == (N, Cout, H // 2, W // 2), out2.shape
    assert bool(jnp.all(out1 >= 0)) and bool(jnp.all(out2 >= 0))  # final ReLU

    # Loose numeric check vs. a pure-XLA f32 reference (bf16 streams drift a bit)
    ref1 = residual_reference(x, p_id, False, 1)
    ref2 = residual_reference(x, p_ds, True, 2)
    d1 = float(jnp.max(jnp.abs(out1 - ref1)))
    d2 = float(jnp.max(jnp.abs(out2 - ref2)))
    assert d1 < 0.1 and d2 < 0.1, (d1, d2)

    print("KERNEL_OK")
</pallas_src>

<mosaic_0001>
module attributes {stable_mosaic.version = 11 : i64} {
  func.func @bn_act_kernel(%arg0: i32, %arg1: memref<512x128xbf16, #tpu.memory_space<vmem>>, %arg2: memref<1x128xf32, #tpu.memory_space<vmem>>, %arg3: memref<1x128xf32, #tpu.memory_space<vmem>>, %arg4: memref<512x128xbf16, #tpu.memory_space<vmem>>) attributes {dimension_semantics = [#tpu.dimension_semantics<parallel>], iteration_bounds = array<i64: 1>, scalar_prefetch = 0 : i64, scratch_operands = 0 : i64, tpu.core_type = #tpu.core_type<tc>, window_params = [{transform_indices = @transform_0, window_bounds = array<i64: 512, 128>}, {pipeline_mode = #tpu.pipeline_mode<synchronous>, transform_indices = @transform_1, window_bounds = array<i64: 1, 128>}, {pipeline_mode = #tpu.pipeline_mode<synchronous>, transform_indices = @transform_2, window_bounds = array<i64: 1, 128>}, {transform_indices = @transform_3, window_bounds = array<i64: 512, 128>}]} {
    %c0 = arith.constant 0 : index
    %c0_0 = arith.constant 0 : index
    %0 = vector.load %arg1[%c0, %c0_0] : memref<512x128xbf16, #tpu.memory_space<vmem>>, vector<512x128xbf16>
    %1 = arith.extf %0 : vector<512x128xbf16> to vector<512x128xf32>
    %c0_1 = arith.constant 0 : index
    %c0_2 = arith.constant 0 : index
    %2 = vector.load %arg2[%c0_1, %c0_2] : memref<1x128xf32, #tpu.memory_space<vmem>>, vector<1x128xf32>
    %3 = vector.broadcast %2 : vector<1x128xf32> to vector<512x128xf32>
    %4 = arith.mulf %1, %3 : vector<512x128xf32>
    %c0_3 = arith.constant 0 : index
    %c0_4 = arith.constant 0 : index
    %5 = vector.load %arg3[%c0_3, %c0_4] : memref<1x128xf32, #tpu.memory_space<vmem>>, vector<1x128xf32>
    %6 = vector.broadcast %5 : vector<1x128xf32> to vector<512x128xf32>
    %7 = arith.addf %4, %6 : vector<512x128xf32>
    %cst = arith.constant 0.000000e+00 : f32
    %8 = vector.broadcast %cst : f32 to vector<512x128xf32>
    %9 = arith.maximumf %7, %8 : vector<512x128xf32>
    %10 = arith.truncf %9 : vector<512x128xf32> to vector<512x128xbf16>
    %c0_5 = arith.constant 0 : index
    %c0_6 = arith.constant 0 : index
    %11 = vector.load %arg4[%c0_5, %c0_6] : memref<512x128xbf16, #tpu.memory_space<vmem>>, vector<512x128xbf16>
    tpu.vector_store %arg4[%c0_5, %c0_6], %10 {strides = array<i32>} : memref<512x128xbf16, #tpu.memory_space<vmem>>, vector<512x128xbf16>,
    return
  }
  func.func @transform_0(%arg0: i32) -> (i32, i32) {
    %c0_i32 = arith.constant 0 : i32
    %c0_i32_0 = arith.constant 0 : i32
    return %arg0, %c0_i32 : i32, i32
  }
  func.func @transform_1(%arg0: i32) -> (i32, i32) {
    %c0_i32 = arith.constant 0 : i32
    %c0_i32_0 = arith.constant 0 : i32
    %c0_i32_1 = arith.constant 0 : i32
    return %c0_i32, %c0_i32_0 : i32, i32
  }
  func.func @transform_2(%arg0: i32) -> (i32, i32) {
    %c0_i32 = arith.constant 0 : i32
    %c0_i32_0 = arith.constant 0 : i32
    %c0_i32_1 = arith.constant 0 : i32
    return %c0_i32, %c0_i32_0 : i32, i32
  }
  func.func @transform_3(%arg0: i32) -> (i32, i32) {
    %c0_i32 = arith.constant 0 : i32
    %c0_i32_0 = arith.constant 0 : i32
    return %arg0, %c0_i32 : i32, i32
  }
}

module attributes {stable_mosaic.version = 11 : i64} {
  func.func @conv3x3_bn_stats_kernel(%arg0: i32, %arg1: i32, %arg2: i32, %arg3: memref<1x18x18x128xbf16, #tpu.memory_space<vmem>>, %arg4: memref<1152x128xbf16, #tpu.memory_space<vmem>>, %arg5: memref<128x128xbf16, #tpu.memory_space<vmem>>, %arg6: memref<1x1x128xf32, #tpu.memory_space<vmem>>, %arg7: memref<1x1x128xf32, #tpu.memory_space<vmem>>) attributes {dimension_semantics = [#tpu.dimension_semantics<parallel>, #tpu.dimension_semantics<parallel>, #tpu.dimension_semantics<parallel>], iteration_bounds = array<i64: 2, 1, 2>, scalar_prefetch = 0 : i64, scratch_operands = 0 : i64, tpu.core_type = #tpu.core_type<tc>, window_params = [{transform_indices = @transform_0, window_bounds = array<i64: 1, 18, 18, 128>}, {transform_indices = @transform_1, window_bounds = array<i64: 1152, 128>}, {transform_indices = @transform_2, window_bounds = array<i64: 128, 128>}, {transform_indices = @transform_3, window_bounds = array<i64: 1, 1, 128>}, {transform_indices = @transform_4, window_bounds = array<i64: 1, 1, 128>}]} {
    %c8_i32 = arith.constant 8 : i32
    %0 = arith.muli %arg2, %c8_i32 : i32
    %1 = tpu.assume_multiple %0, 8 : i32
    %c0_i32 = arith.constant 0 : i32
    %2 = arith.addi %1, %c0_i32 : i32
    %c0 = arith.constant 0 : index
    %3 = arith.index_cast %2 : i32 to index
    %c0_0 = arith.constant 0 : index
    %c0_1 = arith.constant 0 : index
    %4 = vector.load %arg3[%c0, %3, %c0_0, %c0_1] : memref<1x18x18x128xbf16, #tpu.memory_space<vmem>>, vector<1x8x16x128xbf16>
    %5 = vector.shape_cast %4 : vector<1x8x16x128xbf16> to vector<8x16x128xbf16>
    %6 = vector.shape_cast %5 : vector<8x16x128xbf16> to vector<128x128xbf16>
    %c0_i32_2 = arith.constant 0 : i32
    %7 = arith.addi %1, %c0_i32_2 : i32
    %c0_3 = arith.constant 0 : index
    %8 = arith.index_cast %7 : i32 to index
    %c1 = arith.constant 1 : index
    %c0_4 = arith.constant 0 : index
    %9 = vector.load %arg3[%c0_3, %8, %c1, %c0_4] : memref<1x18x18x128xbf16, #tpu.memory_space<vmem>>, vector<1x8x16x128xbf16>
    %10 = vector.shape_cast %9 : vector<1x8x16x128xbf16> to vector<8x16x128xbf16>
    %11 = vector.shape_cast %10 : vector<8x16x128xbf16> to vector<128x128xbf16>
    %c0_i32_5 = arith.constant 0 : i32
    %12 = arith.addi %1, %c0_i32_5 : i32
    %c0_6 = arith.constant 0 : index
    %13 = arith.index_cast %12 : i32 to index
    %c2 = arith.constant 2 : index
    %c0_7 = arith.constant 0 : index
    %14 = vector.load %arg3[%c0_6, %13, %c2, %c0_7] : memref<1x18x18x128xbf16, #tpu.memory_space<vmem>>, vector<1x8x16x128xbf16>
    %15 = vector.shape_cast %14 : vector<1x8x16x128xbf16> to vector<8x16x128xbf16>
    %16 = vector.shape_cast %15 : vector<8x16x128xbf16> to vector<128x128xbf16>
    %c1_i32 = arith.constant 1 : i32
    %17 = arith.addi %1, %c1_i32 : i32
    %c0_8 = arith.constant 0 : index
    %18 = arith.index_cast %17 : i32 to index
    %c0_9 = arith.constant 0 : index
    %c0_10 = arith.constant 0 : index
    %19 = vector.load %arg3[%c0_8, %18, %c0_9, %c0_10] : memref<1x18x18x128xbf16, #tpu.memory_space<vmem>>, vector<1x8x16x128xbf16>
    %20 = vector.shape_cast %19 : vector<1x8x16x128xbf16> to vector<8x16x128xbf16>
    %21 = vector.shape_cast %20 : vector<8x16x128xbf16> to vector<128x128xbf16>
    %c1_i32_11 = arith.constant 1 : i32
    %22 = arith.addi %1, %c1_i32_11 : i32
    %c0_12 = arith.constant 0 : index
    %23 = arith.index_cast %22 : i32 to index
    %c1_13 = arith.constant 1 : index
    %c0_14 = arith.constant 0 : index
    %24 = vector.load %arg3[%c0_12, %23, %c1_13, %c0_14] : memref<1x18x18x128xbf16, #tpu.memory_space<vmem>>, vector<1x8x16x128xbf16>
    %25 = vector.shape_cast %24 : vector<1x8x16x128xbf16> to vector<8x16x128xbf16>
    %26 = vector.shape_cast %25 : vector<8x16x128xbf16> to vector<128x128xbf16>
    %c1_i32_15 = arith.constant 1 : i32
    %27 = arith.addi %1, %c1_i32_15 : i32
    %c0_16 = arith.constant 0 : index
    %28 = arith.index_cast %27 : i32 to index
    %c2_17 = arith.constant 2 : index
    %c0_18 = arith.constant 0 : index
    %29 = vector.load %arg3[%c0_16, %28, %c2_17, %c0_18] : memref<1x18x18x128xbf16, #tpu.memory_space<vmem>>, vector<1x8x16x128xbf16>
    %30 = vector.shape_cast %29 : vector<1x8x16x128xbf16> to vector<8x16x128xbf16>
    %31 = vector.shape_cast %30 : vector<8x16x128xbf16> to vector<128x128xbf16>
    %c2_i32 = arith.constant 2 : i32
    %32 = arith.addi %1, %c2_i32 : i32
    %c0_19 = arith.constant 0 : index
    %33 = arith.index_cast %32 : i32 to index
    %c0_20 = arith.constant 0 : index
    %c0_21 = arith.constant 0 : index
    %34 = vector.load %arg3[%c0_19, %33, %c0_20, %c0_21] : memref<1x18x18x128xbf16, #tpu.memory_space<vmem>>, vector<1x8x16x128xbf16>
    %35 = vector.shape_cast %34 : vector<1x8x16x128xbf16> to vector<8x16x128xbf16>
    %36 = vector.shape_cast %35 : vector<8x16x128xbf16> to vector<128x128xbf16>
    %c2_i32_22 = arith.constant 2 : i32
    %37 = arith.addi %1, %c2_i32_22 : i32
    %c0_23 = arith.constant 0 : index
    %38 = arith.index_cast %37 : i32 to index
    %c1_24 = arith.constant 1 : index
    %c0_25 = arith.constant 0 : index
    %39 = vector.load %arg3[%c0_23, %38, %c1_24, %c0_25] : memref<1x18x18x128xbf16, #tpu.memory_space<vmem>>, vector<1x8x16x128xbf16>
    %40 = vector.shape_cast %39 : vector<1x8x16x128xbf16> to vector<8x16x128xbf16>
    %41 = vector.shape_cast %40 : vector<8x16x128xbf16> to vector<128x128xbf16>
    %c2_i32_26 = arith.constant 2 : i32
    %42 = arith.addi %1, %c2_i32_26 : i32
    %c0_27 = arith.constant 0 : index
    %43 = arith.index_cast %42 : i32 to index
    %c2_28 = arith.constant 2 : index
    %c0_29 = arith.constant 0 : index
    %44 = vector.load %arg3[%c0_27, %43, %c2_28, %c0_29] : memref<1x18x18x128xbf16, #tpu.memory_space<vmem>>, vector<1x8x16x128xbf16>
    %45 = vector.shape_cast %44 : vector<1x8x16x128xbf16> to vector<8x16x128xbf16>
    %46 = vector.shape_cast %45 : vector<8x16x128xbf16> to vector<128x128xbf16>
    %47 = tpu.concatenate %6, %11, %16, %21, %26, %31, %36, %41, %46 in 1 : vector<128x128xbf16>, vector<128x128xbf16>, vector<128x128xbf16>, vector<128x128xbf16>, vector<128x128xbf16>, vector<128x128xbf16>, vector<128x128xbf16>, vector<128x128xbf16>, vector<128x128xbf16> -> vector<128x1152xbf16>
    %c0_30 = arith.constant 0 : index
    %c0_31 = arith.constant 0 : index
    %48 = vector.load %arg4[%c0_30, %c0_31] : memref<1152x128xbf16, #tpu.memory_space<vmem>>, vector<1152x128xbf16>
    %cst = arith.constant dense<0.000000e+00> : vector<128x128xf32>
    %49 = tpu.matmul %47, %48, %cst {dimension_numbers = #tpu.dot_dimension_numbers<[1], [0], [0], [1], [0, 0, 1, 1], [], []>} : vector<128x1152xbf16>, vector<1152x128xbf16>, vector<128x128xf32> -> vector<128x128xf32>
    %50 = arith.truncf %49 : vector<128x128xf32> to vector<128x128xbf16>
    %c0_32 = arith.constant 0 : index
    %c0_33 = arith.constant 0 : index
    %51 = vector.load %arg5[%c0_32, %c0_33] : memref<128x128xbf16, #tpu.memory_space<vmem>>, vector<128x128xbf16>
    tpu.vector_store %arg5[%c0_32, %c0_33], %50 {strides = array<i32>} : memref<128x128xbf16, #tpu.memory_space<vmem>>, vector<128x128xbf16>,
    %cst_34 = arith.constant dense<0.000000e+00> : vector<128xf32>
    %52 = vector.multi_reduction <add>, %49, %cst_34 [0] : vector<128x128xf32> to vector<128xf32>
    %53 = vector.shape_cast %52 : vector<128xf32> to vector<1x128xf32>
    %54 = vector.shape_cast %53 : vector<1x128xf32> to vector<1x1x128xf32>
    %c0_35 = arith.constant 0 : index
    %c0_36 = arith.constant 0 : index
    %c0_37 = arith.constant 0 : index
    %55 = vector.load %arg6[%c0_35, %c0_36, %c0_37] : memref<1x1x128xf32, #tpu.memory_space<vmem>>, vector<1x1x128xf32>
    tpu.vector_store %arg6[%c0_35, %c0_36, %c0_37], %54 {strides = array<i32>} : memref<1x1x128xf32, #tpu.memory_space<vmem>>, vector<1x1x128xf32>,
    %56 = arith.mulf %49, %49 : vector<128x128xf32>
    %cst_38 = arith.constant dense<0.000000e+00> : vector<128xf32>
    %57 = vector.multi_reduction <add>, %56, %cst_38 [0] : vector<128x128xf32> to vector<128xf32>
    %58 = vector.shape_cast %57 : vector<128xf32> to vector<1x128xf32>
    %59 = vector.shape_cast %58 : vector<1x128xf32> to vector<1x1x128xf32>
    %c0_39 = arith.constant 0 : index
    %c0_40 = arith.constant 0 : index
    %c0_41 = arith.constant 0 : index
    %60 = vector.load %arg7[%c0_39, %c0_40, %c0_41] : memref<1x1x128xf32, #tpu.memory_space<vmem>>, vector<1x1x128xf32>
    tpu.vector_store %arg7[%c0_39, %c0_40, %c0_41], %59 {strides = array<i32>} : memref<1x1x128xf32, #tpu.memory_space<vmem>>, vector<1x1x128xf32>,
    return
  }
  func.func @transform_0(%arg0: i32, %arg1: i32, %arg2: i32) -> (i32, i32, i32, i32) {
    %c0_i32 = arith.constant 0 : i32
    %c0_i32_0 = arith.constant 0 : i32
    %c0_i32_1 = arith.constant 0 : i32
    %c0_i32_2 = arith.constant 0 : i32
    return %arg0, %c0_i32, %c0_i32_0, %c0_i32_1 : i32, i32, i32, i32
  }
  func.func @transform_1(%arg0: i32, %arg1: i32, %arg2: i32) -> (i32, i32) {
    %c0_i32 = arith.constant 0 : i32
    %c0_i32_0 = arith.constant 0 : i32
    return %c0_i32, %arg1 : i32, i32
  }
  func.func @transform_2(%arg0: i32, %arg1: i32, %arg2: i32) -> (i32, i32) {
    %c2_i32 = arith.constant 2 : i32
    %0 = arith.muli %arg0, %c2_i32 : i32
    %1 = arith.addi %0, %arg2 : i32
    %c0_i32 = arith.constant 0 : i32
    return %1, %arg1 : i32, i32
  }
  func.func @transform_3(%arg0: i32, %arg1: i32, %arg2: i32) -> (i32, i32, i32) {
    %c2_i32 = arith.constant 2 : i32
    %0 = arith.muli %arg0, %c2_i32 : i32
    %1 = arith.addi %0, %arg2 : i32
    %c0_i32 = arith.constant 0 : i32
    %c0_i32_0 = arith.constant 0 : i32
    return %1, %c0_i32, %arg1 : i32, i32, i32
  }
  func.func @transform_4(%arg0: i32, %arg1: i32, %arg2: i32) -> (i32, i32, i32) {
    %c2_i32 = arith.constant 2 : i32
    %0 = arith.muli %arg0, %c2_i32 : i32
    %1 = arith.addi %0, %arg2 : i32
    %c0_i32 = arith.constant 0 : i32
    %c0_i32_0 = arith.constant 0 : i32
    return %1, %c0_i32, %arg1 : i32, i32, i32
  }
}

module attributes {stable_mosaic.version = 11 : i64} {
  func.func @bn_add_act_kernel(%arg0: i32, %arg1: memref<512x128xbf16, #tpu.memory_space<vmem>>, %arg2: memref<1x128xf32, #tpu.memory_space<vmem>>, %arg3: memref<1x128xf32, #tpu.memory_space<vmem>>, %arg4: memref<512x128xbf16, #tpu.memory_space<vmem>>, %arg5: memref<512x128xf32, #tpu.memory_space<vmem>>) attributes {dimension_semantics = [#tpu.dimension_semantics<parallel>], iteration_bounds = array<i64: 1>, scalar_prefetch = 0 : i64, scratch_operands = 0 : i64, tpu.core_type = #tpu.core_type<tc>, window_params = [{transform_indices = @transform_0, window_bounds = array<i64: 512, 128>}, {pipeline_mode = #tpu.pipeline_mode<synchronous>, transform_indices = @transform_1, window_bounds = array<i64: 1, 128>}, {pipeline_mode = #tpu.pipeline_mode<synchronous>, transform_indices = @transform_2, window_bounds = array<i64: 1, 128>}, {transform_indices = @transform_3, window_bounds = array<i64: 512, 128>}, {transform_indices = @transform_4, window_bounds = array<i64: 512, 128>}]} {
    %c0 = arith.constant 0 : index
    %c0_0 = arith.constant 0 : index
    %0 = vector.load %arg1[%c0, %c0_0] : memref<512x128xbf16, #tpu.memory_space<vmem>>, vector<512x128xbf16>
    %1 = arith.extf %0 : vector<512x128xbf16> to vector<512x128xf32>
    %c0_1 = arith.constant 0 : index
    %c0_2 = arith.constant 0 : index
    %2 = vector.load %arg4[%c0_1, %c0_2] : memref<512x128xbf16, #tpu.memory_space<vmem>>, vector<512x128xbf16>
    %3 = arith.extf %2 : vector<512x128xbf16> to vector<512x128xf32>
    %c0_3 = arith.constant 0 : index
    %c0_4 = arith.constant 0 : index
    %4 = vector.load %arg2[%c0_3, %c0_4] : memref<1x128xf32, #tpu.memory_space<vmem>>, vector<1x128xf32>
    %5 = vector.broadcast %4 : vector<1x128xf32> to vector<512x128xf32>
    %6 = arith.mulf %1, %5 : vector<512x128xf32>
    %c0_5 = arith.constant 0 : index
    %c0_6 = arith.constant 0 : index
    %7 = vector.load %arg3[%c0_5, %c0_6] : memref<1x128xf32, #tpu.memory_space<vmem>>, vector<1x128xf32>
    %8 = vector.broadcast %7 : vector<1x128xf32> to vector<512x128xf32>
    %9 = arith.addf %6, %8 : vector<512x128xf32>
    %10 = arith.addf %9, %3 : vector<512x128xf32>
    %cst = arith.constant 0.000000e+00 : f32
    %11 = vector.broadcast %cst : f32 to vector<512x128xf32>
    %12 = arith.maximumf %10, %11 : vector<512x128xf32>
    %c0_7 = arith.constant 0 : index
    %c0_8 = arith.constant 0 : index
    %13 = vector.load %arg5[%c0_7, %c0_8] : memref<512x128xf32, #tpu.memory_space<vmem>>, vector<512x128xf32>
    tpu.vector_store %arg5[%c0_7, %c0_8], %12 {strides = array<i32>} : memref<512x128xf32, #tpu.memory_space<vmem>>, vector<512x128xf32>,
    return
  }
  func.func @transform_0(%arg0: i32) -> (i32, i32) {
    %c0_i32 = arith.constant 0 : i32
    %c0_i32_0 = arith.constant 0 : i32
    return %arg0, %c0_i32 : i32, i32
  }
  func.func @transform_1(%arg0: i32) -> (i32, i32) {
    %c0_i32 = arith.constant 0 : i32
    %c0_i32_0 = arith.constant 0 : i32
    %c0_i32_1 = arith.constant 0 : i32
    return %c0_i32, %c0_i32_0 : i32, i32
  }
  func.func @transform_2(%arg0: i32) -> (i32, i32) {
    %c0_i32 = arith.constant 0 : i32
    %c0_i32_0 = arith.constant 0 : i32
    %c0_i32_1 = arith.constant 0 : i32
    return %c0_i32, %c0_i32_0 : i32, i32
  }
  func.func @transform_3(%arg0: i32) -> (i32, i32) {
    %c0_i32 = arith.constant 0 : i32
    %c0_i32_0 = arith.constant 0 : i32
    return %arg0, %c0_i32 : i32, i32
  }
  func.func @transform_4(%arg0: i32) -> (i32, i32) {
    %c0_i32 = arith.constant 0 : i32
    %c0_i32_0 = arith.constant 0 : i32
    return %arg0, %c0_i32 : i32, i32
  }
}

</mosaic_0001>

<llo_original>
// kernel: residual_forward.5
$region0: #{residual_forward.5}
  #allocation0 [shape = 'u32[]', space=smem, size = 0x4, offset = 0x4, fixed_abs, tag = 'smem constant byte address 0x4 - core index']
  #allocation1 [shape = 'u32[72,128]{1,0:T(1,128)}', space=vmem, size = 0x9000, scoped, tag = 'internal scratch']
  %s0 = inlined_call_operand.vmem [shape: bf16[512,128], index: 0, kind: input, shape index: {}]
  %s1 = inlined_call_operand.vmem [shape: f32[1,128], index: 1, kind: input, shape index: {}]
  %s2 = inlined_call_operand.vmem [shape: f32[1,128], index: 2, kind: input, shape index: {}]
  %s3 = inlined_call_operand.vmem [shape: bf16[512,128], index: 3, kind: output, shape index: {}]
  %s4 = sld [smem:[#allocation0]]
  $region22: #{residual_forward.5} parent=0
    _
  %s6 = ssub.s32 1, %s4
  %s7 = scalar_select 0, %s6, %s4
  // Predicated region
  $region2: #{residual_forward.5} parent=0 // pred_check
    _
  $region3: #{residual_forward.5} parent=0 // pred_check_branch
    %9 = sbr.rel (0) target = $region5
  $region4: #{residual_forward.5} parent=0 // pred_region
    _
  $region5: #{residual_forward.5} parent=0 // pred_fallthru
    _
  // Predicated region
  $region6: #{residual_forward.5} parent=0 // pred_check
    _
  $region7: #{residual_forward.5} parent=0 // pred_check_branch
    %11 = sbr.rel (0) target = $region9
  $region8: #{residual_forward.5} parent=0 // pred_region
    _
  $region9: #{residual_forward.5} parent=0 // pred_fallthru
    _
  // Predicated region
  $region10: #{residual_forward.5} parent=0 // pred_check
    _
  $region11: #{residual_forward.5} parent=0 // pred_check_branch
    %13 = sbr.rel (0) target = $region13
  $region12: #{residual_forward.5} parent=0 // pred_region
    _
  $region13: #{residual_forward.5} parent=0 // pred_fallthru
    _
  %v14 = vld [vmem:[%s0] sm:$0xf]
  %v15 = vld [vmem:[%s0 + $0x4] sm:$0xf]
  %v16 = vld [vmem:[%s0 + $0x8] sm:$0xf]
  %v17 = vld [vmem:[%s0 + $0xc] sm:$0xf]
  %v18 = vld [vmem:[%s0 + $0x10] sm:$0xf]
  %v19 = vld [vmem:[%s0 + $0x14] sm:$0xf]
  %v20 = vld [vmem:[%s0 + $0x18] sm:$0xf]
  %v21 = vld [vmem:[%s0 + $0x1c] sm:$0xf]
  %v22 = vld [vmem:[%s0 + $0x20] sm:$0xf]
  %v23 = vld [vmem:[%s0 + $0x24] sm:$0xf]
  %v24 = vld [vmem:[%s0 + $0x28] sm:$0xf]
  %v25 = vld [vmem:[%s0 + $0x2c] sm:$0xf]
  %v26 = vld [vmem:[%s0 + $0x30] sm:$0xf]
  %v27 = vld [vmem:[%s0 + $0x34] sm:$0xf]
  %v28 = vld [vmem:[%s0 + $0x38] sm:$0xf]
  %v29 = vld [vmem:[%s0 + $0x3c] sm:$0xf]
  %v30 = vld [vmem:[%s0 + $0x40] sm:$0xf]
  %v31 = vld [vmem:[%s0 + $0x44] sm:$0xf]
  %v32 = vld [vmem:[%s0 + $0x48] sm:$0xf]
  %v33 = vld [vmem:[%s0 + $0x4c] sm:$0xf]
  %v34 = vld [vmem:[%s0 + $0x50] sm:$0xf]
  %v35 = vld [vmem:[%s0 + $0x54] sm:$0xf]
  %v36 = vld [vmem:[%s0 + $0x58] sm:$0xf]
  %v37 = vld [vmem:[%s0 + $0x5c] sm:$0xf]
  %v38 = vld [vmem:[%s0 + $0x60] sm:$0xf]
  %v39 = vld [vmem:[%s0 + $0x64] sm:$0xf]
  %v40 = vld [vmem:[%s0 + $0x68] sm:$0xf]
  %v41 = vld [vmem:[%s0 + $0x6c] sm:$0xf]
  %v42 = vld [vmem:[%s0 + $0x70] sm:$0xf]
  %v43 = vld [vmem:[%s0 + $0x74] sm:$0xf]
  %v44 = vld [vmem:[%s0 + $0x78] sm:$0xf]
  %v45 = vld [vmem:[%s0 + $0x7c] sm:$0xf]
  %v46 = vld [vmem:[%s0 + $0x80] sm:$0xf]
  %v47 = vld [vmem:[%s0 + $0x84] sm:$0xf]
  %v48 = vld [vmem:[%s0 + $0x88] sm:$0xf]
  %v49 = vld [vmem:[%s0 + $0x8c] sm:$0xf]
  %v50 = vld [vmem:[%s0 + $0x90] sm:$0xf]
  %v51 = vld [vmem:[%s0 + $0x94] sm:$0xf]
  %v52 = vld [vmem:[%s0 + $0x98] sm:$0xf]
  %v53 = vld [vmem:[%s0 + $0x9c] sm:$0xf]
  %v54 = vld [vmem:[%s0 + $0xa0] sm:$0xf]
  %v55 = vld [vmem:[%s0 + $0xa4] sm:$0xf]
  %v56 = vld [vmem:[%s0 + $0xa8] sm:$0xf]
  %v57 = vld [vmem:[%s0 + $0xac] sm:$0xf]
  %v58 = vld [vmem:[%s0 + $0xb0] sm:$0xf]
  %v59 = vld [vmem:[%s0 + $0xb4] sm:$0xf]
  %v60 = vld [vmem:[%s0 + $0xb8] sm:$0xf]
  %v61 = vld [vmem:[%s0 + $0xbc] sm:$0xf]
  %v62 = vld [vmem:[%s0 + $0xc0] sm:$0xf]
  %v63 = vld [vmem:[%s0 + $0xc4] sm:$0xf]
  %v64 = vld [vmem:[%s0 + $0xc8] sm:$0xf]
  %v65 = vld [vmem:[%s0 + $0xcc] sm:$0xf]
  %v66 = vld [vmem:[%s0 + $0xd0] sm:$0xf]
  %v67 = vld [vmem:[%s0 + $0xd4] sm:$0xf]
  %v68 = vld [vmem:[%s0 + $0xd8] sm:$0xf]
  %v69 = vld [vmem:[%s0 + $0xdc] sm:$0xf]
  %v70 = vld [vmem:[%s0 + $0xe0] sm:$0xf]
  %v71 = vld [vmem:[%s0 + $0xe4] sm:$0xf]
  %v72 = vld [vmem:[%s0 + $0xe8] sm:$0xf]
  %v73 = vld [vmem:[%s0 + $0xec] sm:$0xf]
  %v74 = vld [vmem:[%s0 + $0xf0] sm:$0xf]
  %v75 = vld [vmem:[%s0 + $0xf4] sm:$0xf]
  %v76 = vld [vmem:[%s0 + $0xf8] sm:$0xf]
  %v77 = vld [vmem:[%s0 + $0xfc] sm:$0xf]
  %v78 = vunpack.c.l.bf16 %v14
  %v79 = vunpack.c.l.bf16 %v15
  %v80 = vunpack.c.l.bf16 %v16
  %v81 = vunpack.c.l.bf16 %v17
  %v82 = vunpack.c.l.bf16 %v18
  %v83 = vunpack.c.l.bf16 %v19
  %v84 = vunpack.c.l.bf16 %v20
  %v85 = vunpack.c.l.bf16 %v21
  %v86 = vunpack.c.l.bf16 %v22
  %v87 = vunpack.c.l.bf16 %v23
  %v88 = vunpack.c.l.bf16 %v24
  %v89 = vunpack.c.l.bf16 %v25
  %v90 = vunpack.c.l.bf16 %v26
  %v91 = vunpack.c.l.bf16 %v27
  %v92 = vunpack.c.l.bf16 %v28
  %v93 = vunpack.c.l.bf16 %v29
  %v94 = vunpack.c.l.bf16 %v30
  %v95 = vunpack.c.l.bf16 %v31
  %v96 = vunpack.c.l.bf16 %v32
  %v97 = vunpack.c.l.bf16 %v33
  %v98 = vunpack.c.l.bf16 %v34
  %v99 = vunpack.c.l.bf16 %v35
  %v100 = vunpack.c.l.bf16 %v36
  %v101 = vunpack.c.l.bf16 %v37
  %v102 = vunpack.c.l.bf16 %v38
  %v103 = vunpack.c.l.bf16 %v39
  %v104 = vunpack.c.l.bf16 %v40
  %v105 = vunpack.c.l.bf16 %v41
  %v106 = vunpack.c.l.bf16 %v42
  %v107 = vunpack.c.l.bf16 %v43
  %v108 = vunpack.c.l.bf16 %v44
  %v109 = vunpack.c.l.bf16 %v45
  %v110 = vunpack.c.l.bf16 %v46
  %v111 = vunpack.c.l.bf16 %v47
  %v112 = vunpack.c.l.bf16 %v48
  %v113 = vunpack.c.l.bf16 %v49
  %v114 = vunpack.c.l.bf16 %v50
  %v115 = vunpack.c.l.bf16 %v51
  %v116 = vunpack.c.l.bf16 %v52
  %v117 = vunpack.c.l.bf16 %v53
  %v118 = vunpack.c.l.bf16 %v54
  %v119 = vunpack.c.l.bf16 %v55
  %v120 = vunpack.c.l.bf16 %v56
  %v121 = vunpack.c.l.bf16 %v57
  %v122 = vunpack.c.l.bf16 %v58
  %v123 = vunpack.c.l.bf16 %v59
  %v124 = vunpack.c.l.bf16 %v60
  %v125 = vunpack.c.l.bf16 %v61
  %v126 = vunpack.c.l.bf16 %v62
  %v127 = vunpack.c.l.bf16 %v63
  %v128 = vunpack.c.l.bf16 %v64
  %v129 = vunpack.c.l.bf16 %v65
  %v130 = vunpack.c.l.bf16 %v66
  %v131 = vunpack.c.l.bf16 %v67
  %v132 = vunpack.c.l.bf16 %v68
  %v133 = vunpack.c.l.bf16 %v69
  %v134 = vunpack.c.l.bf16 %v70
  %v135 = vunpack.c.l.bf16 %v71
  %v136 = vunpack.c.l.bf16 %v72
  %v137 = vunpack.c.l.bf16 %v73
  %v138 = vunpack.c.l.bf16 %v74
  %v139 = vunpack.c.l.bf16 %v75
  %v140 = vunpack.c.l.bf16 %v76
  %v141 = vunpack.c.l.bf16 %v77
  %v142 = vld [vmem:[%s1] sm:$0x1]
  %v144 = vperm.slane %v142, 0
  %v146 = vmul.f32 %v78, %v144
  %v147 = vmul.f32 %v79, %v144
  %v148 = vmul.f32 %v80, %v144
  %v149 = vmul.f32 %v81, %v144
  %v150 = vmul.f32 %v82, %v144
  %v151 = vmul.f32 %v83, %v144
  %v152 = vmul.f32 %v84, %v144
  %v153 = vmul.f32 %v85, %v144
  %v154 = vmul.f32 %v86, %v144
  %v155 = vmul.f32 %v87, %v144
  %v156 = vmul.f32 %v88, %v144
  %v157 = vmul.f32 %v89, %v144
  %v158 = vmul.f32 %v90, %v144
  %v159 = vmul.f32 %v91, %v144
  %v160 = vmul.f32 %v92, %v144
  %v161 = vmul.f32 %v93, %v144
  %v162 = vmul.f32 %v94, %v144
  %v163 = vmul.f32 %v95, %v144
  %v164 = vmul.f32 %v96, %v144
  %v165 = vmul.f32 %v97, %v144
  %v166 = vmul.f32 %v98, %v144
  %v167 = vmul.f32 %v99, %v144
  %v168 = vmul.f32 %v100, %v144
  %v169 = vmul.f32 %v101, %v144
  %v170 = vmul.f32 %v102, %v144
  %v171 = vmul.f32 %v103, %v144
  %v172 = vmul.f32 %v104, %v144
  %v173 = vmul.f32 %v105, %v144
  %v174 = vmul.f32 %v106, %v144
  %v175 = vmul.f32 %v107, %v144
  %v176 = vmul.f32 %v108, %v144
  %v177 = vmul.f32 %v109, %v144
  %v178 = vmul.f32 %v110, %v144
  %v179 = vmul.f32 %v111, %v144
  %v180 = vmul.f32 %v112, %v144
  %v181 = vmul.f32 %v113, %v144
  %v182 = vmul.f32 %v114, %v144
  %v183 = vmul.f32 %v115, %v144
  %v184 = vmul.f32 %v116, %v144
  %v185 = vmul.f32 %v117, %v144
  %v186 = vmul.f32 %v118, %v144
  %v187 = vmul.f32 %v119, %v144
  %v188 = vmul.f32 %v120, %v144
  %v189 = vmul.f32 %v121, %v144
  %v190 = vmul.f32 %v122, %v144
  %v191 = vmul.f32 %v123, %v144
  %v192 = vmul.f32 %v124, %v144
  %v193 = vmul.f32 %v125, %v144
  %v194 = vmul.f32 %v126, %v144
  %v195 = vmul.f32 %v127, %v144
  %v196 = vmul.f32 %v128, %v144
  %v197 = vmul.f32 %v129, %v144
  %v198 = vmul.f32 %v130, %v144
  %v199 = vmul.f32 %v131, %v144
  %v200 = vmul.f32 %v132, %v144
  %v201 = vmul.f32 %v133, %v144
  %v202 = vmul.f32 %v134, %v144
  %v203 = vmul.f32 %v135, %v144
  %v204 = vmul.f32 %v136, %v144
  %v205 = vmul.f32 %v137, %v144
  %v206 = vmul.f32 %v138, %v144
  %v207 = vmul.f32 %v139, %v144
  %v208 = vmul.f32 %v140, %v144
  %v209 = vmul.f32 %v141, %v144
  %v210 = vld [vmem:[%s2] sm:$0x1]
  %v212 = vperm.slane %v210, 0
  %v214 = vadd.f32 %v146, %v212
  %v215 = vadd.f32 %v147, %v212
  %v216 = vadd.f32 %v148, %v212
  %v217 = vadd.f32 %v149, %v212
  %v218 = vadd.f32 %v150, %v212
  %v219 = vadd.f32 %v151, %v212
  %v220 = vadd.f32 %v152, %v212
  %v221 = vadd.f32 %v153, %v212
  %v222 = vadd.f32 %v154, %v212
  %v223 = vadd.f32 %v155, %v212
  %v224 = vadd.f32 %v156, %v212
  %v225 = vadd.f32 %v157, %v212
  %v226 = vadd.f32 %v158, %v212
  %v227 = vadd.f32 %v159, %v212
  %v228 = vadd.f32 %v160, %v212
  %v229 = vadd.f32 %v161, %v212
  %v230 = vadd.f32 %v162, %v212
  %v231 = vadd.f32 %v163, %v212
  %v232 = vadd.f32 %v164, %v212
  %v233 = vadd.f32 %v165, %v212
  %v234 = vadd.f32 %v166, %v212
  %v235 = vadd.f32 %v167, %v212
  %v236 = vadd.f32 %v168, %v212
  %v237 = vadd.f32 %v169, %v212
  %v238 = vadd.f32 %v170, %v212
  %v239 = vadd.f32 %v171, %v212
  %v240 = vadd.f32 %v172, %v212
  %v241 = vadd.f32 %v173, %v212
  %v242 = vadd.f32 %v174, %v212
  %v243 = vadd.f32 %v175, %v212
  %v244 = vadd.f32 %v176, %v212
  %v245 = vadd.f32 %v177, %v212
  %v246 = vadd.f32 %v178, %v212
  %v247 = vadd.f32 %v179, %v212
  %v248 = vadd.f32 %v180, %v212
  %v249 = vadd.f32 %v181, %v212
  %v250 = vadd.f32 %v182, %v212
  %v251 = vadd.f32 %v183, %v212
  %v252 = vadd.f32 %v184, %v212
  %v253 = vadd.f32 %v185, %v212
  %v254 = vadd.f32 %v186, %v212
  %v255 = vadd.f32 %v187, %v212
  %v256 = vadd.f32 %v188, %v212
  %v257 = vadd.f32 %v189, %v212
  %v258 = vadd.f32 %v190, %v212
  %v259 = vadd.f32 %v191, %v212
  %v260 = vadd.f32 %v192, %v212
  %v261 = vadd.f32 %v193, %v212
  %v262 = vadd.f32 %v194, %v212
  %v263 = vadd.f32 %v195, %v212
  %v264 = vadd.f32 %v196, %v212
  %v265 = vadd.f32 %v197, %v212
  %v266 = vadd.f32 %v198, %v212
  %v267 = vadd.f32 %v199, %v212
  %v268 = vadd.f32 %v200, %v212
  %v269 = vadd.f32 %v201, %v212
  %v270 = vadd.f32 %v202, %v212
  %v271 = vadd.f32 %v203, %v212
  %v272 = vadd.f32 %v204, %v212
  %v273 = vadd.f32 %v205, %v212
  %v274 = vadd.f32 %v206, %v212
  %v275 = vadd.f32 %v207, %v212
  %v276 = vadd.f32 %v208, %v212
  %v277 = vadd.f32 %v209, %v212
  %v278 = vmax.f32 %v214, 0.0
  %v279 = vmax.f32 %v215, 0.0
  %v280 = vmax.f32 %v216, 0.0
  %v281 = vmax.f32 %v217, 0.0
  %v282 = vmax.f32 %v218, 0.0
  %v283 = vmax.f32 %v219, 0.0
  %v284 = vmax.f32 %v220, 0.0
  %v285 = vmax.f32 %v221, 0.0
  %v286 = vmax.f32 %v222, 0.0
  %v287 = vmax.f32 %v223, 0.0
  %v288 = vmax.f32 %v224, 0.0
  %v289 = vmax.f32 %v225, 0.0
  %v290 = vmax.f32 %v226, 0.0
  %v291 = vmax.f32 %v227, 0.0
  %v292 = vmax.f32 %v228, 0.0
  %v293 = vmax.f32 %v229, 0.0
  %v294 = vmax.f32 %v230, 0.0
  %v295 = vmax.f32 %v231, 0.0
  %v296 = vmax.f32 %v232, 0.0
  %v297 = vmax.f32 %v233, 0.0
  %v298 = vmax.f32 %v234, 0.0
  %v299 = vmax.f32 %v235, 0.0
  %v300 = vmax.f32 %v236, 0.0
  %v301 = vmax.f32 %v237, 0.0
  %v302 = vmax.f32 %v238, 0.0
  %v303 = vmax.f32 %v239, 0.0
  %v304 = vmax.f32 %v240, 0.0
  %v305 = vmax.f32 %v241, 0.0
  %v306 = vmax.f32 %v242, 0.0
  %v307 = vmax.f32 %v243, 0.0
  %v308 = vmax.f32 %v244, 0.0
  %v309 = vmax.f32 %v245, 0.0
  %v310 = vmax.f32 %v246, 0.0
  %v311 = vmax.f32 %v247, 0.0
  %v312 = vmax.f32 %v248, 0.0
  %v313 = vmax.f32 %v249, 0.0
  %v314 = vmax.f32 %v250, 0.0
  %v315 = vmax.f32 %v251, 0.0
  %v316 = vmax.f32 %v252, 0.0
  %v317 = vmax.f32 %v253, 0.0
  %v318 = vmax.f32 %v254, 0.0
  %v319 = vmax.f32 %v255, 0.0
  %v320 = vmax.f32 %v256, 0.0
  %v321 = vmax.f32 %v257, 0.0
  %v322 = vmax.f32 %v258, 0.0
  %v323 = vmax.f32 %v259, 0.0
  %v324 = vmax.f32 %v260, 0.0
  %v325 = vmax.f32 %v261, 0.0
  %v326 = vmax.f32 %v262, 0.0
  %v327 = vmax.f32 %v263, 0.0
  %v328 = vmax.f32 %v264, 0.0
  %v329 = vmax.f32 %v265, 0.0
  %v330 = vmax.f32 %v266, 0.0
  %v331 = vmax.f32 %v267, 0.0
  %v332 = vmax.f32 %v268, 0.0
  %v333 = vmax.f32 %v269, 0.0
  %v334 = vmax.f32 %v270, 0.0
  %v335 = vmax.f32 %v271, 0.0
  %v336 = vmax.f32 %v272, 0.0
  %v337 = vmax.f32 %v273, 0.0
  %v338 = vmax.f32 %v274, 0.0
  %v339 = vmax.f32 %v275, 0.0
  %v340 = vmax.f32 %v276, 0.0
  %v341 = vmax.f32 %v277, 0.0
  %v342 = vpack.c.bf16 %v278, %v278
  %v343 = vpack.c.bf16 %v279, %v279
  %v344 = vpack.c.bf16 %v280, %v280
  %v345 = vpack.c.bf16 %v281, %v281
  %v346 = vpack.c.bf16 %v282, %v282
  %v347 = vpack.c.bf16 %v283, %v283
  %v348 = vpack.c.bf16 %v284, %v284
  %v349 = vpack.c.bf16 %v285, %v285
  %v350 = vpack.c.bf16 %v286, %v286
  %v351 = vpack.c.bf16 %v287, %v287
  %v352 = vpack.c.bf16 %v288, %v288
  %v353 = vpack.c.bf16 %v289, %v289
  %v354 = vpack.c.bf16 %v290, %v290
  %v355 = vpack.c.bf16 %v291, %v291
  %v356 = vpack.c.bf16 %v292, %v292
  %v357 = vpack.c.bf16 %v293, %v293
  %v358 = vpack.c.bf16 %v294, %v294
  %v359 = vpack.c.bf16 %v295, %v295
  %v360 = vpack.c.bf16 %v296, %v296
  %v361 = vpack.c.bf16 %v297, %v297
  %v362 = vpack.c.bf16 %v298, %v298
  %v363 = vpack.c.bf16 %v299, %v299
  %v364 = vpack.c.bf16 %v300, %v300
  %v365 = vpack.c.bf16 %v301, %v301
  %v366 = vpack.c.bf16 %v302, %v302
  %v367 = vpack.c.bf16 %v303, %v303
  %v368 = vpack.c.bf16 %v304, %v304
  %v369 = vpack.c.bf16 %v305, %v305
  %v370 = vpack.c.bf16 %v306, %v306
  %v371 = vpack.c.bf16 %v307, %v307
  %v372 = vpack.c.bf16 %v308, %v308
  %v373 = vpack.c.bf16 %v309, %v309
  %v374 = vpack.c.bf16 %v310, %v310
  %v375 = vpack.c.bf16 %v311, %v311
  %v376 = vpack.c.bf16 %v312, %v312
  %v377 = vpack.c.bf16 %v313, %v313
  %v378 = vpack.c.bf16 %v314, %v314
  %v379 = vpack.c.bf16 %v315, %v315
  %v380 = vpack.c.bf16 %v316, %v316
  %v381 = vpack.c.bf16 %v317, %v317
  %v382 = vpack.c.bf16 %v318, %v318
  %v383 = vpack.c.bf16 %v319, %v319
  %v384 = vpack.c.bf16 %v320, %v320
  %v385 = vpack.c.bf16 %v321, %v321
  %v386 = vpack.c.bf16 %v322, %v322
  %v387 = vpack.c.bf16 %v323, %v323
  %v388 = vpack.c.bf16 %v324, %v324
  %v389 = vpack.c.bf16 %v325, %v325
  %v390 = vpack.c.bf16 %v326, %v326
  %v391 = vpack.c.bf16 %v327, %v327
  %v392 = vpack.c.bf16 %v328, %v328
  %v393 = vpack.c.bf16 %v329, %v329
  %v394 = vpack.c.bf16 %v330, %v330
  %v395 = vpack.c.bf16 %v331, %v331
  %v396 = vpack.c.bf16 %v332, %v332
  %v397 = vpack.c.bf16 %v333, %v333
  %v398 = vpack.c.bf16 %v334, %v334
  %v399 = vpack.c.bf16 %v335, %v335
  %v400 = vpack.c.bf16 %v336, %v336
  %v401 = vpack.c.bf16 %v337, %v337
  %v402 = vpack.c.bf16 %v338, %v338
  %v403 = vpack.c.bf16 %v339, %v339
  %v404 = vpack.c.bf16 %v340, %v340
  %v405 = vpack.c.bf16 %v341, %v341
  %406 = vst [vmem:[%s3] sm:$0xf] %v342
  %407 = vst [vmem:[%s3 + $0x4] sm:$0xf] %v343
  %408 = vst [vmem:[%s3 + $0x8] sm:$0xf] %v344
  %409 = vst [vmem:[%s3 + $0xc] sm:$0xf] %v345
  %410 = vst [vmem:[%s3 + $0x10] sm:$0xf] %v346
  %411 = vst [vmem:[%s3 + $0x14] sm:$0xf] %v347
  %412 = vst [vmem:[%s3 + $0x18] sm:$0xf] %v348
  %413 = vst [vmem:[%s3 + $0x1c] sm:$0xf] %v349
  %414 = vst [vmem:[%s3 + $0x20] sm:$0xf] %v350
  %415 = vst [vmem:[%s3 + $0x24] sm:$0xf] %v351
  %416 = vst [vmem:[%s3 + $0x28] sm:$0xf] %v352
  %417 = vst [vmem:[%s3 + $0x2c] sm:$0xf] %v353
  %418 = vst [vmem:[%s3 + $0x30] sm:$0xf] %v354
  %419 = vst [vmem:[%s3 + $0x34] sm:$0xf] %v355
  %420 = vst [vmem:[%s3 + $0x38] sm:$0xf] %v356
  %421 = vst [vmem:[%s3 + $0x3c] sm:$0xf] %v357
  %422 = vst [vmem:[%s3 + $0x40] sm:$0xf] %v358
  %423 = vst [vmem:[%s3 + $0x44] sm:$0xf] %v359
  %424 = vst [vmem:[%s3 + $0x48] sm:$0xf] %v360
  %425 = vst [vmem:[%s3 + $0x4c] sm:$0xf] %v361
  %426 = vst [vmem:[%s3 + $0x50] sm:$0xf] %v362
  %427 = vst [vmem:[%s3 + $0x54] sm:$0xf] %v363
  %428 = vst [vmem:[%s3 + $0x58] sm:$0xf] %v364
  %429 = vst [vmem:[%s3 + $0x5c] sm:$0xf] %v365
  %430 = vst [vmem:[%s3 + $0x60] sm:$0xf] %v366
  %431 = vst [vmem:[%s3 + $0x64] sm:$0xf] %v367
  %432 = vst [vmem:[%s3 + $0x68] sm:$0xf] %v368
  %433 = vst [vmem:[%s3 + $0x6c] sm:$0xf] %v369
  %434 = vst [vmem:[%s3 + $0x70] sm:$0xf] %v370
  %435 = vst [vmem:[%s3 + $0x74] sm:$0xf] %v371
  %436 = vst [vmem:[%s3 + $0x78] sm:$0xf] %v372
  %437 = vst [vmem:[%s3 + $0x7c] sm:$0xf] %v373
  %438 = vst [vmem:[%s3 + $0x80] sm:$0xf] %v374
  %439 = vst [vmem:[%s3 + $0x84] sm:$0xf] %v375
  %440 = vst [vmem:[%s3 + $0x88] sm:$0xf] %v376
  %441 = vst [vmem:[%s3 + $0x8c] sm:$0xf] %v377
  %442 = vst [vmem:[%s3 + $0x90] sm:$0xf] %v378
  %443 = vst [vmem:[%s3 + $0x94] sm:$0xf] %v379
  %444 = vst [vmem:[%s3 + $0x98] sm:$0xf] %v380
  %445 = vst [vmem:[%s3 + $0x9c] sm:$0xf] %v381
  %446 = vst [vmem:[%s3 + $0xa0] sm:$0xf] %v382
  %447 = vst [vmem:[%s3 + $0xa4] sm:$0xf] %v383
  %448 = vst [vmem:[%s3 + $0xa8] sm:$0xf] %v384
  %449 = vst [vmem:[%s3 + $0xac] sm:$0xf] %v385
  %450 = vst [vmem:[%s3 + $0xb0] sm:$0xf] %v386
  %451 = vst [vmem:[%s3 + $0xb4] sm:$0xf] %v387
  %452 = vst [vmem:[%s3 + $0xb8] sm:$0xf] %v388
  %453 = vst [vmem:[%s3 + $0xbc] sm:$0xf] %v389
  %454 = vst [vmem:[%s3 + $0xc0] sm:$0xf] %v390
  %455 = vst [vmem:[%s3 + $0xc4] sm:$0xf] %v391
  %456 = vst [vmem:[%s3 + $0xc8] sm:$0xf] %v392
  %457 = vst [vmem:[%s3 + $0xcc] sm:$0xf] %v393
  %458 = vst [vmem:[%s3 + $0xd0] sm:$0xf] %v394
  %459 = vst [vmem:[%s3 + $0xd4] sm:$0xf] %v395
  %460 = vst [vmem:[%s3 + $0xd8] sm:$0xf] %v396
  %461 = vst [vmem:[%s3 + $0xdc] sm:$0xf] %v397
  %462 = vst [vmem:[%s3 + $0xe0] sm:$0xf] %v398
  %463 = vst [vmem:[%s3 + $0xe4] sm:$0xf] %v399
  %464 = vst [vmem:[%s3 + $0xe8] sm:$0xf] %v400
  %465 = vst [vmem:[%s3 + $0xec] sm:$0xf] %v401
  %466 = vst [vmem:[%s3 + $0xf0] sm:$0xf] %v402
  %467 = vst [vmem:[%s3 + $0xf4] sm:$0xf] %v403
  %468 = vst [vmem:[%s3 + $0xf8] sm:$0xf] %v404
  %469 = vst [vmem:[%s3 + $0xfc] sm:$0xf] %v405
  // Predicated region
  $region14: #{residual_forward.5} parent=0 // pred_check
    _
  $region15: #{residual_forward.5} parent=0 // pred_check_branch
    %471 = sbr.rel (0) target = $region17
  $region16: #{residual_forward.5} parent=0 // pred_region
    _
  $region17: #{residual_forward.5} parent=0 // pred_fallthru
    _
  // Predicated region
  $region18: #{residual_forward.5} parent=0 // pred_check
    _
  $region19: #{residual_forward.5} parent=0 // pred_check_branch
    %473 = sbr.rel (0) target = $region21
  $region20: #{residual_forward.5} parent=0 // pred_region
    _
  $region21: #{residual_forward.5} parent=0 // pred_fallthru
    _

// kernel: residual_forward.7
$region0: #{residual_forward.7}
  #allocation0 [shape = 'u32[]', space=smem, size = 0x4, offset = 0x4, fixed_abs, tag = 'smem constant byte address 0x4 - core index']
  #allocation1 [shape = 'u32[72,128]{1,0:T(1,128)}', space=vmem, size = 0x9000, scoped, tag = 'internal scratch']
  %s0 = inlined_call_operand.vmem [shape: bf16[512,128], index: 0, kind: input, shape index: {}]
  %s1 = inlined_call_operand.vmem [shape: f32[1,128], index: 1, kind: input, shape index: {}]
  %s2 = inlined_call_operand.vmem [shape: f32[1,128], index: 2, kind: input, shape index: {}]
  %s3 = inlined_call_operand.vmem [shape: bf16[512,128], index: 3, kind: input, shape index: {}]
  %s4 = inlined_call_operand.vmem [shape: f32[512,128], index: 4, kind: output, shape index: {}]
  %s5 = sld [smem:[#allocation0]]
  $region26: #{residual_forward.7} parent=0
    _
  %s7 = ssub.s32 1, %s5
  %s8 = scalar_select 0, %s7, %s5
  // Predicated region
  $region2: #{residual_forward.7} parent=0 // pred_check
    _
  $region3: #{residual_forward.7} parent=0 // pred_check_branch
    %10 = sbr.rel (0) target = $region5
  $region4: #{residual_forward.7} parent=0 // pred_region
    _
  $region5: #{residual_forward.7} parent=0 // pred_fallthru
    _
  // Predicated region
  $region6: #{residual_forward.7} parent=0 // pred_check
    _
  $region7: #{residual_forward.7} parent=0 // pred_check_branch
    %12 = sbr.rel (0) target = $region9
  $region8: #{residual_forward.7} parent=0 // pred_region
    _
  $region9: #{residual_forward.7} parent=0 // pred_fallthru
    _
  // Predicated region
  $region10: #{residual_forward.7} parent=0 // pred_check
    _
  $region11: #{residual_forward.7} parent=0 // pred_check_branch
    %14 = sbr.rel (0) target = $region13
  $region12: #{residual_forward.7} parent=0 // pred_region
    _
  $region13: #{residual_forward.7} parent=0 // pred_fallthru
    _
  // Predicated region
  $region14: #{residual_forward.7} parent=0 // pred_check
    _
  $region15: #{residual_forward.7} parent=0 // pred_check_branch
    %16 = sbr.rel (0) target = $region17
  $region16: #{residual_forward.7} parent=0 // pred_region
    _
  $region17: #{residual_forward.7} parent=0 // pred_fallthru
    _
  %v17 = vld [vmem:[%s0] sm:$0xf]
  %v18 = vld [vmem:[%s0 + $0x4] sm:$0xf]
  %v19 = vld [vmem:[%s0 + $0x8] sm:$0xf]
  %v20 = vld [vmem:[%s0 + $0xc] sm:$0xf]
  %v21 = vld [vmem:[%s0 + $0x10] sm:$0xf]
  %v22 = vld [vmem:[%s0 + $0x14] sm:$0xf]
  %v23 = vld [vmem:[%s0 + $0x18] sm:$0xf]
  %v24 = vld [vmem:[%s0 + $0x1c] sm:$0xf]
  %v25 = vld [vmem:[%s0 + $0x20] sm:$0xf]
  %v26 = vld [vmem:[%s0 + $0x24] sm:$0xf]
  %v27 = vld [vmem:[%s0 + $0x28] sm:$0xf]
  %v28 = vld [vmem:[%s0 + $0x2c] sm:$0xf]
  %v29 = vld [vmem:[%s0 + $0x30] sm:$0xf]
  %v30 = vld [vmem:[%s0 + $0x34] sm:$0xf]
  %v31 = vld [vmem:[%s0 + $0x38] sm:$0xf]
  %v32 = vld [vmem:[%s0 + $0x3c] sm:$0xf]
  %v33 = vld [vmem:[%s0 + $0x40] sm:$0xf]
  %v34 = vld [vmem:[%s0 + $0x44] sm:$0xf]
  %v35 = vld [vmem:[%s0 + $0x48] sm:$0xf]
  %v36 = vld [vmem:[%s0 + $0x4c] sm:$0xf]
  %v37 = vld [vmem:[%s0 + $0x50] sm:$0xf]
  %v38 = vld [vmem:[%s0 + $0x54] sm:$0xf]
  %v39 = vld [vmem:[%s0 + $0x58] sm:$0xf]
  %v40 = vld [vmem:[%s0 + $0x5c] sm:$0xf]
  %v41 = vld [vmem:[%s0 + $0x60] sm:$0xf]
  %v42 = vld [vmem:[%s0 + $0x64] sm:$0xf]
  %v43 = vld [vmem:[%s0 + $0x68] sm:$0xf]
  %v44 = vld [vmem:[%s0 + $0x6c] sm:$0xf]
  %v45 = vld [vmem:[%s0 + $0x70] sm:$0xf]
  %v46 = vld [vmem:[%s0 + $0x74] sm:$0xf]
  %v47 = vld [vmem:[%s0 + $0x78] sm:$0xf]
  %v48 = vld [vmem:[%s0 + $0x7c] sm:$0xf]
  %v49 = vld [vmem:[%s0 + $0x80] sm:$0xf]
  %v50 = vld [vmem:[%s0 + $0x84] sm:$0xf]
  %v51 = vld [vmem:[%s0 + $0x88] sm:$0xf]
  %v52 = vld [vmem:[%s0 + $0x8c] sm:$0xf]
  %v53 = vld [vmem:[%s0 + $0x90] sm:$0xf]
  %v54 = vld [vmem:[%s0 + $0x94] sm:$0xf]
  %v55 = vld [vmem:[%s0 + $0x98] sm:$0xf]
  %v56 = vld [vmem:[%s0 + $0x9c] sm:$0xf]
  %v57 = vld [vmem:[%s0 + $0xa0] sm:$0xf]
  %v58 = vld [vmem:[%s0 + $0xa4] sm:$0xf]
  %v59 = vld [vmem:[%s0 + $0xa8] sm:$0xf]
  %v60 = vld [vmem:[%s0 + $0xac] sm:$0xf]
  %v61 = vld [vmem:[%s0 + $0xb0] sm:$0xf]
  %v62 = vld [vmem:[%s0 + $0xb4] sm:$0xf]
  %v63 = vld [vmem:[%s0 + $0xb8] sm:$0xf]
  %v64 = vld [vmem:[%s0 + $0xbc] sm:$0xf]
  %v65 = vld [vmem:[%s0 + $0xc0] sm:$0xf]
  %v66 = vld [vmem:[%s0 + $0xc4] sm:$0xf]
  %v67 = vld [vmem:[%s0 + $0xc8] sm:$0xf]
  %v68 = vld [vmem:[%s0 + $0xcc] sm:$0xf]
  %v69 = vld [vmem:[%s0 + $0xd0] sm:$0xf]
  %v70 = vld [vmem:[%s0 + $0xd4] sm:$0xf]
  %v71 = vld [vmem:[%s0 + $0xd8] sm:$0xf]
  %v72 = vld [vmem:[%s0 + $0xdc] sm:$0xf]
  %v73 = vld [vmem:[%s0 + $0xe0] sm:$0xf]
  %v74 = vld [vmem:[%s0 + $0xe4] sm:$0xf]
  %v75 = vld [vmem:[%s0 + $0xe8] sm:$0xf]
  %v76 = vld [vmem:[%s0 + $0xec] sm:$0xf]
  %v77 = vld [vmem:[%s0 + $0xf0] sm:$0xf]
  %v78 = vld [vmem:[%s0 + $0xf4] sm:$0xf]
  %v79 = vld [vmem:[%s0 + $0xf8] sm:$0xf]
  %v80 = vld [vmem:[%s0 + $0xfc] sm:$0xf]
  %v81 = vunpack.c.l.bf16 %v17
  %v82 = vunpack.c.l.bf16 %v18
  %v83 = vunpack.c.l.bf16 %v19
  %v84 = vunpack.c.l.bf16 %v20
  %v85 = vunpack.c.l.bf16 %v21
  %v86 = vunpack.c.l.bf16 %v22
  %v87 = vunpack.c.l.bf16 %v23
  %v88 = vunpack.c.l.bf16 %v24
  %v89 = vunpack.c.l.bf16 %v25
  %v90 = vunpack.c.l.bf16 %v26
  %v91 = vunpack.c.l.bf16 %v27
  %v92 = vunpack.c.l.bf16 %v28
  %v93 = vunpack.c.l.bf16 %v29
  %v94 = vunpack.c.l.bf16 %v30
  %v95 = vunpack.c.l.bf16 %v31
  %v96 = vunpack.c.l.bf16 %v32
  %v97 = vunpack.c.l.bf16 %v33
  %v98 = vunpack.c.l.bf16 %v34
  %v99 = vunpack.c.l.bf16 %v35
  %v100 = vunpack.c.l.bf16 %v36
  %v101 = vunpack.c.l.bf16 %v37
  %v102 = vunpack.c.l.bf16 %v38
  %v103 = vunpack.c.l.bf16 %v39
  %v104 = vunpack.c.l.bf16 %v40
  %v105 = vunpack.c.l.bf16 %v41
  %v106 = vunpack.c.l.bf16 %v42
  %v107 = vunpack.c.l.bf16 %v43
  %v108 = vunpack.c.l.bf16 %v44
  %v109 = vunpack.c.l.bf16 %v45
  %v110 = vunpack.c.l.bf16 %v46
  %v111 = vunpack.c.l.bf16 %v47
  %v112 = vunpack.c.l.bf16 %v48
  %v113 = vunpack.c.l.bf16 %v49
  %v114 = vunpack.c.l.bf16 %v50
  %v115 = vunpack.c.l.bf16 %v51
  %v116 = vunpack.c.l.bf16 %v52
  %v117 = vunpack.c.l.bf16 %v53
  %v118 = vunpack.c.l.bf16 %v54
  %v119 = vunpack.c.l.bf16 %v55
  %v120 = vunpack.c.l.bf16 %v56
  %v121 = vunpack.c.l.bf16 %v57
  %v122 = vunpack.c.l.bf16 %v58
  %v123 = vunpack.c.l.bf16 %v59
  %v124 = vunpack.c.l.bf16 %v60
  %v125 = vunpack.c.l.bf16 %v61
  %v126 = vunpack.c.l.bf16 %v62
  %v127 = vunpack.c.l.bf16 %v63
  %v128 = vunpack.c.l.bf16 %v64
  %v129 = vunpack.c.l.bf16 %v65
  %v130 = vunpack.c.l.bf16 %v66
  %v131 = vunpack.c.l.bf16 %v67
  %v132 = vunpack.c.l.bf16 %v68
  %v133 = vunpack.c.l.bf16 %v69
  %v134 = vunpack.c.l.bf16 %v70
  %v135 = vunpack.c.l.bf16 %v71
  %v136 = vunpack.c.l.bf16 %v72
  %v137 = vunpack.c.l.bf16 %v73
  %v138 = vunpack.c.l.bf16 %v74
  %v139 = vunpack.c.l.bf16 %v75
  %v140 = vunpack.c.l.bf16 %v76
  %v141 = vunpack.c.l.bf16 %v77
  %v142 = vunpack.c.l.bf16 %v78
  %v143 = vunpack.c.l.bf16 %v79
  %v144 = vunpack.c.l.bf16 %v80
  %v145 = vld [vmem:[%s3] sm:$0xf]
  %v146 = vld [vmem:[%s3 + $0x4] sm:$0xf]
  %v147 = vld [vmem:[%s3 + $0x8] sm:$0xf]
  %v148 = vld [vmem:[%s3 + $0xc] sm:$0xf]
  %v149 = vld [vmem:[%s3 + $0x10] sm:$0xf]
  %v150 = vld [vmem:[%s3 + $0x14] sm:$0xf]
  %v151 = vld [vmem:[%s3 + $0x18] sm:$0xf]
  %v152 = vld [vmem:[%s3 + $0x1c] sm:$0xf]
  %v153 = vld [vmem:[%s3 + $0x20] sm:$0xf]
  %v154 = vld [vmem:[%s3 + $0x24] sm:$0xf]
  %v155 = vld [vmem:[%s3 + $0x28] sm:$0xf]
  %v156 = vld [vmem:[%s3 + $0x2c] sm:$0xf]
  %v157 = vld [vmem:[%s3 + $0x30] sm:$0xf]
  %v158 = vld [vmem:[%s3 + $0x34] sm:$0xf]
  %v159 = vld [vmem:[%s3 + $0x38] sm:$0xf]
  %v160 = vld [vmem:[%s3 + $0x3c] sm:$0xf]
  %v161 = vld [vmem:[%s3 + $0x40] sm:$0xf]
  %v162 = vld [vmem:[%s3 + $0x44] sm:$0xf]
  %v163 = vld [vmem:[%s3 + $0x48] sm:$0xf]
  %v164 = vld [vmem:[%s3 + $0x4c] sm:$0xf]
  %v165 = vld [vmem:[%s3 + $0x50] sm:$0xf]
  %v166 = vld [vmem:[%s3 + $0x54] sm:$0xf]
  %v167 = vld [vmem:[%s3 + $0x58] sm:$0xf]
  %v168 = vld [vmem:[%s3 + $0x5c] sm:$0xf]
  %v169 = vld [vmem:[%s3 + $0x60] sm:$0xf]
  %v170 = vld [vmem:[%s3 + $0x64] sm:$0xf]
  %v171 = vld [vmem:[%s3 + $0x68] sm:$0xf]
  %v172 = vld [vmem:[%s3 + $0x6c] sm:$0xf]
  %v173 = vld [vmem:[%s3 + $0x70] sm:$0xf]
  %v174 = vld [vmem:[%s3 + $0x74] sm:$0xf]
  %v175 = vld [vmem:[%s3 + $0x78] sm:$0xf]
  %v176 = vld [vmem:[%s3 + $0x7c] sm:$0xf]
  %v177 = vld [vmem:[%s3 + $0x80] sm:$0xf]
  %v178 = vld [vmem:[%s3 + $0x84] sm:$0xf]
  %v179 = vld [vmem:[%s3 + $0x88] sm:$0xf]
  %v180 = vld [vmem:[%s3 + $0x8c] sm:$0xf]
  %v181 = vld [vmem:[%s3 + $0x90] sm:$0xf]
  %v182 = vld [vmem:[%s3 + $0x94] sm:$0xf]
  %v183 = vld [vmem:[%s3 + $0x98] sm:$0xf]
  %v184 = vld [vmem:[%s3 + $0x9c] sm:$0xf]
  %v185 = vld [vmem:[%s3 + $0xa0] sm:$0xf]
  %v186 = vld [vmem:[%s3 + $0xa4] sm:$0xf]
  %v187 = vld [vmem:[%s3 + $0xa8] sm:$0xf]
  %v188 = vld [vmem:[%s3 + $0xac] sm:$0xf]
  %v189 = vld [vmem:[%s3 + $0xb0] sm:$0xf]
  %v190 = vld [vmem:[%s3 + $0xb4] sm:$0xf]
  %v191 = vld [vmem:[%s3 + $0xb8] sm:$0xf]
  %v192 = vld [vmem:[%s3 + $0xbc] sm:$0xf]
  %v193 = vld [vmem:[%s3 + $0xc0] sm:$0xf]
  %v194 = vld [vmem:[%s3 + $0xc4] sm:$0xf]
  %v195 = vld [vmem:[%s3 + $0xc8] sm:$0xf]
  %v196 = vld [vmem:[%s3 + $0xcc] sm:$0xf]
  %v197 = vld [vmem:[%s3 + $0xd0] sm:$0xf]
  %v198 = vld [vmem:[%s3 + $0xd4] sm:$0xf]
  %v199 = vld [vmem:[%s3 + $0xd8] sm:$0xf]
  %v200 = vld [vmem:[%s3 + $0xdc] sm:$0xf]
  %v201 = vld [vmem:[%s3 + $0xe0] sm:$0xf]
  %v202 = vld [vmem:[%s3 + $0xe4] sm:$0xf]
  %v203 = vld [vmem:[%s3 + $0xe8] sm:$0xf]
  %v204 = vld [vmem:[%s3 + $0xec] sm:$0xf]
  %v205 = vld [vmem:[%s3 + $0xf0] sm:$0xf]
  %v206 = vld [vmem:[%s3 + $0xf4] sm:$0xf]
  %v207 = vld [vmem:[%s3 + $0xf8] sm:$0xf]
  %v208 = vld [vmem:[%s3 + $0xfc] sm:$0xf]
  %v209 = vunpack.c.l.bf16 %v145
  %v210 = vunpack.c.l.bf16 %v146
  %v211 = vunpack.c.l.bf16 %v147
  %v212 = vunpack.c.l.bf16 %v148
  %v213 = vunpack.c.l.bf16 %v149
  %v214 = vunpack.c.l.bf16 %v150
  %v215 = vunpack.c.l.bf16 %v151
  %v216 = vunpack.c.l.bf16 %v152
  %v217 = vunpack.c.l.bf16 %v153
  %v218 = vunpack.c.l.bf16 %v154
  %v219 = vunpack.c.l.bf16 %v155
  %v220 = vunpack.c.l.bf16 %v156
  %v221 = vunpack.c.l.bf16 %v157
  %v222 = vunpack.c.l.bf16 %v158
  %v223 = vunpack.c.l.bf16 %v159
  %v224 = vunpack.c.l.bf16 %v160
  %v225 = vunpack.c.l.bf16 %v161
  %v226 = vunpack.c.l.bf16 %v162
  %v227 = vunpack.c.l.bf16 %v163
  %v228 = vunpack.c.l.bf16 %v164
  %v229 = vunpack.c.l.bf16 %v165
  %v230 = vunpack.c.l.bf16 %v166
  %v231 = vunpack.c.l.bf16 %v167
  %v232 = vunpack.c.l.bf16 %v168
  %v233 = vunpack.c.l.bf16 %v169
  %v234 = vunpack.c.l.bf16 %v170
  %v235 = vunpack.c.l.bf16 %v171
  %v236 = vunpack.c.l.bf16 %v172
  %v237 = vunpack.c.l.bf16 %v173
  %v238 = vunpack.c.l.bf16 %v174
  %v239 = vunpack.c.l.bf16 %v175
  %v240 = vunpack.c.l.bf16 %v176
  %v241 = vunpack.c.l.bf16 %v177
  %v242 = vunpack.c.l.bf16 %v178
  %v243 = vunpack.c.l.bf16 %v179
  %v244 = vunpack.c.l.bf16 %v180
  %v245 = vunpack.c.l.bf16 %v181
  %v246 = vunpack.c.l.bf16 %v182
  %v247 = vunpack.c.l.bf16 %v183
  %v248 = vunpack.c.l.bf16 %v184
  %v249 = vunpack.c.l.bf16 %v185
  %v250 = vunpack.c.l.bf16 %v186
  %v251 = vunpack.c.l.bf16 %v187
  %v252 = vunpack.c.l.bf16 %v188
  %v253 = vunpack.c.l.bf16 %v189
  %v254 = vunpack.c.l.bf16 %v190
  %v255 = vunpack.c.l.bf16 %v191
  %v256 = vunpack.c.l.bf16 %v192
  %v257 = vunpack.c.l.bf16 %v193
  %v258 = vunpack.c.l.bf16 %v194
  %v259 = vunpack.c.l.bf16 %v195
  %v260 = vunpack.c.l.bf16 %v196
  %v261 = vunpack.c.l.bf16 %v197
  %v262 = vunpack.c.l.bf16 %v198
  %v263 = vunpack.c.l.bf16 %v199
  %v264 = vunpack.c.l.bf16 %v200
  %v265 = vunpack.c.l.bf16 %v201
  %v266 = vunpack.c.l.bf16 %v202
  %v267 = vunpack.c.l.bf16 %v203
  %v268 = vunpack.c.l.bf16 %v204
  %v269 = vunpack.c.l.bf16 %v205
  %v270 = vunpack.c.l.bf16 %v206
  %v271 = vunpack.c.l.bf16 %v207
  %v272 = vunpack.c.l.bf16 %v208
  %v273 = vld [vmem:[%s1] sm:$0x1]
  %v275 = vperm.slane %v273, 0
  %v277 = vmul.f32 %v81, %v275
  %v278 = vmul.f32 %v82, %v275
  %v279 = vmul.f32 %v83, %v275
  %v280 = vmul.f32 %v84, %v275
  %v281 = vmul.f32 %v85, %v275
  %v282 = vmul.f32 %v86, %v275
  %v283 = vmul.f32 %v87, %v275
  %v284 = vmul.f32 %v88, %v275
  %v285 = vmul.f32 %v89, %v275
  %v286 = vmul.f32 %v90, %v275
  %v287 = vmul.f32 %v91, %v275
  %v288 = vmul.f32 %v92, %v275
  %v289 = vmul.f32 %v93, %v275
  %v290 = vmul.f32 %v94, %v275
  %v291 = vmul.f32 %v95, %v275
  %v292 = vmul.f32 %v96, %v275
  %v293 = vmul.f32 %v97, %v275
  %v294 = vmul.f32 %v98, %v275
  %v295 = vmul.f32 %v99, %v275
  %v296 = vmul.f32 %v100, %v275
  %v297 = vmul.f32 %v101, %v275
  %v298 = vmul.f32 %v102, %v275
  %v299 = vmul.f32 %v103, %v275
  %v300 = vmul.f32 %v104, %v275
  %v301 = vmul.f32 %v105, %v275
  %v302 = vmul.f32 %v106, %v275
  %v303 = vmul.f32 %v107, %v275
  %v304 = vmul.f32 %v108, %v275
  %v305 = vmul.f32 %v109, %v275
  %v306 = vmul.f32 %v110, %v275
  %v307 = vmul.f32 %v111, %v275
  %v308 = vmul.f32 %v112, %v275
  %v309 = vmul.f32 %v113, %v275
  %v310 = vmul.f32 %v114, %v275
  %v311 = vmul.f32 %v115, %v275
  %v312 = vmul.f32 %v116, %v275
  %v313 = vmul.f32 %v117, %v275
  %v314 = vmul.f32 %v118, %v275
  %v315 = vmul.f32 %v119, %v275
  %v316 = vmul.f32 %v120, %v275
  %v317 = vmul.f32 %v121, %v275
  %v318 = vmul.f32 %v122, %v275
  %v319 = vmul.f32 %v123, %v275
  %v320 = vmul.f32 %v124, %v275
  %v321 = vmul.f32 %v125, %v275
  %v322 = vmul.f32 %v126, %v275
  %v323 = vmul.f32 %v127, %v275
  %v324 = vmul.f32 %v128, %v275
  %v325 = vmul.f32 %v129, %v275
  %v326 = vmul.f32 %v130, %v275
  %v327 = vmul.f32 %v131, %v275
  %v328 = vmul.f32 %v132, %v275
  %v329 = vmul.f32 %v133, %v275
  %v330 = vmul.f32 %v134, %v275
  %v331 = vmul.f32 %v135, %v275
  %v332 = vmul.f32 %v136, %v275
  %v333 = vmul.f32 %v137, %v275
  %v334 = vmul.f32 %v138, %v275
  %v335 = vmul.f32 %v139, %v275
  %v336 = vmul.f32 %v140, %v275
  %v337 = vmul.f32 %v141, %v275
  %v338 = vmul.f32 %v142, %v275
  %v339 = vmul.f32 %v143, %v275
  %v340 = vmul.f32 %v144, %v275
  %v341 = vld [vmem:[%s2] sm:$0x1]
  %v343 = vperm.slane %v341, 0
  %v345 = vadd.f32 %v277, %v343
  %v346 = vadd.f32 %v278, %v343
  %v347 = vadd.f32 %v279, %v343
  %v348 = vadd.f32 %v280, %v343
  %v349 = vadd.f32 %v281, %v343
  %v350 = vadd.f32 %v282, %v343
  %v351 = vadd.f32 %v283, %v343
  %v352 = vadd.f32 %v284, %v343
  %v353 = vadd.f32 %v285, %v343
  %v354 = vadd.f32 %v286, %v343
  %v355 = vadd.f32 %v287, %v343
  %v356 = vadd.f32 %v288, %v343
  %v357 = vadd.f32 %v289, %v343
  %v358 = vadd.f32 %v290, %v343
  %v359 = vadd.f32 %v291, %v343
  %v360 = vadd.f32 %v292, %v343
  %v361 = vadd.f32 %v293, %v343
  %v362 = vadd.f32 %v294, %v343
  %v363 = vadd.f32 %v295, %v343
  %v364 = vadd.f32 %v296, %v343
  %v365 = vadd.f32 %v297, %v343
  %v366 = vadd.f32 %v298, %v343
  %v367 = vadd.f32 %v299, %v343
  %v368 = vadd.f32 %v300, %v343
  %v369 = vadd.f32 %v301, %v343
  %v370 = vadd.f32 %v302, %v343
  %v371 = vadd.f32 %v303, %v343
  %v372 = vadd.f32 %v304, %v343
  %v373 = vadd.f32 %v305, %v343
  %v374 = vadd.f32 %v306, %v343
  %v375 = vadd.f32 %v307, %v343
  %v376 = vadd.f32 %v308, %v343
  %v377 = vadd.f32 %v309, %v343
  %v378 = vadd.f32 %v310, %v343
  %v379 = vadd.f32 %v311, %v343
  %v380 = vadd.f32 %v312, %v343
  %v381 = vadd.f32 %v313, %v343
  %v382 = vadd.f32 %v314, %v343
  %v383 = vadd.f32 %v315, %v343
  %v384 = vadd.f32 %v316, %v343
  %v385 = vadd.f32 %v317, %v343
  %v386 = vadd.f32 %v318, %v343
  %v387 = vadd.f32 %v319, %v343
  %v388 = vadd.f32 %v320, %v343
  %v389 = vadd.f32 %v321, %v343
  %v390 = vadd.f32 %v322, %v343
  %v391 = vadd.f32 %v323, %v343
  %v392 = vadd.f32 %v324, %v343
  %v393 = vadd.f32 %v325, %v343
  %v394 = vadd.f32 %v326, %v343
  %v395 = vadd.f32 %v327, %v343
  %v396 = vadd.f32 %v328, %v343
  %v397 = vadd.f32 %v329, %v343
  %v398 = vadd.f32 %v330, %v343
  %v399 = vadd.f32 %v331, %v343
  %v400 = vadd.f32 %v332, %v343
  %v401 = vadd.f32 %v333, %v343
  %v402 = vadd.f32 %v334, %v343
  %v403 = vadd.f32 %v335, %v343
  %v404 = vadd.f32 %v336, %v343
  %v405 = vadd.f32 %v337, %v343
  %v406 = vadd.f32 %v338, %v343
  %v407 = vadd.f32 %v339, %v343
  %v408 = vadd.f32 %v340, %v343
  %v409 = vadd.f32 %v345, %v209
  %v410 = vadd.f32 %v346, %v210
  %v411 = vadd.f32 %v347, %v211
  %v412 = vadd.f32 %v348, %v212
  %v413 = vadd.f32 %v349, %v213
  %v414 = vadd.f32 %v350, %v214
  %v415 = vadd.f32 %v351, %v215
  %v416 = vadd.f32 %v352, %v216
  %v417 = vadd.f32 %v353, %v217
  %v418 = vadd.f32 %v354, %v218
  %v419 = vadd.f32 %v355, %v219
  %v420 = vadd.f32 %v356, %v220
  %v421 = vadd.f32 %v357, %v221
  %v422 = vadd.f32 %v358, %v222
  %v423 = vadd.f32 %v359, %v223
  %v424 = vadd.f32 %v360, %v224
  %v425 = vadd.f32 %v361, %v225
  %v426 = vadd.f32 %v362, %v226
  %v427 = vadd.f32 %v363, %v227
  %v428 = vadd.f32 %v364, %v228
  %v429 = vadd.f32 %v365, %v229
  %v430 = vadd.f32 %v366, %v230
  %v431 = vadd.f32 %v367, %v231
  %v432 = vadd.f32 %v368, %v232
  %v433 = vadd.f32 %v369, %v233
  %v434 = vadd.f32 %v370, %v234
  %v435 = vadd.f32 %v371, %v235
  %v436 = vadd.f32 %v372, %v236
  %v437 = vadd.f32 %v373, %v237
  %v438 = vadd.f32 %v374, %v238
  %v439 = vadd.f32 %v375, %v239
  %v440 = vadd.f32 %v376, %v240
  %v441 = vadd.f32 %v377, %v241
  %v442 = vadd.f32 %v378, %v242
  %v443 = vadd.f32 %v379, %v243
  %v444 = vadd.f32 %v380, %v244
  %v445 = vadd.f32 %v381, %v245
  %v446 = vadd.f32 %v382, %v246
  %v447 = vadd.f32 %v383, %v247
  %v448 = vadd.f32 %v384, %v248
  %v449 = vadd.f32 %v385, %v249
  %v450 = vadd.f32 %v386, %v250
  %v451 = vadd.f32 %v387, %v251
  %v452 = vadd.f32 %v388, %v252
  %v453 = vadd.f32 %v389, %v253
  %v454 = vadd.f32 %v390, %v254
  %v455 = vadd.f32 %v391, %v255
  %v456 = vadd.f32 %v392, %v256
  %v457 = vadd.f32 %v393, %v257
  %v458 = vadd.f32 %v394, %v258
  %v459 = vadd.f32 %v395, %v259
  %v460 = vadd.f32 %v396, %v260
  %v461 = vadd.f32 %v397, %v261
  %v462 = vadd.f32 %v398, %v262
  %v463 = vadd.f32 %v399, %v263
  %v464 = vadd.f32 %v400, %v264
  %v465 = vadd.f32 %v401, %v265
  %v466 = vadd.f32 %v402, %v266
  %v467 = vadd.f32 %v403, %v267
  %v468 = vadd.f32 %v404, %v268
  %v469 = vadd.f32 %v405, %v269
  %v470 = vadd.f32 %v406, %v270
  %v471 = vadd.f32 %v407, %v271
  %v472 = vadd.f32 %v408, %v272
  %v473 = vmax.f32 %v409, 0.0
  %v474 = vmax.f32 %v410, 0.0
  %v475 = vmax.f32 %v411, 0.0
  %v476 = vmax.f32 %v412, 0.0
  %v477 = vmax.f32 %v413, 0.0
  %v478 = vmax.f32 %v414, 0.0
  %v479 = vmax.f32 %v415, 0.0
  %v480 = vmax.f32 %v416, 0.0
  %v481 = vmax.f32 %v417, 0.0
  %v482 = vmax.f32 %v418, 0.0
  %v483 = vmax.f32 %v419, 0.0
  %v484 = vmax.f32 %v420, 0.0
  %v485 = vmax.f32 %v421, 0.0
  %v486 = vmax.f32 %v422, 0.0
  %v487 = vmax.f32 %v423, 0.0
  %v488 = vmax.f32 %v424, 0.0
  %v489 = vmax.f32 %v425, 0.0
  %v490 = vmax.f32 %v426, 0.0
  %v491 = vmax.f32 %v427, 0.0
  %v492 = vmax.f32 %v428, 0.0
  %v493 = vmax.f32 %v429, 0.0
  %v494 = vmax.f32 %v430, 0.0
  %v495 = vmax.f32 %v431, 0.0
  %v496 = vmax.f32 %v432, 0.0
  %v497 = vmax.f32 %v433, 0.0
  %v498 = vmax.f32 %v434, 0.0
  %v499 = vmax.f32 %v435, 0.0
  %v500 = vmax.f32 %v436, 0.0
  %v501 = vmax.f32 %v437, 0.0
  %v502 = vmax.f32 %v438, 0.0
  %v503 = vmax.f32 %v439, 0.0
  %v504 = vmax.f32 %v440, 0.0
  %v505 = vmax.f32 %v441, 0.0
  %v506 = vmax.f32 %v442, 0.0
  %v507 = vmax.f32 %v443, 0.0
  %v508 = vmax.f32 %v444, 0.0
  %v509 = vmax.f32 %v445, 0.0
  %v510 = vmax.f32 %v446, 0.0
  %v511 = vmax.f32 %v447, 0.0
  %v512 = vmax.f32 %v448, 0.0
  %v513 = vmax.f32 %v449, 0.0
  %v514 = vmax.f32 %v450, 0.0
  %v515 = vmax.f32 %v451, 0.0
  %v516 = vmax.f32 %v452, 0.0
  %v517 = vmax.f32 %v453, 0.0
  %v518 = vmax.f32 %v454, 0.0
  %v519 = vmax.f32 %v455, 0.0
  %v520 = vmax.f32 %v456, 0.0
  %v521 = vmax.f32 %v457, 0.0
  %v522 = vmax.f32 %v458, 0.0
  %v523 = vmax.f32 %v459, 0.0
  %v524 = vmax.f32 %v460, 0.0
  %v525 = vmax.f32 %v461, 0.0
  %v526 = vmax.f32 %v462, 0.0
  %v527 = vmax.f32 %v463, 0.0
  %v528 = vmax.f32 %v464, 0.0
  %v529 = vmax.f32 %v465, 0.0
  %v530 = vmax.f32 %v466, 0.0
  %v531 = vmax.f32 %v467, 0.0
  %v532 = vmax.f32 %v468, 0.0
  %v533 = vmax.f32 %v469, 0.0
  %v534 = vmax.f32 %v470, 0.0
  %v535 = vmax.f32 %v471, 0.0
  %v536 = vmax.f32 %v472, 0.0
  %537 = vst [vmem:[%s4] sm:$0xff] %v473
  %538 = vst [vmem:[%s4 + $0x8] sm:$0xff] %v474
  %539 = vst [vmem:[%s4 + $0x10] sm:$0xff] %v475
  %540 = vst [vmem:[%s4 + $0x18] sm:$0xff] %v476
  %541 = vst [vmem:[%s4 + $0x20] sm:$0xff] %v477
  %542 = vst [vmem:[%s4 + $0x28] sm:$0xff] %v478
  %543 = vst [vmem:[%s4 + $0x30] sm:$0xff] %v479
  %544 = vst [vmem:[%s4 + $0x38] sm:$0xff] %v480
  %545 = vst [vmem:[%s4 + $0x40] sm:$0xff] %v481
  %546 = vst [vmem:[%s4 + $0x48] sm:$0xff] %v482
  %547 = vst [vmem:[%s4 + $0x50] sm:$0xff] %v483
  %548 = vst [vmem:[%s4 + $0x58] sm:$0xff] %v484
  %549 = vst [vmem:[%s4 + $0x60] sm:$0xff] %v485
  %550 = vst [vmem:[%s4 + $0x68] sm:$0xff] %v486
  %551 = vst [vmem:[%s4 + $0x70] sm:$0xff] %v487
  %552 = vst [vmem:[%s4 + $0x78] sm:$0xff] %v488
  %553 = vst [vmem:[%s4 + $0x80] sm:$0xff] %v489
  %554 = vst [vmem:[%s4 + $0x88] sm:$0xff] %v490
  %555 = vst [vmem:[%s4 + $0x90] sm:$0xff] %v491
  %556 = vst [vmem:[%s4 + $0x98] sm:$0xff] %v492
  %557 = vst [vmem:[%s4 + $0xa0] sm:$0xff] %v493
  %558 = vst [vmem:[%s4 + $0xa8] sm:$0xff] %v494
  %559 = vst [vmem:[%s4 + $0xb0] sm:$0xff] %v495
  %560 = vst [vmem:[%s4 + $0xb8] sm:$0xff] %v496
  %561 = vst [vmem:[%s4 + $0xc0] sm:$0xff] %v497
  %562 = vst [vmem:[%s4 + $0xc8] sm:$0xff] %v498
  %563 = vst [vmem:[%s4 + $0xd0] sm:$0xff] %v499
  %564 = vst [vmem:[%s4 + $0xd8] sm:$0xff] %v500
  %565 = vst [vmem:[%s4 + $0xe0] sm:$0xff] %v501
  %566 = vst [vmem:[%s4 + $0xe8] sm:$0xff] %v502
  %567 = vst [vmem:[%s4 + $0xf0] sm:$0xff] %v503
  %568 = vst [vmem:[%s4 + $0xf8] sm:$0xff] %v504
  %569 = vst [vmem:[%s4 + $0x100] sm:$0xff] %v505
  %570 = vst [vmem:[%s4 + $0x108] sm:$0xff] %v506
  %571 = vst [vmem:[%s4 + $0x110] sm:$0xff] %v507
  %572 = vst [vmem:[%s4 + $0x118] sm:$0xff] %v508
  %573 = vst [vmem:[%s4 + $0x120] sm:$0xff] %v509
  %574 = vst [vmem:[%s4 + $0x128] sm:$0xff] %v510
  %575 = vst [vmem:[%s4 + $0x130] sm:$0xff] %v511
  %576 = vst [vmem:[%s4 + $0x138] sm:$0xff] %v512
  %577 = vst [vmem:[%s4 + $0x140] sm:$0xff] %v513
  %578 = vst [vmem:[%s4 + $0x148] sm:$0xff] %v514
  %579 = vst [vmem:[%s4 + $0x150] sm:$0xff] %v515
  %580 = vst [vmem:[%s4 + $0x158] sm:$0xff] %v516
  %581 = vst [vmem:[%s4 + $0x160] sm:$0xff] %v517
  %582 = vst [vmem:[%s4 + $0x168] sm:$0xff] %v518
  %583 = vst [vmem:[%s4 + $0x170] sm:$0xff] %v519
  %584 = vst [vmem:[%s4 + $0x178] sm:$0xff] %v520
  %585 = vst [vmem:[%s4 + $0x180] sm:$0xff] %v521
  %586 = vst [vmem:[%s4 + $0x188] sm:$0xff] %v522
  %587 = vst [vmem:[%s4 + $0x190] sm:$0xff] %v523
  %588 = vst [vmem:[%s4 + $0x198] sm:$0xff] %v524
  %589 = vst [vmem:[%s4 + $0x1a0] sm:$0xff] %v525
  %590 = vst [vmem:[%s4 + $0x1a8] sm:$0xff] %v526
  %591 = vst [vmem:[%s4 + $0x1b0] sm:$0xff] %v527
  %592 = vst [vmem:[%s4 + $0x1b8] sm:$0xff] %v528
  %593 = vst [vmem:[%s4 + $0x1c0] sm:$0xff] %v529
  %594 = vst [vmem:[%s4 + $0x1c8] sm:$0xff] %v530
  %595 = vst [vmem:[%s4 + $0x1d0] sm:$0xff] %v531
  %596 = vst [vmem:[%s4 + $0x1d8] sm:$0xff] %v532
  %597 = vst [vmem:[%s4 + $0x1e0] sm:$0xff] %v533
  %598 = vst [vmem:[%s4 + $0x1e8] sm:$0xff] %v534
  %599 = vst [vmem:[%s4 + $0x1f0] sm:$0xff] %v535
  %600 = vst [vmem:[%s4 + $0x1f8] sm:$0xff] %v536
  // Predicated region
  $region18: #{residual_forward.7} parent=0 // pred_check
    _
  $region19: #{residual_forward.7} parent=0 // pred_check_branch
    %602 = sbr.rel (0) target = $region21
  $region20: #{residual_forward.7} parent=0 // pred_region
    _
  $region21: #{residual_forward.7} parent=0 // pred_fallthru
    _
  // Predicated region
  $region22: #{residual_forward.7} parent=0 // pred_check
    _
  $region23: #{residual_forward.7} parent=0 // pred_check_branch
    %604 = sbr.rel (0) target = $region25
  $region24: #{residual_forward.7} parent=0 // pred_region
    _
  $region25: #{residual_forward.7} parent=0 // pred_fallthru
    _

// kernel: residual_forward.4
$region0: #{residual_forward.4}
  #allocation0 [shape = 'u32[]', space=smem, size = 0x4, offset = 0x4, fixed_abs, tag = 'smem constant byte address 0x4 - core index']
  #allocation1 [shape = 'u32[72,128]{1,0:T(1,128)}', space=vmem, size = 0x9000, scoped, tag = 'internal scratch']
  %s0 = inlined_call_operand.vmem [shape: bf16[2,18,18,128], index: 0, kind: input, shape index: {}]
  %s1 = inlined_call_operand.vmem [shape: bf16[1152,128], index: 1, kind: input, shape index: {}]
  %s2 = inlined_call_operand.vmem [shape: bf16[512,128], index: 2, kind: output, shape index: {0}]
  %s3 = inlined_call_operand.vmem [shape: f32[4,1,128], index: 3, kind: output, shape index: {1}]
  %s4 = inlined_call_operand.vmem [shape: f32[4,1,128], index: 4, kind: output, shape index: {2}]
  %5 = xla_tuple %s2, %s3, %s4
  %s6 = sld [smem:[#allocation0]]
  $region57: #{residual_forward.4} parent=0
    _
  %s8 = ssub.s32 1, %s6
  %s9 = scalar_select 0, %s8, %s6
  loop: start=0, step=1, limit=6
  $region2: #{residual_forward.4} parent=0 // loop_pre_header
    _
  $region3: #{residual_forward.4} parent=0 // loop_header
    %s11 = sphi 0, %s15
    %p12 = scmp.ge.s32.totalorder %s11, 6
    %s18 = sphi 0, %s37
    %s19 = sphi 0, %s33
    %s20 = sphi 0, %s29
    %s21 = sphi 0, %s18
    %s22 = sphi 0, %s19
    %s23 = sphi 0, %s20
    %s24 = sphi 0, %s21
    %s25 = sphi 0, %s22
    %s26 = sphi 0, %s23
    %s40 = sphi 0, %s42
    %s43 = sphi 0, %s40
    %s44 = sphi 0, %s43
    %s60 = sphi 0, %s44
    %s66 = sphi 0, %s68
    %s69 = sphi 0, %s66
    %s70 = sphi 0, %s69
    %s86 = sphi 0, %s70
    %s98 = sphi 0, %s100
    %s101 = sphi 0, %s98
    %s102 = sphi 0, %s101
    %s118 = sphi 0, %s102
    %s130 = sphi 0, %s132
    %s133 = sphi 0, %s130
    %s134 = sphi 0, %s133
    %s150 = sphi 0, %s134
    %s162 = sphi 0, %s164
    %s165 = sphi 0, %s162
    %s166 = sphi 0, %s165
    %s182 = sphi 0, %s166
  $region4: #{residual_forward.4} parent=0 // loop_header_branch
    %14 = sbr.rel (%p12) target = $region8
  $region5: #{residual_forward.4} parent=0 // loop_body
    %s16 = ssub.s32 %s11, 1
    %s17 = ssub.s32 %s11, 2
    %s27 = sadd.s32 1, %s20
    %p28 = scmp.ge.s32.totalorder %s27, 2
    %s29 = scalar_select %p28, 0, %s27
    %s30 = sadd.s32 1, %s19
    %s31 = scalar_select %p28, %s30, %s19
    %p32 = scmp.ge.s32.totalorder %s31, 1
    %s33 = scalar_select %p32, 0, %s31
    %s34 = sadd.s32 1, %s18
    %s35 = scalar_select %p32, %s34, %s18
    %p36 = scmp.ge.s32.totalorder %s35, 2
    %s37 = scalar_select %p36, 0, %s35
    %s38 = ssub.s32 %s18, %s37
    %p39 = scmp.eq.s32.totalorder %s38, 0
    %s41 = sadd.s32 %s40, 1
    %s42 = scalar_select %p39, %s40, %s41
    %p45 = pneg %p39
    %p46 = scmp.eq.s32.totalorder %s11, 3
    %p47 = por %p45, %p46
    %p48 = scmp.ne.s32.totalorder %s40, %s43
    %p49 = scmp.eq.s32.totalorder %s11, 0
    %p50 = por %p48, %p49
    %p51 = scmp.ne.s32.totalorder %s40, %s43
    %p52 = scmp.eq.s32.totalorder %s16, 3
    %p53 = por %p51, %p52
    %p54 = scmp.ne.s32.totalorder %s43, %s44
    %p55 = scmp.eq.s32.totalorder %s16, 0
    %p56 = por %p54, %p55
    %p57 = scmp.ne.s32.totalorder %s43, %s44
    %p58 = scmp.eq.s32.totalorder %s17, 3
    %p59 = por %p57, %p58
    %p61 = scmp.ne.s32.totalorder %s44, %s60
    %p62 = scmp.eq.s32.totalorder %s17, 0
    %p63 = por %p61, %p62
    %s64 = ssub.s32 %s19, %s33
    %p65 = scmp.eq.s32.totalorder %s64, 0
    %s67 = sadd.s32 %s66, 1
    %s68 = scalar_select %p65, %s66, %s67
    %p71 = pneg %p65
    %p72 = scmp.eq.s32.totalorder %s11, 3
    %p73 = por %p71, %p72
    %p74 = scmp.ne.s32.totalorder %s66, %s69
    %p75 = scmp.eq.s32.totalorder %s11, 0
    %p76 = por %p74, %p75
    %p77 = scmp.ne.s32.totalorder %s66, %s69
    %p78 = scmp.eq.s32.totalorder %s16, 3
    %p79 = por %p77, %p78
    %p80 = scmp.ne.s32.totalorder %s69, %s70
    %p81 = scmp.eq.s32.totalorder %s16, 0
    %p82 = por %p80, %p81
    %p83 = scmp.ne.s32.totalorder %s69, %s70
    %p84 = scmp.eq.s32.totalorder %s17, 3
    %p85 = por %p83, %p84
    %p87 = scmp.ne.s32.totalorder %s70, %s86
    %p88 = scmp.eq.s32.totalorder %s17, 0
    %p89 = por %p87, %p88
    %s90 = smul.u32 %s18, 2
    %s91 = sadd.s32 %s90, %s20
    %s92 = smul.u32 %s37, 2
    %s93 = sadd.s32 %s92, %s29
    %s94 = ssub.s32 %s91, %s93
    %s95 = ssub.s32 %s19, %s33
    %s96 = sor.u32 %s94, %s95
    %p97 = scmp.eq.s32.totalorder %s96, 0
    %s99 = sadd.s32 %s98, 1
    %s100 = scalar_select %p97, %s98, %s99
    %p103 = pneg %p97
    %p104 = scmp.eq.s32.totalorder %s11, 3
    %p105 = por %p103, %p104
    %p106 = scmp.ne.s32.totalorder %s98, %s101
    %p107 = scmp.eq.s32.totalorder %s11, 0
    %p108 = por %p106, %p107
    %p109 = scmp.ne.s32.totalorder %s98, %s101
    %p110 = scmp.eq.s32.totalorder %s16, 3
    %p111 = por %p109, %p110
    %p112 = scmp.ne.s32.totalorder %s101, %s102
    %p113 = scmp.eq.s32.totalorder %s16, 0
    %p114 = por %p112, %p113
    %p115 = scmp.ne.s32.totalorder %s101, %s102
    %p116 = scmp.eq.s32.totalorder %s17, 3
    %p117 = por %p115, %p116
    %p119 = scmp.ne.s32.totalorder %s102, %s118
    %p120 = scmp.eq.s32.totalorder %s17, 0
    %p121 = por %p119, %p120
    %s122 = smul.u32 %s18, 2
    %s123 = sadd.s32 %s122, %s20
    %s124 = smul.u32 %s37, 2
    %s125 = sadd.s32 %s124, %s29
    %s126 = ssub.s32 %s123, %s125
    %s127 = ssub.s32 %s19, %s33
    %s128 = sor.u32 %s126, %s127
    %p129 = scmp.eq.s32.totalorder %s128, 0
    %s131 = sadd.s32 %s130, 1
    %s132 = scalar_select %p129, %s130, %s131
    %p135 = pneg %p129
    %p136 = scmp.eq.s32.totalorder %s11, 3
    %p137 = por %p135, %p136
    %p138 = scmp.ne.s32.totalorder %s130, %s133
    %p139 = scmp.eq.s32.totalorder %s11, 0
    %p140 = por %p138, %p139
    %p141 = scmp.ne.s32.totalorder %s130, %s133
    %p142 = scmp.eq.s32.totalorder %s16, 3
    %p143 = por %p141, %p142
    %p144 = scmp.ne.s32.totalorder %s133, %s134
    %p145 = scmp.eq.s32.totalorder %s16, 0
    %p146 = por %p144, %p145
    %p147 = scmp.ne.s32.totalorder %s133, %s134
    %p148 = scmp.eq.s32.totalorder %s17, 3
    %p149 = por %p147, %p148
    %p151 = scmp.ne.s32.totalorder %s134, %s150
    %p152 = scmp.eq.s32.totalorder %s17, 0
    %p153 = por %p151, %p152
    %s154 = smul.u32 %s18, 2
    %s155 = sadd.s32 %s154, %s20
    %s156 = smul.u32 %s37, 2
    %s157 = sadd.s32 %s156, %s29
    %s158 = ssub.s32 %s155, %s157
    %s159 = ssub.s32 %s19, %s33
    %s160 = sor.u32 %s158, %s159
    %p161 = scmp.eq.s32.totalorder %s160, 0
    %s163 = sadd.s32 %s162, 1
    %s164 = scalar_select %p161, %s162, %s163
    %p167 = pneg %p161
    %p168 = scmp.eq.s32.totalorder %s11, 3
    %p169 = por %p167, %p168
    %p170 = scmp.ne.s32.totalorder %s162, %s165
    %p171 = scmp.eq.s32.totalorder %s11, 0
    %p172 = por %p170, %p171
    %p173 = scmp.ne.s32.totalorder %s162, %s165
    %p174 = scmp.eq.s32.totalorder %s16, 3
    %p175 = por %p173, %p174
    %p176 = scmp.ne.s32.totalorder %s165, %s166
    %p177 = scmp.eq.s32.totalorder %s16, 0
    %p178 = por %p176, %p177
    %p179 = scmp.ne.s32.totalorder %s165, %s166
    %p180 = scmp.eq.s32.totalorder %s17, 3
    %p181 = por %p179, %p180
    %p183 = scmp.ne.s32.totalorder %s166, %s182
    %p184 = scmp.eq.s32.totalorder %s17, 0
    %p185 = por %p183, %p184
    %p186 = scmp.le.s32.totalorder 1, %s11
    %p187 = scmp.lt.s32.totalorder %s11, 5
    %p188 = pnand %p186, %p187
    %p189 = pneg %p188
    // Predicated region
    $region9: #{residual_forward.4} parent=5 // pred_check
      _
    $region10: #{residual_forward.4} parent=5 // pred_check_branch
      %191 = sbr.rel (%p188) target = $region12
    $region11: #{residual_forward.4} parent=5 // pred_region
      %s192 = ssub.s32 %s11, 1
      // Predicated region
      $region13: #{residual_forward.4} parent=11 // pred_check
        %p193 = pneg %p82
      $region14: #{residual_forward.4} parent=11 // pred_check_branch
        %195 = sbr.rel (%p193) target = $region16
      $region15: #{residual_forward.4} parent=11 // pred_region
        %p196 = scmp.lt.s32.totalorder %s22, 0
        %s197 = scalar_select %p196, %s22, 0
        %s198 = smul.addr %s197, 4
        %s199 = scalar_lea.vmem %s1, %s198
      $region16: #{residual_forward.4} parent=11 // pred_fallthru
        _
    $region12: #{residual_forward.4} parent=5 // pred_fallthru
      _
    %p200 = scmp.lt.s32.totalorder %s11, 4
    // Predicated region
    $region17: #{residual_forward.4} parent=5 // pred_check
      %p201 = pneg %p200
    $region18: #{residual_forward.4} parent=5 // pred_check_branch
      %203 = sbr.rel (%p201) target = $region20
    $region19: #{residual_forward.4} parent=5 // pred_region
      // Predicated region
      $region21: #{residual_forward.4} parent=19 // pred_check
        %p204 = pneg %p50
      $region22: #{residual_forward.4} parent=19 // pred_check_branch
        %206 = sbr.rel (%p204) target = $region24
      $region23: #{residual_forward.4} parent=19 // pred_region
        %p207 = scmp.lt.s32.totalorder %s18, 1
        %s208 = scalar_select %p207, %s18, 1
        %s209 = smul.addr %s208, 54
        %s210 = smul.addr %s209, 4
        %s211 = scalar_lea.vmem %s0, %s210
      $region24: #{residual_forward.4} parent=19 // pred_fallthru
        _
    $region20: #{residual_forward.4} parent=5 // pred_fallthru
      _
    %p212 = scmp.le.s32.totalorder 1, %s11
    %p213 = scmp.lt.s32.totalorder %s11, 5
    %p214 = pnand %p212, %p213
    %p215 = pneg %p214
    // Predicated region
    $region25: #{residual_forward.4} parent=5 // pred_check
      _
    $region26: #{residual_forward.4} parent=5 // pred_check_branch
      %217 = sbr.rel (%p214) target = $region28
    $region27: #{residual_forward.4} parent=5 // pred_region
      %s218 = ssub.s32 %s11, 1
      %p219 = scmp.lt.s32.totalorder %s21, 1
      %s220 = scalar_select %p219, %s21, 1
      %s221 = smul.addr %s220, 54
      %s222 = smul.addr %s221, 4
      %s223 = scalar_lea.vmem %s0, %s222
      %p224 = pneg %p56
      %p225 = pneg %p53
      %p226 = scmp.lt.s32.totalorder %s22, 0
      %s227 = scalar_select %p226, %s22, 0
      %s228 = smul.addr %s227, 4
      %s229 = scalar_lea.vmem %s1, %s228
      %p230 = pneg %p82
      %p231 = pneg %p79
      %p232 = pneg %p114
      %p233 = pneg %p111
      %s234 = smul.u32 %s21, 2
      %s235 = sadd.s32 %s234, %s23
      %s236 = smul.u32 16, %s235
      %p237 = scmp.lt.s32.totalorder %s236, 63
      %s238 = scalar_select %p237, %s236, 63
      %p239 = scmp.lt.s32.totalorder %s22, 0
      %s240 = scalar_select %p239, %s22, 0
      %s241 = sadd.s32 %s240, %s238
      %s242 = smul.addr %s241, 4
      %s243 = scalar_lea.vmem %s2, %s242
      %p244 = pneg %p146
      %p245 = pneg %p143
      %s246 = smul.u32 %s21, 2
      %s247 = sadd.s32 %s246, %s23
      %p248 = scmp.lt.s32.totalorder %s247, 3
      %s249 = scalar_select %p248, %s247, 3
      %p250 = scmp.lt.s32.totalorder %s22, 0
      %s251 = scalar_select %p250, %s22, 0
      %s252 = sadd.s32 %s251, %s249
      %s253 = scalar_lea.vmem %s3, %s252
      %p254 = pneg %p178
      %p255 = pneg %p175
      %s256 = smul.u32 %s21, 2
      %s257 = sadd.s32 %s256, %s23
      %p258 = scmp.lt.s32.totalorder %s257, 3
      %s259 = scalar_select %p258, %s257, 3
      %p260 = scmp.lt.s32.totalorder %s22, 0
      %s261 = scalar_select %p260, %s22, 0
      %s262 = sadd.s32 %s261, %s259
      %s263 = scalar_lea.vmem %s4, %s262
      %p264 = scmp.lt.s32.totalorder %s21, 1
      %s265 = scalar_select %p264, %s21, 1
      %s266 = smul.addr %s265, 54
      %s267 = smul.addr %s266, 4
      %s268 = scalar_lea.vmem %s0, %s267
      %p269 = scmp.lt.s32.totalorder %s22, 0
      %s270 = scalar_select %p269, %s22, 0
      %s271 = smul.addr %s270, 4
      %s272 = scalar_lea.vmem %s1, %s271
      %s273 = smul.u32 %s21, 2
      %s274 = sadd.s32 %s273, %s23
      %s275 = smul.u32 16, %s274
      %p276 = scmp.lt.s32.totalorder %s275, 63
      %s277 = scalar_select %p276, %s275, 63
      %p278 = scmp.lt.s32.totalorder %s22, 0
      %s279 = scalar_select %p278, %s22, 0
      %s280 = sadd.s32 %s279, %s277
      %s281 = smul.addr %s280, 4
      %s282 = scalar_lea.vmem %s2, %s281
      %s283 = smul.u32 %s21, 2
      %s284 = sadd.s32 %s283, %s23
      %s285 = smul.u32 16, %s284
      %s286 = smul.u32 %s21, 2
      %s287 = sadd.s32 %s286, %s23
      %p288 = scmp.lt.s32.totalorder %s287, 3
      %s289 = scalar_select %p288, %s287, 3
      %p290 = scmp.lt.s32.totalorder %s22, 0
      %s291 = scalar_select %p290, %s22, 0
      %s292 = sadd.s32 %s291, %s289
      %s293 = scalar_lea.vmem %s3, %s292
      %s294 = smul.u32 %s21, 2
      %s295 = sadd.s32 %s294, %s23
      %s296 = smul.u32 %s21, 2
      %s297 = sadd.s32 %s296, %s23
      %p298 = scmp.lt.s32.totalorder %s297, 3
      %s299 = scalar_select %p298, %s297, 3
      %p300 = scmp.lt.s32.totalorder %s22, 0
      %s301 = scalar_select %p300, %s22, 0
      %s302 = sadd.s32 %s301, %s299
      %s303 = scalar_lea.vmem %s4, %s302
      %s304 = smul.u32 %s21, 2
      %s305 = sadd.s32 %s304, %s23
      %s306 = smul.u32 %s23, 8
      %s307 = smul.u32 %s306, 3
      %s308 = smul.addr %s307, 4
      %s309 = scalar_lea.vmem %s268, %s308
      %v310 = vld [vmem:[%s309] sm:$0xf]
      %v311 = vld [vmem:[%s309 + $0x4] sm:$0xf]
      %v312 = vld [vmem:[%s309 + $0xc] sm:$0xf]
      %v313 = vld [vmem:[%s309 + $0x10] sm:$0xf]
      %v314 = vld [vmem:[%s309 + $0x18] sm:$0xf]
      %v315 = vld [vmem:[%s309 + $0x1c] sm:$0xf]
      %v316 = vld [vmem:[%s309 + $0x24] sm:$0xf]
      %v317 = vld [vmem:[%s309 + $0x28] sm:$0xf]
      %v318 = vld [vmem:[%s309 + $0x30] sm:$0xf]
      %v319 = vld [vmem:[%s309 + $0x34] sm:$0xf]
      %v320 = vld [vmem:[%s309 + $0x3c] sm:$0xf]
      %v321 = vld [vmem:[%s309 + $0x40] sm:$0xf]
      %v322 = vld [vmem:[%s309 + $0x48] sm:$0xf]
      %v323 = vld [vmem:[%s309 + $0x4c] sm:$0xf]
      %v324 = vld [vmem:[%s309 + $0x54] sm:$0xf]
      %v325 = vld [vmem:[%s309 + $0x58] sm:$0xf]
      %v326 = vld [vmem:[%s309 + $0x8] sm:$0x1]
      %v327 = vld [vmem:[%s309 + $0x14] sm:$0x1]
      %v328 = vld [vmem:[%s309 + $0x20] sm:$0x1]
      %v329 = vld [vmem:[%s309 + $0x2c] sm:$0x1]
      %v330 = vld [vmem:[%s309 + $0x38] sm:$0x1]
      %v331 = vld [vmem:[%s309 + $0x44] sm:$0x1]
      %v332 = vld [vmem:[%s309 + $0x50] sm:$0x1]
      %v333 = vld [vmem:[%s309 + $0x5c] sm:$0x1]
      %vm334 = vsmask.f32 3328
      %vm335 = vsmask.f32 7440
      %vm336 = vmor %vm334, %vm335
      %v338 = vshrl.u32 %v310, 16
      %v340 = vrot.slane %v338, 4
      %v341 = vshll.u32 %v310, 16
      %v343 = vrot.slane %v341, 5
      %v344 = vor.u32 %v340, %v343
      %v345 = vrot.slane %v344, 4
      %v347 = vshll.u32 %v311, 16
      %v349 = vrot.slane %v347, 5
      %v350 = vsel %vm336, %v345, %v349
      %v351 = vshrl.u32 %v311, 16
      %v353 = vrot.slane %v351, 4
      %v354 = vor.u32 %v353, %v349
      %v355 = vrot.slane %v354, 4
      %v357 = vshll.u32 %v326, 16
      %v359 = vrot.slane %v357, 5
      %v360 = vsel %vm336, %v355, %v359
      %v362 = vshrl.u32 %v312, 16
      %v364 = vrot.slane %v362, 4
      %v365 = vshll.u32 %v312, 16
      %v367 = vrot.slane %v365, 5
      %v368 = vor.u32 %v364, %v367
      %v369 = vrot.slane %v368, 4
      %v371 = vshll.u32 %v313, 16
      %v373 = vrot.slane %v371, 5
      %v374 = vsel %vm336, %v369, %v373
      %v375 = vshrl.u32 %v313, 16
      %v377 = vrot.slane %v375, 4
      %v378 = vor.u32 %v377, %v373
      %v379 = vrot.slane %v378, 4
      %v381 = vshll.u32 %v327, 16
      %v383 = vrot.slane %v381, 5
      %v384 = vsel %vm336, %v379, %v383
      %v386 = vshrl.u32 %v314, 16
      %v388 = vrot.slane %v386, 4
      %v389 = vshll.u32 %v314, 16
      %v391 = vrot.slane %v389, 5
      %v392 = vor.u32 %v388, %v391
      %v393 = vrot.slane %v392, 4
      %v395 = vshll.u32 %v315, 16
      %v397 = vrot.slane %v395, 5
      %v398 = vsel %vm336, %v393, %v397
      %v399 = vshrl.u32 %v315, 16
      %v401 = vrot.slane %v399, 4
      %v402 = vor.u32 %v401, %v397
      %v403 = vrot.slane %v402, 4
      %v405 = vshll.u32 %v328, 16
      %v407 = vrot.slane %v405, 5
      %v408 = vsel %vm336, %v403, %v407
      %v410 = vshrl.u32 %v316, 16
      %v412 = vrot.slane %v410, 4
      %v413 = vshll.u32 %v316, 16
      %v415 = vrot.slane %v413, 5
      %v416 = vor.u32 %v412, %v415
      %v417 = vrot.slane %v416, 4
      %v419 = vshll.u32 %v317, 16
      %v421 = vrot.slane %v419, 5
      %v422 = vsel %vm336, %v417, %v421
      %v423 = vshrl.u32 %v317, 16
      %v425 = vrot.slane %v423, 4
      %v426 = vor.u32 %v425, %v421
      %v427 = vrot.slane %v426, 4
      %v429 = vshll.u32 %v329, 16
      %v431 = vrot.slane %v429, 5
      %v432 = vsel %vm336, %v427, %v431
      %v434 = vshrl.u32 %v318, 16
      %v436 = vrot.slane %v434, 4
      %v437 = vshll.u32 %v318, 16
      %v439 = vrot.slane %v437, 5
      %v440 = vor.u32 %v436, %v439
      %v441 = vrot.slane %v440, 4
      %v443 = vshll.u32 %v319, 16
      %v445 = vrot.slane %v443, 5
      %v446 = vsel %vm336, %v441, %v445
      %v447 = vshrl.u32 %v319, 16
      %v449 = vrot.slane %v447, 4
      %v450 = vor.u32 %v449, %v445
      %v451 = vrot.slane %v450, 4
      %v453 = vshll.u32 %v330, 16
      %v455 = vrot.slane %v453, 5
      %v456 = vsel %vm336, %v451, %v455
      %v458 = vshrl.u32 %v320, 16
      %v460 = vrot.slane %v458, 4
      %v461 = vshll.u32 %v320, 16
      %v463 = vrot.slane %v461, 5
      %v464 = vor.u32 %v460, %v463
      %v465 = vrot.slane %v464, 4
      %v467 = vshll.u32 %v321, 16
      %v469 = vrot.slane %v467, 5
      %v470 = vsel %vm336, %v465, %v469
      %v471 = vshrl.u32 %v321, 16
      %v473 = vrot.slane %v471, 4
      %v474 = vor.u32 %v473, %v469
      %v475 = vrot.slane %v474, 4
      %v477 = vshll.u32 %v331, 16
      %v479 = vrot.slane %v477, 5
      %v480 = vsel %vm336, %v475, %v479
      %v482 = vshrl.u32 %v322, 16
      %v484 = vrot.slane %v482, 4
      %v485 = vshll.u32 %v322, 16
      %v487 = vrot.slane %v485, 5
      %v488 = vor.u32 %v484, %v487
      %v489 = vrot.slane %v488, 4
      %v491 = vshll.u32 %v323, 16
      %v493 = vrot.slane %v491, 5
      %v494 = vsel %vm336, %v489, %v493
      %v495 = vshrl.u32 %v323, 16
      %v497 = vrot.slane %v495, 4
      %v498 = vor.u32 %v497, %v493
      %v499 = vrot.slane %v498, 4
      %v501 = vshll.u32 %v332, 16
      %v503 = vrot.slane %v501, 5
      %v504 = vsel %vm336, %v499, %v503
      %v506 = vshrl.u32 %v324, 16
      %v508 = vrot.slane %v506, 4
      %v509 = vshll.u32 %v324, 16
      %v511 = vrot.slane %v509, 5
      %v512 = vor.u32 %v508, %v511
      %v513 = vrot.slane %v512, 4
      %v515 = vshll.u32 %v325, 16
      %v517 = vrot.slane %v515, 5
      %v518 = vsel %vm336, %v513, %v517
      %v519 = vshrl.u32 %v325, 16
      %v521 = vrot.slane %v519, 4
      %v522 = vor.u32 %v521, %v517
      %v523 = vrot.slane %v522, 4
      %v525 = vshll.u32 %v333, 16
      %v527 = vrot.slane %v525, 5
      %v528 = vsel %vm336, %v523, %v527
      %v529 = vld [vmem:[%s309] sm:$0xe]
      %v530 = vld [vmem:[%s309 + $0xc] sm:$0xe]
      %v531 = vld [vmem:[%s309 + $0x18] sm:$0xe]
      %v532 = vld [vmem:[%s309 + $0x24] sm:$0xe]
      %v533 = vld [vmem:[%s309 + $0x30] sm:$0xe]
      %v534 = vld [vmem:[%s309 + $0x3c] sm:$0xe]
      %v535 = vld [vmem:[%s309 + $0x48] sm:$0xe]
      %v536 = vld [vmem:[%s309 + $0x54] sm:$0xe]
      %vm561 = vcmask 1042432
      %vm562 = vcmask 1046532
      %vm563 = vmor %vm561, %vm562
      %v564 = vrot.slane %v529, 5
      %v565 = vrot.slane %v564, 4
      %v566 = vrot.slane %v311, 5
      %v567 = vsel %vm563, %v565, %v566
      %v568 = vrot.slane %v566, 4
      %v569 = vrot.slane %v326, 5
      %v570 = vsel %vm563, %v568, %v569
      %v571 = vrot.slane %v530, 5
      %v572 = vrot.slane %v571, 4
      %v573 = vrot.slane %v313, 5
      %v574 = vsel %vm563, %v572, %v573
      %v575 = vrot.slane %v573, 4
      %v576 = vrot.slane %v327, 5
      %v577 = vsel %vm563, %v575, %v576
      %v578 = vrot.slane %v531, 5
      %v579 = vrot.slane %v578, 4
      %v580 = vrot.slane %v315, 5
      %v581 = vsel %vm563, %v579, %v580
      %v582 = vrot.slane %v580, 4
      %v583 = vrot.slane %v328, 5
      %v584 = vsel %vm563, %v582, %v583
      %v585 = vrot.slane %v532, 5
      %v586 = vrot.slane %v585, 4
      %v587 = vrot.slane %v317, 5
      %v588 = vsel %vm563, %v586, %v587
      %v589 = vrot.slane %v587, 4
      %v590 = vrot.slane %v329, 5
      %v591 = vsel %vm563, %v589, %v590
      %v592 = vrot.slane %v533, 5
      %v593 = vrot.slane %v592, 4
      %v594 = vrot.slane %v319, 5
      %v595 = vsel %vm563, %v593, %v594
      %v596 = vrot.slane %v594, 4
      %v597 = vrot.slane %v330, 5
      %v598 = vsel %vm563, %v596, %v597
      %v599 = vrot.slane %v534, 5
      %v600 = vrot.slane %v599, 4
      %v601 = vrot.slane %v321, 5
      %v602 = vsel %vm563, %v600, %v601
      %v603 = vrot.slane %v601, 4
      %v604 = vrot.slane %v331, 5
      %v605 = vsel %vm563, %v603, %v604
      %v606 = vrot.slane %v535, 5
      %v607 = vrot.slane %v606, 4
      %v608 = vrot.slane %v323, 5
      %v609 = vsel %vm563, %v607, %v608
      %v610 = vrot.slane %v608, 4
      %v611 = vrot.slane %v332, 5
      %v612 = vsel %vm563, %v610, %v611
      %v613 = vrot.slane %v536, 5
      %v614 = vrot.slane %v613, 4
      %v615 = vrot.slane %v325, 5
      %v616 = vsel %vm563, %v614, %v615
      %v617 = vrot.slane %v615, 4
      %v618 = vrot.slane %v333, 5
      %v619 = vsel %vm563, %v617, %v618
      %s620 = sadd.s32 %s306, 1
      %s621 = smul.u32 %s620, 3
      %s622 = smul.addr %s621, 4
      %s623 = scalar_lea.vmem %s268, %s622
      %v624 = vld [vmem:[%s623] sm:$0xf]
      %v625 = vld [vmem:[%s623 + $0x4] sm:$0xf]
      %v626 = vld [vmem:[%s623 + $0xc] sm:$0xf]
      %v627 = vld [vmem:[%s623 + $0x10] sm:$0xf]
      %v628 = vld [vmem:[%s623 + $0x18] sm:$0xf]
      %v629 = vld [vmem:[%s623 + $0x1c] sm:$0xf]
      %v630 = vld [vmem:[%s623 + $0x24] sm:$0xf]
      %v631 = vld [vmem:[%s623 + $0x28] sm:$0xf]
      %v632 = vld [vmem:[%s623 + $0x30] sm:$0xf]
      %v633 = vld [vmem:[%s623 + $0x34] sm:$0xf]
      %v634 = vld [vmem:[%s623 + $0x3c] sm:$0xf]
      %v635 = vld [vmem:[%s623 + $0x40] sm:$0xf]
      %v636 = vld [vmem:[%s623 + $0x48] sm:$0xf]
      %v637 = vld [vmem:[%s623 + $0x4c] sm:$0xf]
      %v638 = vld [vmem:[%s623 + $0x54] sm:$0xf]
      %v639 = vld [vmem:[%s623 + $0x58] sm:$0xf]
      %v640 = vld [vmem:[%s623 + $0x8] sm:$0x1]
      %v641 = vld [vmem:[%s623 + $0x14] sm:$0x1]
      %v642 = vld [vmem:[%s623 + $0x20] sm:$0x1]
      %v643 = vld [vmem:[%s623 + $0x2c] sm:$0x1]
      %v644 = vld [vmem:[%s623 + $0x38] sm:$0x1]
      %v645 = vld [vmem:[%s623 + $0x44] sm:$0x1]
      %v646 = vld [vmem:[%s623 + $0x50] sm:$0x1]
      %v647 = vld [vmem:[%s623 + $0x5c] sm:$0x1]
      %v649 = vshrl.u32 %v624, 16
      %v651 = vrot.slane %v649, 4
      %v652 = vshll.u32 %v624, 16
      %v654 = vrot.slane %v652, 5
      %v655 = vor.u32 %v651, %v654
      %v656 = vrot.slane %v655, 4
      %v658 = vshll.u32 %v625, 16
      %v660 = vrot.slane %v658, 5
      %v661 = vsel %vm336, %v656, %v660
      %v662 = vshrl.u32 %v625, 16
      %v664 = vrot.slane %v662, 4
      %v665 = vor.u32 %v664, %v660
      %v666 = vrot.slane %v665, 4
      %v668 = vshll.u32 %v640, 16
      %v670 = vrot.slane %v668, 5
      %v671 = vsel %vm336, %v666, %v670
      %v673 = vshrl.u32 %v626, 16
      %v675 = vrot.slane %v673, 4
      %v676 = vshll.u32 %v626, 16
      %v678 = vrot.slane %v676, 5
      %v679 = vor.u32 %v675, %v678
      %v680 = vrot.slane %v679, 4
      %v682 = vshll.u32 %v627, 16
      %v684 = vrot.slane %v682, 5
      %v685 = vsel %vm336, %v680, %v684
      %v686 = vshrl.u32 %v627, 16
      %v688 = vrot.slane %v686, 4
      %v689 = vor.u32 %v688, %v684
      %v690 = vrot.slane %v689, 4
      %v692 = vshll.u32 %v641, 16
      %v694 = vrot.slane %v692, 5
      %v695 = vsel %vm336, %v690, %v694
      %v697 = vshrl.u32 %v628, 16
      %v699 = vrot.slane %v697, 4
      %v700 = vshll.u32 %v628, 16
      %v702 = vrot.slane %v700, 5
      %v703 = vor.u32 %v699, %v702
      %v704 = vrot.slane %v703, 4
      %v706 = vshll.u32 %v629, 16
      %v708 = vrot.slane %v706, 5
      %v709 = vsel %vm336, %v704, %v708
      %v710 = vshrl.u32 %v629, 16
      %v712 = vrot.slane %v710, 4
      %v713 = vor.u32 %v712, %v708
      %v714 = vrot.slane %v713, 4
      %v716 = vshll.u32 %v642, 16
      %v718 = vrot.slane %v716, 5
      %v719 = vsel %vm336, %v714, %v718
      %v721 = vshrl.u32 %v630, 16
      %v723 = vrot.slane %v721, 4
      %v724 = vshll.u32 %v630, 16
      %v726 = vrot.slane %v724, 5
      %v727 = vor.u32 %v723, %v726
      %v728 = vrot.slane %v727, 4
      %v730 = vshll.u32 %v631, 16
      %v732 = vrot.slane %v730, 5
      %v733 = vsel %vm336, %v728, %v732
      %v734 = vshrl.u32 %v631, 16
      %v736 = vrot.slane %v734, 4
      %v737 = vor.u32 %v736, %v732
      %v738 = vrot.slane %v737, 4
      %v740 = vshll.u32 %v643, 16
      %v742 = vrot.slane %v740, 5
      %v743 = vsel %vm336, %v738, %v742
      %v745 = vshrl.u32 %v632, 16
      %v747 = vrot.slane %v745, 4
      %v748 = vshll.u32 %v632, 16
      %v750 = vrot.slane %v748, 5
      %v751 = vor.u32 %v747, %v750
      %v752 = vrot.slane %v751, 4
      %v754 = vshll.u32 %v633, 16
      %v756 = vrot.slane %v754, 5
      %v757 = vsel %vm336, %v752, %v756
      %v758 = vshrl.u32 %v633, 16
      %v760 = vrot.slane %v758, 4
      %v761 = vor.u32 %v760, %v756
      %v762 = vrot.slane %v761, 4
      %v764 = vshll.u32 %v644, 16
      %v766 = vrot.slane %v764, 5
      %v767 = vsel %vm336, %v762, %v766
      %v769 = vshrl.u32 %v634, 16
      %v771 = vrot.slane %v769, 4
      %v772 = vshll.u32 %v634, 16
      %v774 = vrot.slane %v772, 5
      %v775 = vor.u32 %v771, %v774
      %v776 = vrot.slane %v775, 4
      %v778 = vshll.u32 %v635, 16
      %v780 = vrot.slane %v778, 5
      %v781 = vsel %vm336, %v776, %v780
      %v782 = vshrl.u32 %v635, 16
      %v784 = vrot.slane %v782, 4
      %v785 = vor.u32 %v784, %v780
      %v786 = vrot.slane %v785, 4
      %v788 = vshll.u32 %v645, 16
      %v790 = vrot.slane %v788, 5
      %v791 = vsel %vm336, %v786, %v790
      %v793 = vshrl.u32 %v636, 16
      %v795 = vrot.slane %v793, 4
      %v796 = vshll.u32 %v636, 16
      %v798 = vrot.slane %v796, 5
      %v799 = vor.u32 %v795, %v798
      %v800 = vrot.slane %v799, 4
      %v802 = vshll.u32 %v637, 16
      %v804 = vrot.slane %v802, 5
      %v805 = vsel %vm336, %v800, %v804
      %v806 = vshrl.u32 %v637, 16
      %v808 = vrot.slane %v806, 4
      %v809 = vor.u32 %v808, %v804
      %v810 = vrot.slane %v809, 4
      %v812 = vshll.u32 %v646, 16
      %v814 = vrot.slane %v812, 5
      %v815 = vsel %vm336, %v810, %v814
      %v817 = vshrl.u32 %v638, 16
      %v819 = vrot.slane %v817, 4
      %v820 = vshll.u32 %v638, 16
      %v822 = vrot.slane %v820, 5
      %v823 = vor.u32 %v819, %v822
      %v824 = vrot.slane %v823, 4
      %v826 = vshll.u32 %v639, 16
      %v828 = vrot.slane %v826, 5
      %v829 = vsel %vm336, %v824, %v828
      %v830 = vshrl.u32 %v639, 16
      %v832 = vrot.slane %v830, 4
      %v833 = vor.u32 %v832, %v828
      %v834 = vrot.slane %v833, 4
      %v836 = vshll.u32 %v647, 16
      %v838 = vrot.slane %v836, 5
      %v839 = vsel %vm336, %v834, %v838
      %v840 = vld [vmem:[%s623] sm:$0xe]
      %v841 = vld [vmem:[%s623 + $0xc] sm:$0xe]
      %v842 = vld [vmem:[%s623 + $0x18] sm:$0xe]
      %v843 = vld [vmem:[%s623 + $0x24] sm:$0xe]
      %v844 = vld [vmem:[%s623 + $0x30] sm:$0xe]
      %v845 = vld [vmem:[%s623 + $0x3c] sm:$0xe]
      %v846 = vld [vmem:[%s623 + $0x48] sm:$0xe]
      %v847 = vld [vmem:[%s623 + $0x54] sm:$0xe]
      %v872 = vrot.slane %v840, 5
      %v873 = vrot.slane %v872, 4
      %v874 = vrot.slane %v625, 5
      %v875 = vsel %vm563, %v873, %v874
      %v876 = vrot.slane %v874, 4
      %v877 = vrot.slane %v640, 5
      %v878 = vsel %vm563, %v876, %v877
      %v879 = vrot.slane %v841, 5
      %v880 = vrot.slane %v879, 4
      %v881 = vrot.slane %v627, 5
      %v882 = vsel %vm563, %v880, %v881
      %v883 = vrot.slane %v881, 4
      %v884 = vrot.slane %v641, 5
      %v885 = vsel %vm563, %v883, %v884
      %v886 = vrot.slane %v842, 5
      %v887 = vrot.slane %v886, 4
      %v888 = vrot.slane %v629, 5
      %v889 = vsel %vm563, %v887, %v888
      %v890 = vrot.slane %v888, 4
      %v891 = vrot.slane %v642, 5
      %v892 = vsel %vm563, %v890, %v891
      %v893 = vrot.slane %v843, 5
      %v894 = vrot.slane %v893, 4
      %v895 = vrot.slane %v631, 5
      %v896 = vsel %vm563, %v894, %v895
      %v897 = vrot.slane %v895, 4
      %v898 = vrot.slane %v643, 5
      %v899 = vsel %vm563, %v897, %v898
      %v900 = vrot.slane %v844, 5
      %v901 = vrot.slane %v900, 4
      %v902 = vrot.slane %v633, 5
      %v903 = vsel %vm563, %v901, %v902
      %v904 = vrot.slane %v902, 4
      %v905 = vrot.slane %v644, 5
      %v906 = vsel %vm563, %v904, %v905
      %v907 = vrot.slane %v845, 5
      %v908 = vrot.slane %v907, 4
      %v909 = vrot.slane %v635, 5
      %v910 = vsel %vm563, %v908, %v909
      %v911 = vrot.slane %v909, 4
      %v912 = vrot.slane %v645, 5
      %v913 = vsel %vm563, %v911, %v912
      %v914 = vrot.slane %v846, 5
      %v915 = vrot.slane %v914, 4
      %v916 = vrot.slane %v637, 5
      %v917 = vsel %vm563, %v915, %v916
      %v918 = vrot.slane %v916, 4
      %v919 = vrot.slane %v646, 5
      %v920 = vsel %vm563, %v918, %v919
      %v921 = vrot.slane %v847, 5
      %v922 = vrot.slane %v921, 4
      %v923 = vrot.slane %v639, 5
      %v924 = vsel %vm563, %v922, %v923
      %v925 = vrot.slane %v923, 4
      %v926 = vrot.slane %v647, 5
      %v927 = vsel %vm563, %v925, %v926
      %s928 = sadd.s32 %s306, 2
      %s929 = smul.u32 %s928, 3
      %s930 = smul.addr %s929, 4
      %s931 = scalar_lea.vmem %s268, %s930
      %v932 = vld [vmem:[%s931] sm:$0xf]
      %v933 = vld [vmem:[%s931 + $0x4] sm:$0xf]
      %v934 = vld [vmem:[%s931 + $0xc] sm:$0xf]
      %v935 = vld [vmem:[%s931 + $0x10] sm:$0xf]
      %v936 = vld [vmem:[%s931 + $0x18] sm:$0xf]
      %v937 = vld [vmem:[%s931 + $0x1c] sm:$0xf]
      %v938 = vld [vmem:[%s931 + $0x24] sm:$0xf]
      %v939 = vld [vmem:[%s931 + $0x28] sm:$0xf]
      %v940 = vld [vmem:[%s931 + $0x30] sm:$0xf]
      %v941 = vld [vmem:[%s931 + $0x34] sm:$0xf]
      %v942 = vld [vmem:[%s931 + $0x3c] sm:$0xf]
      %v943 = vld [vmem:[%s931 + $0x40] sm:$0xf]
      %v944 = vld [vmem:[%s931 + $0x48] sm:$0xf]
      %v945 = vld [vmem:[%s931 + $0x4c] sm:$0xf]
      %v946 = vld [vmem:[%s931 + $0x54] sm:$0xf]
      %v947 = vld [vmem:[%s931 + $0x58] sm:$0xf]
      %v948 = vld [vmem:[%s931 + $0x8] sm:$0x1]
      %v949 = vld [vmem:[%s931 + $0x14] sm:$0x1]
      %v950 = vld [vmem:[%s931 + $0x20] sm:$0x1]
      %v951 = vld [vmem:[%s931 + $0x2c] sm:$0x1]
      %v952 = vld [vmem:[%s931 + $0x38] sm:$0x1]
      %v953 = vld [vmem:[%s931 + $0x44] sm:$0x1]
      %v954 = vld [vmem:[%s931 + $0x50] sm:$0x1]
      %v955 = vld [vmem:[%s931 + $0x5c] sm:$0x1]
      %v957 = vshrl.u32 %v932, 16
      %v959 = vrot.slane %v957, 4
      %v960 = vshll.u32 %v932, 16
      %v962 = vrot.slane %v960, 5
      %v963 = vor.u32 %v959, %v962
      %v964 = vrot.slane %v963, 4
      %v966 = vshll.u32 %v933, 16
      %v968 = vrot.slane %v966, 5
      %v969 = vsel %vm336, %v964, %v968
      %v970 = vshrl.u32 %v933, 16
      %v972 = vrot.slane %v970, 4
      %v973 = vor.u32 %v972, %v968
      %v974 = vrot.slane %v973, 4
      %v976 = vshll.u32 %v948, 16
      %v978 = vrot.slane %v976, 5
      %v979 = vsel %vm336, %v974, %v978
      %v981 = vshrl.u32 %v934, 16
      %v983 = vrot.slane %v981, 4
      %v984 = vshll.u32 %v934, 16
      %v986 = vrot.slane %v984, 5
      %v987 = vor.u32 %v983, %v986
      %v988 = vrot.slane %v987, 4
      %v990 = vshll.u32 %v935, 16
      %v992 = vrot.slane %v990, 5
      %v993 = vsel %vm336, %v988, %v992
      %v994 = vshrl.u32 %v935, 16
      %v996 = vrot.slane %v994, 4
      %v997 = vor.u32 %v996, %v992
      %v998 = vrot.slane %v997, 4
      %v1000 = vshll.u32 %v949, 16
      %v1002 = vrot.slane %v1000, 5
      %v1003 = vsel %vm336, %v998, %v1002
      %v1005 = vshrl.u32 %v936, 16
      %v1007 = vrot.slane %v1005, 4
      %v1008 = vshll.u32 %v936, 16
      %v1010 = vrot.slane %v1008, 5
      %v1011 = vor.u32 %v1007, %v1010
      %v1012 = vrot.slane %v1011, 4
      %v1014 = vshll.u32 %v937, 16
      %v1016 = vrot.slane %v1014, 5
      %v1017 = vsel %vm336, %v1012, %v1016
      %v1018 = vshrl.u32 %v937, 16
      %v1020 = vrot.slane %v1018, 4
      %v1021 = vor.u32 %v1020, %v1016
      %v1022 = vrot.slane %v1021, 4
      %v1024 = vshll.u32 %v950, 16
      %v1026 = vrot.slane %v1024, 5
      %v1027 = vsel %vm336, %v1022, %v1026
      %v1029 = vshrl.u32 %v938, 16
      %v1031 = vrot.slane %v1029, 4
      %v1032 = vshll.u32 %v938, 16
      %v1034 = vrot.slane %v1032, 5
      %v1035 = vor.u32 %v1031, %v1034
      %v1036 = vrot.slane %v1035, 4
      %v1038 = vshll.u32 %v939, 16
      %v1040 = vrot.slane %v1038, 5
      %v1041 = vsel %vm336, %v1036, %v1040
      %v1042 = vshrl.u32 %v939, 16
      %v1044 = vrot.slane %v1042, 4
      %v1045 = vor.u32 %v1044, %v1040
      %v1046 = vrot.slane %v1045, 4
      %v1048 = vshll.u32 %v951, 16
      %v1050 = vrot.slane %v1048, 5
      %v1051 = vsel %vm336, %v1046, %v1050
      %v1053 = vshrl.u32 %v940, 16
      %v1055 = vrot.slane %v1053, 4
      %v1056 = vshll.u32 %v940, 16
      %v1058 = vrot.slane %v1056, 5
      %v1059 = vor.u32 %v1055, %v1058
      %v1060 = vrot.slane %v1059, 4
      %v1062 = vshll.u32 %v941, 16
      %v1064 = vrot.slane %v1062, 5
      %v1065 = vsel %vm336, %v1060, %v1064
      %v1066 = vshrl.u32 %v941, 16
      %v1068 = vrot.slane %v1066, 4
      %v1069 = vor.u32 %v1068, %v1064
      %v1070 = vrot.slane %v1069, 4
      %v1072 = vshll.u32 %v952, 16
      %v1074 = vrot.slane %v1072, 5
      %v1075 = vsel %vm336, %v1070, %v1074
      %v1077 = vshrl.u32 %v942, 16
      %v1079 = vrot.slane %v1077, 4
      %v1080 = vshll.u32 %v942, 16
      %v1082 = vrot.slane %v1080, 5
      %v1083 = vor.u32 %v1079, %v1082
      %v1084 = vrot.slane %v1083, 4
      %v1086 = vshll.u32 %v943, 16
      %v1088 = vrot.slane %v1086, 5
      %v1089 = vsel %vm336, %v1084, %v1088
      %v1090 = vshrl.u32 %v943, 16
      %v1092 = vrot.slane %v1090, 4
      %v1093 = vor.u32 %v1092, %v1088
      %v1094 = vrot.slane %v1093, 4
      %v1096 = vshll.u32 %v953, 16
      %v1098 = vrot.slane %v1096, 5
      %v1099 = vsel %vm336, %v1094, %v1098
      %v1101 = vshrl.u32 %v944, 16
      %v1103 = vrot.slane %v1101, 4
      %v1104 = vshll.u32 %v944, 16
      %v1106 = vrot.slane %v1104, 5
      %v1107 = vor.u32 %v1103, %v1106
      %v1108 = vrot.slane %v1107, 4
      %v1110 = vshll.u32 %v945, 16
      %v1112 = vrot.slane %v1110, 5
      %v1113 = vsel %vm336, %v1108, %v1112
      %v1114 = vshrl.u32 %v945, 16
      %v1116 = vrot.slane %v1114, 4
      %v1117 = vor.u32 %v1116, %v1112
      %v1118 = vrot.slane %v1117, 4
      %v1120 = vshll.u32 %v954, 16
      %v1122 = vrot.slane %v1120, 5
      %v1123 = vsel %vm336, %v1118, %v1122
      %v1125 = vshrl.u32 %v946, 16
      %v1127 = vrot.slane %v1125, 4
      %v1128 = vshll.u32 %v946, 16
      %v1130 = vrot.slane %v1128, 5
      %v1131 = vor.u32 %v1127, %v1130
      %v1132 = vrot.slane %v1131, 4
      %v1134 = vshll.u32 %v947, 16
      %v1136 = vrot.slane %v1134, 5
      %v1137 = vsel %vm336, %v1132, %v1136
      %v1138 = vshrl.u32 %v947, 16
      %v1140 = vrot.slane %v1138, 4
      %v1141 = vor.u32 %v1140, %v1136
      %v1142 = vrot.slane %v1141, 4
      %v1144 = vshll.u32 %v955, 16
      %v1146 = vrot.slane %v1144, 5
      %v1147 = vsel %vm336, %v1142, %v1146
      %v1148 = vld [vmem:[%s931] sm:$0xe]
      %v1149 = vld [vmem:[%s931 + $0xc] sm:$0xe]
      %v1150 = vld [vmem:[%s931 + $0x18] sm:$0xe]
      %v1151 = vld [vmem:[%s931 + $0x24] sm:$0xe]
      %v1152 = vld [vmem:[%s931 + $0x30] sm:$0xe]
      %v1153 = vld [vmem:[%s931 + $0x3c] sm:$0xe]
      %v1154 = vld [vmem:[%s931 + $0x48] sm:$0xe]
      %v1155 = vld [vmem:[%s931 + $0x54] sm:$0xe]
      %v1180 = vrot.slane %v1148, 5
      %v1181 = vrot.slane %v1180, 4
      %v1182 = vrot.slane %v933, 5
      %v1183 = vsel %vm563, %v1181, %v1182
      %v1184 = vrot.slane %v1182, 4
      %v1185 = vrot.slane %v948, 5
      %v1186 = vsel %vm563, %v1184, %v1185
      %v1187 = vrot.slane %v1149, 5
      %v1188 = vrot.slane %v1187, 4
      %v1189 = vrot.slane %v935, 5
      %v1190 = vsel %vm563, %v1188, %v1189
      %v1191 = vrot.slane %v1189, 4
      %v1192 = vrot.slane %v949, 5
      %v1193 = vsel %vm563, %v1191, %v1192
      %v1194 = vrot.slane %v1150, 5
      %v1195 = vrot.slane %v1194, 4
      %v1196 = vrot.slane %v937, 5
      %v1197 = vsel %vm563, %v1195, %v1196
      %v1198 = vrot.slane %v1196, 4
      %v1199 = vrot.slane %v950, 5
      %v1200 = vsel %vm563, %v1198, %v1199
      %v1201 = vrot.slane %v1151, 5
      %v1202 = vrot.slane %v1201, 4
      %v1203 = vrot.slane %v939, 5
      %v1204 = vsel %vm563, %v1202, %v1203
      %v1205 = vrot.slane %v1203, 4
      %v1206 = vrot.slane %v951, 5
      %v1207 = vsel %vm563, %v1205, %v1206
      %v1208 = vrot.slane %v1152, 5
      %v1209 = vrot.slane %v1208, 4
      %v1210 = vrot.slane %v941, 5
      %v1211 = vsel %vm563, %v1209, %v1210
      %v1212 = vrot.slane %v1210, 4
      %v1213 = vrot.slane %v952, 5
      %v1214 = vsel %vm563, %v1212, %v1213
      %v1215 = vrot.slane %v1153, 5
      %v1216 = vrot.slane %v1215, 4
      %v1217 = vrot.slane %v943, 5
      %v1218 = vsel %vm563, %v1216, %v1217
      %v1219 = vrot.slane %v1217, 4
      %v1220 = vrot.slane %v953, 5
      %v1221 = vsel %vm563, %v1219, %v1220
      %v1222 = vrot.slane %v1154, 5
      %v1223 = vrot.slane %v1222, 4
      %v1224 = vrot.slane %v945, 5
      %v1225 = vsel %vm563, %v1223, %v1224
      %v1226 = vrot.slane %v1224, 4
      %v1227 = vrot.slane %v954, 5
      %v1228 = vsel %vm563, %v1226, %v1227
      %v1229 = vrot.slane %v1155, 5
      %v1230 = vrot.slane %v1229, 4
      %v1231 = vrot.slane %v947, 5
      %v1232 = vsel %vm563, %v1230, %v1231
      %v1233 = vrot.slane %v1231, 4
      %v1234 = vrot.slane %v955, 5
      %v1235 = vsel %vm563, %v1233, %v1234
      %v1244 = vunpack.c.l.b16 %v310
      %v1245 = vunpack.c.l.b16 %v311
      %v1246 = vunpack.c.l.b16 %v312
      %v1247 = vunpack.c.l.b16 %v313
      %v1248 = vunpack.c.l.b16 %v314
      %v1249 = vunpack.c.l.b16 %v315
      %v1250 = vunpack.c.l.b16 %v316
      %v1251 = vunpack.c.l.b16 %v317
      %v1252 = vunpack.c.l.b16 %v318
      %v1253 = vunpack.c.l.b16 %v319
      %v1254 = vunpack.c.l.b16 %v320
      %v1255 = vunpack.c.l.b16 %v321
      %v1256 = vunpack.c.l.b16 %v322
      %v1257 = vunpack.c.l.b16 %v323
      %v1258 = vunpack.c.l.b16 %v324
      %v1259 = vunpack.c.l.b16 %v325
      %v1260 = vpack.c.b16 %v1245, %v1244
      %v1261 = vpack.c.b16 %v1247, %v1246
      %v1262 = vpack.c.b16 %v1249, %v1248
      %v1263 = vpack.c.b16 %v1251, %v1250
      %v1264 = vpack.c.b16 %v1253, %v1252
      %v1265 = vpack.c.b16 %v1255, %v1254
      %v1266 = vpack.c.b16 %v1257, %v1256
      %v1267 = vpack.c.b16 %v1259, %v1258
      %v1276 = vunpack.c.l.b16 %v350
      %v1277 = vunpack.c.l.b16 %v360
      %v1278 = vunpack.c.l.b16 %v374
      %v1279 = vunpack.c.l.b16 %v384
      %v1280 = vunpack.c.l.b16 %v398
      %v1281 = vunpack.c.l.b16 %v408
      %v1282 = vunpack.c.l.b16 %v422
      %v1283 = vunpack.c.l.b16 %v432
      %v1284 = vunpack.c.l.b16 %v446
      %v1285 = vunpack.c.l.b16 %v456
      %v1286 = vunpack.c.l.b16 %v470
      %v1287 = vunpack.c.l.b16 %v480
      %v1288 = vunpack.c.l.b16 %v494
      %v1289 = vunpack.c.l.b16 %v504
      %v1290 = vunpack.c.l.b16 %v518
      %v1291 = vunpack.c.l.b16 %v528
      %v1292 = vpack.c.b16 %v1277, %v1276
      %v1293 = vpack.c.b16 %v1279, %v1278
      %v1294 = vpack.c.b16 %v1281, %v1280
      %v1295 = vpack.c.b16 %v1283, %v1282
      %v1296 = vpack.c.b16 %v1285, %v1284
      %v1297 = vpack.c.b16 %v1287, %v1286
      %v1298 = vpack.c.b16 %v1289, %v1288
      %v1299 = vpack.c.b16 %v1291, %v1290
      %v1308 = vunpack.c.l.b16 %v567
      %v1309 = vunpack.c.l.b16 %v570
      %v1310 = vunpack.c.l.b16 %v574
      %v1311 = vunpack.c.l.b16 %v577
      %v1312 = vunpack.c.l.b16 %v581
      %v1313 = vunpack.c.l.b16 %v584
      %v1314 = vunpack.c.l.b16 %v588
      %v1315 = vunpack.c.l.b16 %v591
      %v1316 = vunpack.c.l.b16 %v595
      %v1317 = vunpack.c.l.b16 %v598
      %v1318 = vunpack.c.l.b16 %v602
      %v1319 = vunpack.c.l.b16 %v605
      %v1320 = vunpack.c.l.b16 %v609
      %v1321 = vunpack.c.l.b16 %v612
      %v1322 = vunpack.c.l.b16 %v616
      %v1323 = vunpack.c.l.b16 %v619
      %v1324 = vpack.c.b16 %v1309, %v1308
      %v1325 = vpack.c.b16 %v1311, %v1310
      %v1326 = vpack.c.b16 %v1313, %v1312
      %v1327 = vpack.c.b16 %v1315, %v1314
      %v1328 = vpack.c.b16 %v1317, %v1316
      %v1329 = vpack.c.b16 %v1319, %v1318
      %v1330 = vpack.c.b16 %v1321, %v1320
      %v1331 = vpack.c.b16 %v1323, %v1322
      %v1348 = vunpack.c.l.b16 %v624
      %v1349 = vunpack.c.l.b16 %v625
      %v1350 = vunpack.c.l.b16 %v626
      %v1351 = vunpack.c.l.b16 %v627
      %v1352 = vunpack.c.l.b16 %v628
      %v1353 = vunpack.c.l.b16 %v629
      %v1354 = vunpack.c.l.b16 %v630
      %v1355 = vunpack.c.l.b16 %v631
      %v1356 = vunpack.c.l.b16 %v632
      %v1357 = vunpack.c.l.b16 %v633
      %v1358 = vunpack.c.l.b16 %v634
      %v1359 = vunpack.c.l.b16 %v635
      %v1360 = vunpack.c.l.b16 %v636
      %v1361 = vunpack.c.l.b16 %v637
      %v1362 = vunpack.c.l.b16 %v638
      %v1363 = vunpack.c.l.b16 %v639
      %v1364 = vpack.c.b16 %v1349, %v1348
      %v1365 = vpack.c.b16 %v1351, %v1350
      %v1366 = vpack.c.b16 %v1353, %v1352
      %v1367 = vpack.c.b16 %v1355, %v1354
      %v1368 = vpack.c.b16 %v1357, %v1356
      %v1369 = vpack.c.b16 %v1359, %v1358
      %v1370 = vpack.c.b16 %v1361, %v1360
      %v1371 = vpack.c.b16 %v1363, %v1362
      %v1380 = vunpack.c.l.b16 %v661
      %v1381 = vunpack.c.l.b16 %v671
      %v1382 = vunpack.c.l.b16 %v685
      %v1383 = vunpack.c.l.b16 %v695
      %v1384 = vunpack.c.l.b16 %v709
      %v1385 = vunpack.c.l.b16 %v719
      %v1386 = vunpack.c.l.b16 %v733
      %v1387 = vunpack.c.l.b16 %v743
      %v1388 = vunpack.c.l.b16 %v757
      %v1389 = vunpack.c.l.b16 %v767
      %v1390 = vunpack.c.l.b16 %v781
      %v1391 = vunpack.c.l.b16 %v791
      %v1392 = vunpack.c.l.b16 %v805
      %v1393 = vunpack.c.l.b16 %v815
      %v1394 = vunpack.c.l.b16 %v829
      %v1395 = vunpack.c.l.b16 %v839
      %v1396 = vpack.c.b16 %v1381, %v1380
      %v1397 = vpack.c.b16 %v1383, %v1382
      %v1398 = vpack.c.b16 %v1385, %v1384
      %v1399 = vpack.c.b16 %v1387, %v1386
      %v1400 = vpack.c.b16 %v1389, %v1388
      %v1401 = vpack.c.b16 %v1391, %v1390
      %v1402 = vpack.c.b16 %v1393, %v1392
      %v1403 = vpack.c.b16 %v1395, %v1394
      %v1412 = vunpack.c.l.b16 %v875
      %v1413 = vunpack.c.l.b16 %v878
      %v1414 = vunpack.c.l.b16 %v882
      %v1415 = vunpack.c.l.b16 %v885
      %v1416 = vunpack.c.l.b16 %v889
      %v1417 = vunpack.c.l.b16 %v892
      %v1418 = vunpack.c.l.b16 %v896
      %v1419 = vunpack.c.l.b16 %v899
      %v1420 = vunpack.c.l.b16 %v903
      %v1421 = vunpack.c.l.b16 %v906
      %v1422 = vunpack.c.l.b16 %v910
      %v1423 = vunpack.c.l.b16 %v913
      %v1424 = vunpack.c.l.b16 %v917
      %v1425 = vunpack.c.l.b16 %v920
      %v1426 = vunpack.c.l.b16 %v924
      %v1427 = vunpack.c.l.b16 %v927
      %v1428 = vpack.c.b16 %v1413, %v1412
      %v1429 = vpack.c.b16 %v1415, %v1414
      %v1430 = vpack.c.b16 %v1417, %v1416
      %v1431 = vpack.c.b16 %v1419, %v1418
      %v1432 = vpack.c.b16 %v1421, %v1420
      %v1433 = vpack.c.b16 %v1423, %v1422
      %v1434 = vpack.c.b16 %v1425, %v1424
      %v1435 = vpack.c.b16 %v1427, %v1426
      %v1452 = vunpack.c.l.b16 %v932
      %v1453 = vunpack.c.l.b16 %v933
      %v1454 = vunpack.c.l.b16 %v934
      %v1455 = vunpack.c.l.b16 %v935
      %v1456 = vunpack.c.l.b16 %v936
      %v1457 = vunpack.c.l.b16 %v937
      %v1458 = vunpack.c.l.b16 %v938
      %v1459 = vunpack.c.l.b16 %v939
      %v1460 = vunpack.c.l.b16 %v940
      %v1461 = vunpack.c.l.b16 %v941
      %v1462 = vunpack.c.l.b16 %v942
      %v1463 = vunpack.c.l.b16 %v943
      %v1464 = vunpack.c.l.b16 %v944
      %v1465 = vunpack.c.l.b16 %v945
      %v1466 = vunpack.c.l.b16 %v946
      %v1467 = vunpack.c.l.b16 %v947
      %v1468 = vpack.c.b16 %v1453, %v1452
      %v1469 = vpack.c.b16 %v1455, %v1454
      %v1470 = vpack.c.b16 %v1457, %v1456
      %v1471 = vpack.c.b16 %v1459, %v1458
      %v1472 = vpack.c.b16 %v1461, %v1460
      %v1473 = vpack.c.b16 %v1463, %v1462
      %v1474 = vpack.c.b16 %v1465, %v1464
      %v1475 = vpack.c.b16 %v1467, %v1466
      %v1484 = vunpack.c.l.b16 %v969
      %v1485 = vunpack.c.l.b16 %v979
      %v1486 = vunpack.c.l.b16 %v993
      %v1487 = vunpack.c.l.b16 %v1003
      %v1488 = vunpack.c.l.b16 %v1017
      %v1489 = vunpack.c.l.b16 %v1027
      %v1490 = vunpack.c.l.b16 %v1041
      %v1491 = vunpack.c.l.b16 %v1051
      %v1492 = vunpack.c.l.b16 %v1065
      %v1493 = vunpack.c.l.b16 %v1075
      %v1494 = vunpack.c.l.b16 %v1089
      %v1495 = vunpack.c.l.b16 %v1099
      %v1496 = vunpack.c.l.b16 %v1113
      %v1497 = vunpack.c.l.b16 %v1123
      %v1498 = vunpack.c.l.b16 %v1137
      %v1499 = vunpack.c.l.b16 %v1147
      %v1500 = vpack.c.b16 %v1485, %v1484
      %v1501 = vpack.c.b16 %v1487, %v1486
      %v1502 = vpack.c.b16 %v1489, %v1488
      %v1503 = vpack.c.b16 %v1491, %v1490
      %v1504 = vpack.c.b16 %v1493, %v1492
      %v1505 = vpack.c.b16 %v1495, %v1494
      %v1506 = vpack.c.b16 %v1497, %v1496
      %v1507 = vpack.c.b16 %v1499, %v1498
      %v1516 = vunpack.c.l.b16 %v1183
      %v1517 = vunpack.c.l.b16 %v1186
      %v1518 = vunpack.c.l.b16 %v1190
      %v1519 = vunpack.c.l.b16 %v1193
      %v1520 = vunpack.c.l.b16 %v1197
      %v1521 = vunpack.c.l.b16 %v1200
      %v1522 = vunpack.c.l.b16 %v1204
      %v1523 = vunpack.c.l.b16 %v1207
      %v1524 = vunpack.c.l.b16 %v1211
      %v1525 = vunpack.c.l.b16 %v1214
      %v1526 = vunpack.c.l.b16 %v1218
      %v1527 = vunpack.c.l.b16 %v1221
      %v1528 = vunpack.c.l.b16 %v1225
      %v1529 = vunpack.c.l.b16 %v1228
      %v1530 = vunpack.c.l.b16 %v1232
      %v1531 = vunpack.c.l.b16 %v1235
      %v1532 = vpack.c.b16 %v1517, %v1516
      %v1533 = vpack.c.b16 %v1519, %v1518
      %v1534 = vpack.c.b16 %v1521, %v1520
      %v1535 = vpack.c.b16 %v1523, %v1522
      %v1536 = vpack.c.b16 %v1525, %v1524
      %v1537 = vpack.c.b16 %v1527, %v1526
      %v1538 = vpack.c.b16 %v1529, %v1528
      %v1539 = vpack.c.b16 %v1531, %v1530
      %v1548 = vld [vmem:[%s272] sm:$0xf]
      %v1549 = vld [vmem:[%s272 + $0x4] sm:$0xf]
      %v1550 = vld [vmem:[%s272 + $0x8] sm:$0xf]
      %v1551 = vld [vmem:[%s272 + $0xc] sm:$0xf]
      %v1552 = vld [vmem:[%s272 + $0x10] sm:$0xf]
      %v1553 = vld [vmem:[%s272 + $0x14] sm:$0xf]
      %v1554 = vld [vmem:[%s272 + $0x18] sm:$0xf]
      %v1555 = vld [vmem:[%s272 + $0x1c] sm:$0xf]
      %v1556 = vld [vmem:[%s272 + $0x20] sm:$0xf]
      %v1557 = vld [vmem:[%s272 + $0x24] sm:$0xf]
      %v1558 = vld [vmem:[%s272 + $0x28] sm:$0xf]
      %v1559 = vld [vmem:[%s272 + $0x2c] sm:$0xf]
      %v1560 = vld [vmem:[%s272 + $0x30] sm:$0xf]
      %v1561 = vld [vmem:[%s272 + $0x34] sm:$0xf]
      %v1562 = vld [vmem:[%s272 + $0x38] sm:$0xf]
      %v1563 = vld [vmem:[%s272 + $0x3c] sm:$0xf]
      %v1564 = vld [vmem:[%s272 + $0x40] sm:$0xf]
      %v1565 = vld [vmem:[%s272 + $0x44] sm:$0xf]
      %v1566 = vld [vmem:[%s272 + $0x48] sm:$0xf]
      %v1567 = vld [vmem:[%s272 + $0x4c] sm:$0xf]
      %v1568 = vld [vmem:[%s272 + $0x50] sm:$0xf]
      %v1569 = vld [vmem:[%s272 + $0x54] sm:$0xf]
      %v1570 = vld [vmem:[%s272 + $0x58] sm:$0xf]
      %v1571 = vld [vmem:[%s272 + $0x5c] sm:$0xf]
      %v1572 = vld [vmem:[%s272 + $0x60] sm:$0xf]
      %v1573 = vld [vmem:[%s272 + $0x64] sm:$0xf]
      %v1574 = vld [vmem:[%s272 + $0x68] sm:$0xf]
      %v1575 = vld [vmem:[%s272 + $0x6c] sm:$0xf]
      %v1576 = vld [vmem:[%s272 + $0x70] sm:$0xf]
      %v1577 = vld [vmem:[%s272 + $0x74] sm:$0xf]
      %v1578 = vld [vmem:[%s272 + $0x78] sm:$0xf]
      %v1579 = vld [vmem:[%s272 + $0x7c] sm:$0xf]
      %v1580 = vld [vmem:[%s272 + $0x80] sm:$0xf]
      %v1581 = vld [vmem:[%s272 + $0x84] sm:$0xf]
      %v1582 = vld [vmem:[%s272 + $0x88] sm:$0xf]
      %v1583 = vld [vmem:[%s272 + $0x8c] sm:$0xf]
      %v1584 = vld [vmem:[%s272 + $0x90] sm:$0xf]
      %v1585 = vld [vmem:[%s272 + $0x94] sm:$0xf]
      %v1586 = vld [vmem:[%s272 + $0x98] sm:$0xf]
      %v1587 = vld [vmem:[%s272 + $0x9c] sm:$0xf]
      %v1588 = vld [vmem:[%s272 + $0xa0] sm:$0xf]
      %v1589 = vld [vmem:[%s272 + $0xa4] sm:$0xf]
      %v1590 = vld [vmem:[%s272 + $0xa8] sm:$0xf]
      %v1591 = vld [vmem:[%s272 + $0xac] sm:$0xf]
      %v1592 = vld [vmem:[%s272 + $0xb0] sm:$0xf]
      %v1593 = vld [vmem:[%s272 + $0xb4] sm:$0xf]
      %v1594 = vld [vmem:[%s272 + $0xb8] sm:$0xf]
      %v1595 = vld [vmem:[%s272 + $0xbc] sm:$0xf]
      %v1596 = vld [vmem:[%s272 + $0xc0] sm:$0xf]
      %v1597 = vld [vmem:[%s272 + $0xc4] sm:$0xf]
      %v1598 = vld [vmem:[%s272 + $0xc8] sm:$0xf]
      %v1599 = vld [vmem:[%s272 + $0xcc] sm:$0xf]
      %v1600 = vld [vmem:[%s272 + $0xd0] sm:$0xf]
      %v1601 = vld [vmem:[%s272 + $0xd4] sm:$0xf]
      %v1602 = vld [vmem:[%s272 + $0xd8] sm:$0xf]
      %v1603 = vld [vmem:[%s272 + $0xdc] sm:$0xf]
      %v1604 = vld [vmem:[%s272 + $0xe0] sm:$0xf]
      %v1605 = vld [vmem:[%s272 + $0xe4] sm:$0xf]
      %v1606 = vld [vmem:[%s272 + $0xe8] sm:$0xf]
      %v1607 = vld [vmem:[%s272 + $0xec] sm:$0xf]
      %v1608 = vld [vmem:[%s272 + $0xf0] sm:$0xf]
      %v1609 = vld [vmem:[%s272 + $0xf4] sm:$0xf]
      %v1610 = vld [vmem:[%s272 + $0xf8] sm:$0xf]
      %v1611 = vld [vmem:[%s272 + $0xfc] sm:$0xf]
      %v1612 = vld [vmem:[%s272 + $0x100] sm:$0xf]
      %v1613 = vld [vmem:[%s272 + $0x104] sm:$0xf]
      %v1614 = vld [vmem:[%s272 + $0x108] sm:$0xf]
      %v1615 = vld [vmem:[%s272 + $0x10c] sm:$0xf]
      %v1616 = vld [vmem:[%s272 + $0x110] sm:$0xf]
      %v1617 = vld [vmem:[%s272 + $0x114] sm:$0xf]
      %v1618 = vld [vmem:[%s272 + $0x118] sm:$0xf]
      %v1619 = vld [vmem:[%s272 + $0x11c] sm:$0xf]
      %v1620 = vld [vmem:[%s272 + $0x120] sm:$0xf]
      %v1621 = vld [vmem:[%s272 + $0x124] sm:$0xf]
      %v1622 = vld [vmem:[%s272 + $0x128] sm:$0xf]
      %v1623 = vld [vmem:[%s272 + $0x12c] sm:$0xf]
      %v1624 = vld [vmem:[%s272 + $0x130] sm:$0xf]
      %v1625 = vld [vmem:[%s272 + $0x134] sm:$0xf]
      %v1626 = vld [vmem:[%s272 + $0x138] sm:$0xf]
      %v1627 = vld [vmem:[%s272 + $0x13c] sm:$0xf]
      %v1628 = vld [vmem:[%s272 + $0x140] sm:$0xf]
      %v1629 = vld [vmem:[%s272 + $0x144] sm:$0xf]
      %v1630 = vld [vmem:[%s272 + $0x148] sm:$0xf]
      %v1631 = vld [vmem:[%s272 + $0x14c] sm:$0xf]
      %v1632 = vld [vmem:[%s272 + $0x150] sm:$0xf]
      %v1633 = vld [vmem:[%s272 + $0x154] sm:$0xf]
      %v1634 = vld [vmem:[%s272 + $0x158] sm:$0xf]
      %v1635 = vld [vmem:[%s272 + $0x15c] sm:$0xf]
      %v1636 = vld [vmem:[%s272 + $0x160] sm:$0xf]
      %v1637 = vld [vmem:[%s272 + $0x164] sm:$0xf]
      %v1638 = vld [vmem:[%s272 + $0x168] sm:$0xf]
      %v1639 = vld [vmem:[%s272 + $0x16c] sm:$0xf]
      %v1640 = vld [vmem:[%s272 + $0x170] sm:$0xf]
      %v1641 = vld [vmem:[%s272 + $0x174] sm:$0xf]
      %v1642 = vld [vmem:[%s272 + $0x178] sm:$0xf]
      %v1643 = vld [vmem:[%s272 + $0x17c] sm:$0xf]
      %v1644 = vld [vmem:[%s272 + $0x180] sm:$0xf]
      %v1645 = vld [vmem:[%s272 + $0x184] sm:$0xf]
      %v1646 = vld [vmem:[%s272 + $0x188] sm:$0xf]
      %v1647 = vld [vmem:[%s272 + $0x18c] sm:$0xf]
      %v1648 = vld [vmem:[%s272 + $0x190] sm:$0xf]
      %v1649 = vld [vmem:[%s272 + $0x194] sm:$0xf]
      %v1650 = vld [vmem:[%s272 + $0x198] sm:$0xf]
      %v1651 = vld [vmem:[%s272 + $0x19c] sm:$0xf]
      %v1652 = vld [vmem:[%s272 + $0x1a0] sm:$0xf]
      %v1653 = vld [vmem:[%s272 + $0x1a4] sm:$0xf]
      %v1654 = vld [vmem:[%s272 + $0x1a8] sm:$0xf]
      %v1655 = vld [vmem:[%s272 + $0x1ac] sm:$0xf]
      %v1656 = vld [vmem:[%s272 + $0x1b0] sm:$0xf]
      %v1657 = vld [vmem:[%s272 + $0x1b4] sm:$0xf]
      %v1658 = vld [vmem:[%s272 + $0x1b8] sm:$0xf]
      %v1659 = vld [vmem:[%s272 + $0x1bc] sm:$0xf]
      %v1660 = vld [vmem:[%s272 + $0x1c0] sm:$0xf]
      %v1661 = vld [vmem:[%s272 + $0x1c4] sm:$0xf]
      %v1662 = vld [vmem:[%s272 + $0x1c8] sm:$0xf]
      %v1663 = vld [vmem:[%s272 + $0x1cc] sm:$0xf]
      %v1664 = vld [vmem:[%s272 + $0x1d0] sm:$0xf]
      %v1665 = vld [vmem:[%s272 + $0x1d4] sm:$0xf]
      %v1666 = vld [vmem:[%s272 + $0x1d8] sm:$0xf]
      %v1667 = vld [vmem:[%s272 + $0x1dc] sm:$0xf]
      %v1668 = vld [vmem:[%s272 + $0x1e0] sm:$0xf]
      %v1669 = vld [vmem:[%s272 + $0x1e4] sm:$0xf]
      %v1670 = vld [vmem:[%s272 + $0x1e8] sm:$0xf]
      %v1671 = vld [vmem:[%s272 + $0x1ec] sm:$0xf]
      %v1672 = vld [vmem:[%s272 + $0x1f0] sm:$0xf]
      %v1673 = vld [vmem:[%s272 + $0x1f4] sm:$0xf]
      %v1674 = vld [vmem:[%s272 + $0x1f8] sm:$0xf]
      %v1675 = vld [vmem:[%s272 + $0x1fc] sm:$0xf]
      %v1676 = vld [vmem:[%s272 + $0x200] sm:$0xf]
      %v1677 = vld [vmem:[%s272 + $0x204] sm:$0xf]
      %v1678 = vld [vmem:[%s272 + $0x208] sm:$0xf]
      %v1679 = vld [vmem:[%s272 + $0x20c] sm:$0xf]
      %v1680 = vld [vmem:[%s272 + $0x210] sm:$0xf]
      %v1681 = vld [vmem:[%s272 + $0x214] sm:$0xf]
      %v1682 = vld [vmem:[%s272 + $0x218] sm:$0xf]
      %v1683 = vld [vmem:[%s272 + $0x21c] sm:$0xf]
      %v1684 = vld [vmem:[%s272 + $0x220] sm:$0xf]
      %v1685 = vld [vmem:[%s272 + $0x224] sm:$0xf]
      %v1686 = vld [vmem:[%s272 + $0x228] sm:$0xf]
      %v1687 = vld [vmem:[%s272 + $0x22c] sm:$0xf]
      %v1688 = vld [vmem:[%s272 + $0x230] sm:$0xf]
      %v1689 = vld [vmem:[%s272 + $0x234] sm:$0xf]
      %v1690 = vld [vmem:[%s272 + $0x238] sm:$0xf]
      %v1691 = vld [vmem:[%s272 + $0x23c] sm:$0xf]
      %v1836 = vunpack.c.l.b16 %v1548
      %v1837 = vunpack.c.l.b16 %v1549
      %v1838 = vunpack.c.l.b16 %v1550
      %v1839 = vunpack.c.l.b16 %v1551
      %v1840 = vunpack.c.l.b16 %v1552
      %v1841 = vunpack.c.l.b16 %v1553
      %v1842 = vunpack.c.l.b16 %v1554
      %v1843 = vunpack.c.l.b16 %v1555
      %v1844 = vunpack.c.l.b16 %v1556
      %v1845 = vunpack.c.l.b16 %v1557
      %v1846 = vunpack.c.l.b16 %v1558
      %v1847 = vunpack.c.l.b16 %v1559
      %v1848 = vunpack.c.l.b16 %v1560
      %v1849 = vunpack.c.l.b16 %v1561
      %v1850 = vunpack.c.l.b16 %v1562
      %v1851 = vunpack.c.l.b16 %v1563
      %v1852 = vunpack.c.l.b16 %v1564
      %v1853 = vunpack.c.l.b16 %v1565
      %v1854 = vunpack.c.l.b16 %v1566
      %v1855 = vunpack.c.l.b16 %v1567
      %v1856 = vunpack.c.l.b16 %v1568
      %v1857 = vunpack.c.l.b16 %v1569
      %v1858 = vunpack.c.l.b16 %v1570
      %v1859 = vunpack.c.l.b16 %v1571
      %v1860 = vunpack.c.l.b16 %v1572
      %v1861 = vunpack.c.l.b16 %v1573
      %v1862 = vunpack.c.l.b16 %v1574
      %v1863 = vunpack.c.l.b16 %v1575
      %v1864 = vunpack.c.l.b16 %v1576
      %v1865 = vunpack.c.l.b16 %v1577
      %v1866 = vunpack.c.l.b16 %v1578
      %v1867 = vunpack.c.l.b16 %v1579
      %v1868 = vunpack.c.l.b16 %v1580
      %v1869 = vunpack.c.l.b16 %v1581
      %v1870 = vunpack.c.l.b16 %v1582
      %v1871 = vunpack.c.l.b16 %v1583
      %v1872 = vunpack.c.l.b16 %v1584
      %v1873 = vunpack.c.l.b16 %v1585
      %v1874 = vunpack.c.l.b16 %v1586
      %v1875 = vunpack.c.l.b16 %v1587
      %v1876 = vunpack.c.l.b16 %v1588
      %v1877 = vunpack.c.l.b16 %v1589
      %v1878 = vunpack.c.l.b16 %v1590
      %v1879 = vunpack.c.l.b16 %v1591
      %v1880 = vunpack.c.l.b16 %v1592
      %v1881 = vunpack.c.l.b16 %v1593
      %v1882 = vunpack.c.l.b16 %v1594
      %v1883 = vunpack.c.l.b16 %v1595
      %v1884 = vunpack.c.l.b16 %v1596
      %v1885 = vunpack.c.l.b16 %v1597
      %v1886 = vunpack.c.l.b16 %v1598
      %v1887 = vunpack.c.l.b16 %v1599
      %v1888 = vunpack.c.l.b16 %v1600
      %v1889 = vunpack.c.l.b16 %v1601
      %v1890 = vunpack.c.l.b16 %v1602
      %v1891 = vunpack.c.l.b16 %v1603
      %v1892 = vunpack.c.l.b16 %v1604
      %v1893 = vunpack.c.l.b16 %v1605
      %v1894 = vunpack.c.l.b16 %v1606
      %v1895 = vunpack.c.l.b16 %v1607
      %v1896 = vunpack.c.l.b16 %v1608
      %v1897 = vunpack.c.l.b16 %v1609
      %v1898 = vunpack.c.l.b16 %v1610
      %v1899 = vunpack.c.l.b16 %v1611
      %v1900 = vunpack.c.l.b16 %v1612
      %v1901 = vunpack.c.l.b16 %v1613
      %v1902 = vunpack.c.l.b16 %v1614
      %v1903 = vunpack.c.l.b16 %v1615
      %v1904 = vunpack.c.l.b16 %v1616
      %v1905 = vunpack.c.l.b16 %v1617
      %v1906 = vunpack.c.l.b16 %v1618
      %v1907 = vunpack.c.l.b16 %v1619
      %v1908 = vunpack.c.l.b16 %v1620
      %v1909 = vunpack.c.l.b16 %v1621
      %v1910 = vunpack.c.l.b16 %v1622
      %v1911 = vunpack.c.l.b16 %v1623
      %v1912 = vunpack.c.l.b16 %v1624
      %v1913 = vunpack.c.l.b16 %v1625
      %v1914 = vunpack.c.l.b16 %v1626
      %v1915 = vunpack.c.l.b16 %v1627
      %v1916 = vunpack.c.l.b16 %v1628
      %v1917 = vunpack.c.l.b16 %v1629
      %v1918 = vunpack.c.l.b16 %v1630
      %v1919 = vunpack.c.l.b16 %v1631
      %v1920 = vunpack.c.l.b16 %v1632
      %v1921 = vunpack.c.l.b16 %v1633
      %v1922 = vunpack.c.l.b16 %v1634
      %v1923 = vunpack.c.l.b16 %v1635
      %v1924 = vunpack.c.l.b16 %v1636
      %v1925 = vunpack.c.l.b16 %v1637
      %v1926 = vunpack.c.l.b16 %v1638
      %v1927 = vunpack.c.l.b16 %v1639
      %v1928 = vunpack.c.l.b16 %v1640
      %v1929 = vunpack.c.l.b16 %v1641
      %v1930 = vunpack.c.l.b16 %v1642
      %v1931 = vunpack.c.l.b16 %v1643
      %v1932 = vunpack.c.l.b16 %v1644
      %v1933 = vunpack.c.l.b16 %v1645
      %v1934 = vunpack.c.l.b16 %v1646
      %v1935 = vunpack.c.l.b16 %v1647
      %v1936 = vunpack.c.l.b16 %v1648
      %v1937 = vunpack.c.l.b16 %v1649
      %v1938 = vunpack.c.l.b16 %v1650
      %v1939 = vunpack.c.l.b16 %v1651
      %v1940 = vunpack.c.l.b16 %v1652
      %v1941 = vunpack.c.l.b16 %v1653
      %v1942 = vunpack.c.l.b16 %v1654
      %v1943 = vunpack.c.l.b16 %v1655
      %v1944 = vunpack.c.l.b16 %v1656
      %v1945 = vunpack.c.l.b16 %v1657
      %v1946 = vunpack.c.l.b16 %v1658
      %v1947 = vunpack.c.l.b16 %v1659
      %v1948 = vunpack.c.l.b16 %v1660
      %v1949 = vunpack.c.l.b16 %v1661
      %v1950 = vunpack.c.l.b16 %v1662
      %v1951 = vunpack.c.l.b16 %v1663
      %v1952 = vunpack.c.l.b16 %v1664
      %v1953 = vunpack.c.l.b16 %v1665
      %v1954 = vunpack.c.l.b16 %v1666
      %v1955 = vunpack.c.l.b16 %v1667
      %v1956 = vunpack.c.l.b16 %v1668
      %v1957 = vunpack.c.l.b16 %v1669
      %v1958 = vunpack.c.l.b16 %v1670
      %v1959 = vunpack.c.l.b16 %v1671
      %v1960 = vunpack.c.l.b16 %v1672
      %v1961 = vunpack.c.l.b16 %v1673
      %v1962 = vunpack.c.l.b16 %v1674
      %v1963 = vunpack.c.l.b16 %v1675
      %v1964 = vunpack.c.l.b16 %v1676
      %v1965 = vunpack.c.l.b16 %v1677
      %v1966 = vunpack.c.l.b16 %v1678
      %v1967 = vunpack.c.l.b16 %v1679
      %v1968 = vunpack.c.l.b16 %v1680
      %v1969 = vunpack.c.l.b16 %v1681
      %v1970 = vunpack.c.l.b16 %v1682
      %v1971 = vunpack.c.l.b16 %v1683
      %v1972 = vunpack.c.l.b16 %v1684
      %v1973 = vunpack.c.l.b16 %v1685
      %v1974 = vunpack.c.l.b16 %v1686
      %v1975 = vunpack.c.l.b16 %v1687
      %v1976 = vunpack.c.l.b16 %v1688
      %v1977 = vunpack.c.l.b16 %v1689
      %v1978 = vunpack.c.l.b16 %v1690
      %v1979 = vunpack.c.l.b16 %v1691
      %v1980 = vpack.c.b16 %v1837, %v1836
      %v1981 = vpack.c.b16 %v1839, %v1838
      %v1982 = vpack.c.b16 %v1841, %v1840
      %v1983 = vpack.c.b16 %v1843, %v1842
      %v1984 = vpack.c.b16 %v1845, %v1844
      %v1985 = vpack.c.b16 %v1847, %v1846
      %v1986 = vpack.c.b16 %v1849, %v1848
      %v1987 = vpack.c.b16 %v1851, %v1850
      %v1988 = vpack.c.b16 %v1853, %v1852
      %v1989 = vpack.c.b16 %v1855, %v1854
      %v1990 = vpack.c.b16 %v1857, %v1856
      %v1991 = vpack.c.b16 %v1859, %v1858
      %v1992 = vpack.c.b16 %v1861, %v1860
      %v1993 = vpack.c.b16 %v1863, %v1862
      %v1994 = vpack.c.b16 %v1865, %v1864
      %v1995 = vpack.c.b16 %v1867, %v1866
      %v1996 = vpack.c.b16 %v1869, %v1868
      %v1997 = vpack.c.b16 %v1871, %v1870
      %v1998 = vpack.c.b16 %v1873, %v1872
      %v1999 = vpack.c.b16 %v1875, %v1874
      %v2000 = vpack.c.b16 %v1877, %v1876
      %v2001 = vpack.c.b16 %v1879, %v1878
      %v2002 = vpack.c.b16 %v1881, %v1880
      %v2003 = vpack.c.b16 %v1883, %v1882
      %v2004 = vpack.c.b16 %v1885, %v1884
      %v2005 = vpack.c.b16 %v1887, %v1886
      %v2006 = vpack.c.b16 %v1889, %v1888
      %v2007 = vpack.c.b16 %v1891, %v1890
      %v2008 = vpack.c.b16 %v1893, %v1892
      %v2009 = vpack.c.b16 %v1895, %v1894
      %v2010 = vpack.c.b16 %v1897, %v1896
      %v2011 = vpack.c.b16 %v1899, %v1898
      %v2012 = vpack.c.b16 %v1901, %v1900
      %v2013 = vpack.c.b16 %v1903, %v1902
      %v2014 = vpack.c.b16 %v1905, %v1904
      %v2015 = vpack.c.b16 %v1907, %v1906
      %v2016 = vpack.c.b16 %v1909, %v1908
      %v2017 = vpack.c.b16 %v1911, %v1910
      %v2018 = vpack.c.b16 %v1913, %v1912
      %v2019 = vpack.c.b16 %v1915, %v1914
      %v2020 = vpack.c.b16 %v1917, %v1916
      %v2021 = vpack.c.b16 %v1919, %v1918
      %v2022 = vpack.c.b16 %v1921, %v1920
      %v2023 = vpack.c.b16 %v1923, %v1922
      %v2024 = vpack.c.b16 %v1925, %v1924
      %v2025 = vpack.c.b16 %v1927, %v1926
      %v2026 = vpack.c.b16 %v1929, %v1928
      %v2027 = vpack.c.b16 %v1931, %v1930
      %v2028 = vpack.c.b16 %v1933, %v1932
      %v2029 = vpack.c.b16 %v1935, %v1934
      %v2030 = vpack.c.b16 %v1937, %v1936
      %v2031 = vpack.c.b16 %v1939, %v1938
      %v2032 = vpack.c.b16 %v1941, %v1940
      %v2033 = vpack.c.b16 %v1943, %v1942
      %v2034 = vpack.c.b16 %v1945, %v1944
      %v2035 = vpack.c.b16 %v1947, %v1946
      %v2036 = vpack.c.b16 %v1949, %v1948
      %v2037 = vpack.c.b16 %v1951, %v1950
      %v2038 = vpack.c.b16 %v1953, %v1952
      %v2039 = vpack.c.b16 %v1955, %v1954
      %v2040 = vpack.c.b16 %v1957, %v1956
      %v2041 = vpack.c.b16 %v1959, %v1958
      %v2042 = vpack.c.b16 %v1961, %v1960
      %v2043 = vpack.c.b16 %v1963, %v1962
      %v2044 = vpack.c.b16 %v1965, %v1964
      %v2045 = vpack.c.b16 %v1967, %v1966
      %v2046 = vpack.c.b16 %v1969, %v1968
      %v2047 = vpack.c.b16 %v1971, %v1970
      %v2048 = vpack.c.b16 %v1973, %v1972
      %v2049 = vpack.c.b16 %v1975, %v1974
      %v2050 = vpack.c.b16 %v1977, %v1976
      %v2051 = vpack.c.b16 %v1979, %v1978
      %2124 = vmatpush.bf16.msra.mxu0 %v1987
      %2125 = vmatpush.bf16.msra.mxu0 %v1986
      %2126 = vmatpush.bf16.msra.mxu0 %v1985
      %2127 = vmatpush.bf16.msra.mxu0 %v1984
      %2128 = vmatpush.bf16.msra.mxu0 %v1983
      %2129 = vmatpush.bf16.msra.mxu0 %v1982
      %2130 = vmatpush.bf16.msra.mxu0 %v1981
      %2131 = vmatpush.bf16.msra.mxu0 %v1980
      %2132 = vmatmul.bf16.gmra.mxu0 %v1260
      %v2133 = vpop.f32.mrf.mxu0
      %v2134 = vadd.f32 0.0, %v2133
      %v2135 = vpop.f32.mrf.mxu0
      %v2136 = vadd.f32 0.0, %v2135
      %2137 = vmatmul.bf16.gmra.mxu0 %v1261
      %v2138 = vpop.f32.mrf.mxu0
      %v2139 = vadd.f32 0.0, %v2138
      %v2140 = vpop.f32.mrf.mxu0
      %v2141 = vadd.f32 0.0, %v2140
      %2142 = vmatmul.bf16.gmra.mxu0 %v1262
      %v2143 = vpop.f32.mrf.mxu0
      %v2144 = vadd.f32 0.0, %v2143
      %v2145 = vpop.f32.mrf.mxu0
      %v2146 = vadd.f32 0.0, %v2145
      %2147 = vmatmul.bf16.gmra.mxu0 %v1263
      %v2148 = vpop.f32.mrf.mxu0
      %v2149 = vadd.f32 0.0, %v2148
      %v2150 = vpop.f32.mrf.mxu0
      %v2151 = vadd.f32 0.0, %v2150
      %2152 = vmatmul.bf16.gmra.mxu0 %v1264
      %v2153 = vpop.f32.mrf.mxu0
      %v2154 = vadd.f32 0.0, %v2153
      %v2155 = vpop.f32.mrf.mxu0
      %v2156 = vadd.f32 0.0, %v2155
      %2157 = vmatmul.bf16.gmra.mxu0 %v1265
      %v2158 = vpop.f32.mrf.mxu0
      %v2159 = vadd.f32 0.0, %v2158
      %v2160 = vpop.f32.mrf.mxu0
      %v2161 = vadd.f32 0.0, %v2160
      %2162 = vmatmul.bf16.gmra.mxu0 %v1266
      %v2163 = vpop.f32.mrf.mxu0
      %v2164 = vadd.f32 0.0, %v2163
      %v2165 = vpop.f32.mrf.mxu0
      %v2166 = vadd.f32 0.0, %v2165
      %2167 = vmatmul.bf16.gmra.mxu0 %v1267
      %v2168 = vpop.f32.mrf.mxu0
      %v2169 = vadd.f32 0.0, %v2168
      %v2170 = vpop.f32.mrf.mxu0
      %v2171 = vadd.f32 0.0, %v2170
      %2172 = vdwg.mxu0
      %2173 = vmatpush.bf16.msra.mxu0 %v1995
      %2174 = vmatpush.bf16.msra.mxu0 %v1994
      %2175 = vmatpush.bf16.msra.mxu0 %v1993
      %2176 = vmatpush.bf16.msra.mxu0 %v1992
      %2177 = vmatpush.bf16.msra.mxu0 %v1991
      %2178 = vmatpush.bf16.msra.mxu0 %v1990
      %2179 = vmatpush.bf16.msra.mxu0 %v1989
      %2180 = vmatpush.bf16.msra.mxu0 %v1988
      %2181 = vmatmul.bf16.gmra.mxu0 %v1292
      %v2182 = vpop.f32.mrf.mxu0
      %v2183 = vadd.f32 %v2134, %v2182
      %v2184 = vpop.f32.mrf.mxu0
      %v2185 = vadd.f32 %v2136, %v2184
      %2186 = vmatmul.bf16.gmra.mxu0 %v1293
      %v2187 = vpop.f32.mrf.mxu0
      %v2188 = vadd.f32 %v2139, %v2187
      %v2189 = vpop.f32.mrf.mxu0
      %v2190 = vadd.f32 %v2141, %v2189
      %2191 = vmatmul.bf16.gmra.mxu0 %v1294
      %v2192 = vpop.f32.mrf.mxu0
      %v2193 = vadd.f32 %v2144, %v2192
      %v2194 = vpop.f32.mrf.mxu0
      %v2195 = vadd.f32 %v2146, %v2194
      %2196 = vmatmul.bf16.gmra.mxu0 %v1295
      %v2197 = vpop.f32.mrf.mxu0
      %v2198 = vadd.f32 %v2149, %v2197
      %v2199 = vpop.f32.mrf.mxu0
      %v2200 = vadd.f32 %v2151, %v2199
      %2201 = vmatmul.bf16.gmra.mxu0 %v1296
      %v2202 = vpop.f32.mrf.mxu0
      %v2203 = vadd.f32 %v2154, %v2202
      %v2204 = vpop.f32.mrf.mxu0
      %v2205 = vadd.f32 %v2156, %v2204
      %2206 = vmatmul.bf16.gmra.mxu0 %v1297
      %v2207 = vpop.f32.mrf.mxu0
      %v2208 = vadd.f32 %v2159, %v2207
      %v2209 = vpop.f32.mrf.mxu0
      %v2210 = vadd.f32 %v2161, %v2209
      %2211 = vmatmul.bf16.gmra.mxu0 %v1298
      %v2212 = vpop.f32.mrf.mxu0
      %v2213 = vadd.f32 %v2164, %v2212
      %v2214 = vpop.f32.mrf.mxu0
      %v2215 = vadd.f32 %v2166, %v2214
      %2216 = vmatmul.bf16.gmra.mxu0 %v1299
      %v2217 = vpop.f32.mrf.mxu0
      %v2218 = vadd.f32 %v2169, %v2217
      %v2219 = vpop.f32.mrf.mxu0
      %v2220 = vadd.f32 %v2171, %v2219
      %2221 = vdwg.mxu0
      %2222 = vmatpush.bf16.msra.mxu0 %v2003
      %2223 = vmatpush.bf16.msra.mxu0 %v2002
      %2224 = vmatpush.bf16.msra.mxu0 %v2001
      %2225 = vmatpush.bf16.msra.mxu0 %v2000
      %2226 = vmatpush.bf16.msra.mxu0 %v1999
      %2227 = vmatpush.bf16.msra.mxu0 %v1998
      %2228 = vmatpush.bf16.msra.mxu0 %v1997
      %2229 = vmatpush.bf16.msra.mxu0 %v1996
      %2230 = vmatmul.bf16.gmra.mxu0 %v1324
      %v2231 = vpop.f32.mrf.mxu0
      %v2232 = vadd.f32 %v2183, %v2231
      %v2233 = vpop.f32.mrf.mxu0
      %v2234 = vadd.f32 %v2185, %v2233
      %2235 = vmatmul.bf16.gmra.mxu0 %v1325
      %v2236 = vpop.f32.mrf.mxu0
      %v2237 = vadd.f32 %v2188, %v2236
      %v2238 = vpop.f32.mrf.mxu0
      %v2239 = vadd.f32 %v2190, %v2238
      %2240 = vmatmul.bf16.gmra.mxu0 %v1326
      %v2241 = vpop.f32.mrf.mxu0
      %v2242 = vadd.f32 %v2193, %v2241
      %v2243 = vpop.f32.mrf.mxu0
      %v2244 = vadd.f32 %v2195, %v2243
      %2245 = vmatmul.bf16.gmra.mxu0 %v1327
      %v2246 = vpop.f32.mrf.mxu0
      %v2247 = vadd.f32 %v2198, %v2246
      %v2248 = vpop.f32.mrf.mxu0
      %v2249 = vadd.f32 %v2200, %v2248
      %2250 = vmatmul.bf16.gmra.mxu0 %v1328
      %v2251 = vpop.f32.mrf.mxu0
      %v2252 = vadd.f32 %v2203, %v2251
      %v2253 = vpop.f32.mrf.mxu0
      %v2254 = vadd.f32 %v2205, %v2253
      %2255 = vmatmul.bf16.gmra.mxu0 %v1329
      %v2256 = vpop.f32.mrf.mxu0
      %v2257 = vadd.f32 %v2208, %v2256
      %v2258 = vpop.f32.mrf.mxu0
      %v2259 = vadd.f32 %v2210, %v2258
      %2260 = vmatmul.bf16.gmra.mxu0 %v1330
      %v2261 = vpop.f32.mrf.mxu0
      %v2262 = vadd.f32 %v2213, %v2261
      %v2263 = vpop.f32.mrf.mxu0
      %v2264 = vadd.f32 %v2215, %v2263
      %2265 = vmatmul.bf16.gmra.mxu0 %v1331
      %v2266 = vpop.f32.mrf.mxu0
      %v2267 = vadd.f32 %v2218, %v2266
      %v2268 = vpop.f32.mrf.mxu0
      %v2269 = vadd.f32 %v2220, %v2268
      %2270 = vdwg.mxu0
      %2271 = vmatpush.bf16.msra.mxu0 %v2011
      %2272 = vmatpush.bf16.msra.mxu0 %v2010
      %2273 = vmatpush.bf16.msra.mxu0 %v2009
      %2274 = vmatpush.bf16.msra.mxu0 %v2008
      %2275 = vmatpush.bf16.msra.mxu0 %v2007
      %2276 = vmatpush.bf16.msra.mxu0 %v2006
      %2277 = vmatpush.bf16.msra.mxu0 %v2005
      %2278 = vmatpush.bf16.msra.mxu0 %v2004
      %2279 = vmatmul.bf16.gmra.mxu0 %v1364
      %v2280 = vpop.f32.mrf.mxu0
      %v2281 = vadd.f32 %v2232, %v2280
      %v2282 = vpop.f32.mrf.mxu0
      %v2283 = vadd.f32 %v2234, %v2282
      %2284 = vmatmul.bf16.gmra.mxu0 %v1365
      %v2285 = vpop.f32.mrf.mxu0
      %v2286 = vadd.f32 %v2237, %v2285
      %v2287 = vpop.f32.mrf.mxu0
      %v2288 = vadd.f32 %v2239, %v2287
      %2289 = vmatmul.bf16.gmra.mxu0 %v1366
      %v2290 = vpop.f32.mrf.mxu0
      %v2291 = vadd.f32 %v2242, %v2290
      %v2292 = vpop.f32.mrf.mxu0
      %v2293 = vadd.f32 %v2244, %v2292
      %2294 = vmatmul.bf16.gmra.mxu0 %v1367
      %v2295 = vpop.f32.mrf.mxu0
      %v2296 = vadd.f32 %v2247, %v2295
      %v2297 = vpop.f32.mrf.mxu0
      %v2298 = vadd.f32 %v2249, %v2297
      %2299 = vmatmul.bf16.gmra.mxu0 %v1368
      %v2300 = vpop.f32.mrf.mxu0
      %v2301 = vadd.f32 %v2252, %v2300
      %v2302 = vpop.f32.mrf.mxu0
      %v2303 = vadd.f32 %v2254, %v2302
      %2304 = vmatmul.bf16.gmra.mxu0 %v1369
      %v2305 = vpop.f32.mrf.mxu0
      %v2306 = vadd.f32 %v2257, %v2305
      %v2307 = vpop.f32.mrf.mxu0
      %v2308 = vadd.f32 %v2259, %v2307
      %2309 = vmatmul.bf16.gmra.mxu0 %v1370
      %v2310 = vpop.f32.mrf.mxu0
      %v2311 = vadd.f32 %v2262, %v2310
      %v2312 = vpop.f32.mrf.mxu0
      %v2313 = vadd.f32 %v2264, %v2312
      %2314 = vmatmul.bf16.gmra.mxu0 %v1371
      %v2315 = vpop.f32.mrf.mxu0
      %v2316 = vadd.f32 %v2267, %v2315
      %v2317 = vpop.f32.mrf.mxu0
      %v2318 = vadd.f32 %v2269, %v2317
      %2319 = vdwg.mxu0
      %2320 = vmatpush.bf16.msra.mxu0 %v2019
      %2321 = vmatpush.bf16.msra.mxu0 %v2018
      %2322 = vmatpush.bf16.msra.mxu0 %v2017
      %2323 = vmatpush.bf16.msra.mxu0 %v2016
      %2324 = vmatpush.bf16.msra.mxu0 %v2015
      %2325 = vmatpush.bf16.msra.mxu0 %v2014
      %2326 = vmatpush.bf16.msra.mxu0 %v2013
      %2327 = vmatpush.bf16.msra.mxu0 %v2012
      %2328 = vmatmul.bf16.gmra.mxu0 %v1396
      %v2329 = vpop.f32.mrf.mxu0
      %v2330 = vadd.f32 %v2281, %v2329
      %v2331 = vpop.f32.mrf.mxu0
      %v2332 = vadd.f32 %v2283, %v2331
      %2333 = vmatmul.bf16.gmra.mxu0 %v1397
      %v2334 = vpop.f32.mrf.mxu0
      %v2335 = vadd.f32 %v2286, %v2334
      %v2336 = vpop.f32.mrf.mxu0
      %v2337 = vadd.f32 %v2288, %v2336
      %2338 = vmatmul.bf16.gmra.mxu0 %v1398
      %v2339 = vpop.f32.mrf.mxu0
      %v2340 = vadd.f32 %v2291, %v2339
      %v2341 = vpop.f32.mrf.mxu0
      %v2342 = vadd.f32 %v2293, %v2341
      %2343 = vmatmul.bf16.gmra.mxu0 %v1399
      %v2344 = vpop.f32.mrf.mxu0
      %v2345 = vadd.f32 %v2296, %v2344
      %v2346 = vpop.f32.mrf.mxu0
      %v2347 = vadd.f32 %v2298, %v2346
      %2348 = vmatmul.bf16.gmra.mxu0 %v1400
      %v2349 = vpop.f32.mrf.mxu0
      %v2350 = vadd.f32 %v2301, %v2349
      %v2351 = vpop.f32.mrf.mxu0
      %v2352 = vadd.f32 %v2303, %v2351
      %2353 = vmatmul.bf16.gmra.mxu0 %v1401
      %v2354 = vpop.f32.mrf.mxu0
      %v2355 = vadd.f32 %v2306, %v2354
      %v2356 = vpop.f32.mrf.mxu0
      %v2357 = vadd.f32 %v2308, %v2356
      %2358 = vmatmul.bf16.gmra.mxu0 %v1402
      %v2359 = vpop.f32.mrf.mxu0
      %v2360 = vadd.f32 %v2311, %v2359
      %v2361 = vpop.f32.mrf.mxu0
      %v2362 = vadd.f32 %v2313, %v2361
      %2363 = vmatmul.bf16.gmra.mxu0 %v1403
      %v2364 = vpop.f32.mrf.mxu0
      %v2365 = vadd.f32 %v2316, %v2364
      %v2366 = vpop.f32.mrf.mxu0
      %v2367 = vadd.f32 %v2318, %v2366
      %2368 = vdwg.mxu0
      %2369 = vmatpush.bf16.msra.mxu0 %v2027
      %2370 = vmatpush.bf16.msra.mxu0 %v2026
      %2371 = vmatpush.bf16.msra.mxu0 %v2025
      %2372 = vmatpush.bf16.msra.mxu0 %v2024
      %2373 = vmatpush.bf16.msra.mxu0 %v2023
      %2374 = vmatpush.bf16.msra.mxu0 %v2022
      %2375 = vmatpush.bf16.msra.mxu0 %v2021
      %2376 = vmatpush.bf16.msra.mxu0 %v2020
      %2377 = vmatmul.bf16.gmra.mxu0 %v1428
      %v2378 = vpop.f32.mrf.mxu0
      %v2379 = vadd.f32 %v2330, %v2378
      %v2380 = vpop.f32.mrf.mxu0
      %v2381 = vadd.f32 %v2332, %v2380
      %2382 = vmatmul.bf16.gmra.mxu0 %v1429
      %v2383 = vpop.f32.mrf.mxu0
      %v2384 = vadd.f32 %v2335, %v2383
      %v2385 = vpop.f32.mrf.mxu0
      %v2386 = vadd.f32 %v2337, %v2385
      %2387 = vmatmul.bf16.gmra.mxu0 %v1430
      %v2388 = vpop.f32.mrf.mxu0
      %v2389 = vadd.f32 %v2340, %v2388
      %v2390 = vpop.f32.mrf.mxu0
      %v2391 = vadd.f32 %v2342, %v2390
      %2392 = vmatmul.bf16.gmra.mxu0 %v1431
      %v2393 = vpop.f32.mrf.mxu0
      %v2394 = vadd.f32 %v2345, %v2393
      %v2395 = vpop.f32.mrf.mxu0
      %v2396 = vadd.f32 %v2347, %v2395
      %2397 = vmatmul.bf16.gmra.mxu0 %v1432
      %v2398 = vpop.f32.mrf.mxu0
      %v2399 = vadd.f32 %v2350, %v2398
      %v2400 = vpop.f32.mrf.mxu0
      %v2401 = vadd.f32 %v2352, %v2400
      %2402 = vmatmul.bf16.gmra.mxu0 %v1433
      %v2403 = vpop.f32.mrf.mxu0
      %v2404 = vadd.f32 %v2355, %v2403
      %v2405 = vpop.f32.mrf.mxu0
      %v2406 = vadd.f32 %v2357, %v2405
      %2407 = vmatmul.bf16.gmra.mxu0 %v1434
      %v2408 = vpop.f32.mrf.mxu0
      %v2409 = vadd.f32 %v2360, %v2408
      %v2410 = vpop.f32.mrf.mxu0
      %v2411 = vadd.f32 %v2362, %v2410
      %2412 = vmatmul.bf16.gmra.mxu0 %v1435
      %v2413 = vpop.f32.mrf.mxu0
      %v2414 = vadd.f32 %v2365, %v2413
      %v2415 = vpop.f32.mrf.mxu0
      %v2416 = vadd.f32 %v2367, %v2415
      %2417 = vdwg.mxu0
      %2418 = vmatpush.bf16.msra.mxu0 %v2035
      %2419 = vmatpush.bf16.msra.mxu0 %v2034
      %2420 = vmatpush.bf16.msra.mxu0 %v2033
      %2421 = vmatpush.bf16.msra.mxu0 %v2032
      %2422 = vmatpush.bf16.msra.mxu0 %v2031
      %2423 = vmatpush.bf16.msra.mxu0 %v2030
      %2424 = vmatpush.bf16.msra.mxu0 %v2029
      %2425 = vmatpush.bf16.msra.mxu0 %v2028
      %2426 = vmatmul.bf16.gmra.mxu0 %v1468
      %v2427 = vpop.f32.mrf.mxu0
      %v2428 = vadd.f32 %v2379, %v2427
      %v2429 = vpop.f32.mrf.mxu0
      %v2430 = vadd.f32 %v2381, %v2429
      %2431 = vmatmul.bf16.gmra.mxu0 %v1469
      %v2432 = vpop.f32.mrf.mxu0
      %v2433 = vadd.f32 %v2384, %v2432
      %v2434 = vpop.f32.mrf.mxu0
      %v2435 = vadd.f32 %v2386, %v2434
      %2436 = vmatmul.bf16.gmra.mxu0 %v1470
      %v2437 = vpop.f32.mrf.mxu0
      %v2438 = vadd.f32 %v2389, %v2437
      %v2439 = vpop.f32.mrf.mxu0
      %v2440 = vadd.f32 %v2391, %v2439
      %2441 = vmatmul.bf16.gmra.mxu0 %v1471
      %v2442 = vpop.f32.mrf.mxu0
      %v2443 = vadd.f32 %v2394, %v2442
      %v2444 = vpop.f32.mrf.mxu0
      %v2445 = vadd.f32 %v2396, %v2444
      %2446 = vmatmul.bf16.gmra.mxu0 %v1472
      %v2447 = vpop.f32.mrf.mxu0
      %v2448 = vadd.f32 %v2399, %v2447
      %v2449 = vpop.f32.mrf.mxu0
      %v2450 = vadd.f32 %v2401, %v2449
      %2451 = vmatmul.bf16.gmra.mxu0 %v1473
      %v2452 = vpop.f32.mrf.mxu0
      %v2453 = vadd.f32 %v2404, %v2452
      %v2454 = vpop.f32.mrf.mxu0
      %v2455 = vadd.f32 %v2406, %v2454
      %2456 = vmatmul.bf16.gmra.mxu0 %v1474
      %v2457 = vpop.f32.mrf.mxu0
      %v2458 = vadd.f32 %v2409, %v2457
      %v2459 = vpop.f32.mrf.mxu0
      %v2460 = vadd.f32 %v2411, %v2459
      %2461 = vmatmul.bf16.gmra.mxu0 %v1475
      %v2462 = vpop.f32.mrf.mxu0
      %v2463 = vadd.f32 %v2414, %v2462
      %v2464 = vpop.f32.mrf.mxu0
      %v2465 = vadd.f32 %v2416, %v2464
      %2466 = vdwg.mxu0
      %2467 = vmatpush.bf16.msra.mxu0 %v2043
      %2468 = vmatpush.bf16.msra.mxu0 %v2042
      %2469 = vmatpush.bf16.msra.mxu0 %v2041
      %2470 = vmatpush.bf16.msra.mxu0 %v2040
      %2471 = vmatpush.bf16.msra.mxu0 %v2039
      %2472 = vmatpush.bf16.msra.mxu0 %v2038
      %2473 = vmatpush.bf16.msra.mxu0 %v2037
      %2474 = vmatpush.bf16.msra.mxu0 %v2036
      %2475 = vmatmul.bf16.gmra.mxu0 %v1500
      %v2476 = vpop.f32.mrf.mxu0
      %v2477 = vadd.f32 %v2428, %v2476
      %v2478 = vpop.f32.mrf.mxu0
      %v2479 = vadd.f32 %v2430, %v2478
      %2480 = vmatmul.bf16.gmra.mxu0 %v1501
      %v2481 = vpop.f32.mrf.mxu0
      %v2482 = vadd.f32 %v2433, %v2481
      %v2483 = vpop.f32.mrf.mxu0
      %v2484 = vadd.f32 %v2435, %v2483
      %2485 = vmatmul.bf16.gmra.mxu0 %v1502
      %v2486 = vpop.f32.mrf.mxu0
      %v2487 = vadd.f32 %v2438, %v2486
      %v2488 = vpop.f32.mrf.mxu0
      %v2489 = vadd.f32 %v2440, %v2488
      %2490 = vmatmul.bf16.gmra.mxu0 %v1503
      %v2491 = vpop.f32.mrf.mxu0
      %v2492 = vadd.f32 %v2443, %v2491
      %v2493 = vpop.f32.mrf.mxu0
      %v2494 = vadd.f32 %v2445, %v2493
      %2495 = vmatmul.bf16.gmra.mxu0 %v1504
      %v2496 = vpop.f32.mrf.mxu0
      %v2497 = vadd.f32 %v2448, %v2496
      %v2498 = vpop.f32.mrf.mxu0
      %v2499 = vadd.f32 %v2450, %v2498
      %2500 = vmatmul.bf16.gmra.mxu0 %v1505
      %v2501 = vpop.f32.mrf.mxu0
      %v2502 = vadd.f32 %v2453, %v2501
      %v2503 = vpop.f32.mrf.mxu0
      %v2504 = vadd.f32 %v2455, %v2503
      %2505 = vmatmul.bf16.gmra.mxu0 %v1506
      %v2506 = vpop.f32.mrf.mxu0
      %v2507 = vadd.f32 %v2458, %v2506
      %v2508 = vpop.f32.mrf.mxu0
      %v2509 = vadd.f32 %v2460, %v2508
      %2510 = vmatmul.bf16.gmra.mxu0 %v1507
      %v2511 = vpop.f32.mrf.mxu0
      %v2512 = vadd.f32 %v2463, %v2511
      %v2513 = vpop.f32.mrf.mxu0
      %v2514 = vadd.f32 %v2465, %v2513
      %2515 = vdwg.mxu0
      %2516 = vmatpush.bf16.msra.mxu0 %v2051
      %2517 = vmatpush.bf16.msra.mxu0 %v2050
      %2518 = vmatpush.bf16.msra.mxu0 %v2049
      %2519 = vmatpush.bf16.msra.mxu0 %v2048
      %2520 = vmatpush.bf16.msra.mxu0 %v2047
      %2521 = vmatpush.bf16.msra.mxu0 %v2046
      %2522 = vmatpush.bf16.msra.mxu0 %v2045
      %2523 = vmatpush.bf16.msra.mxu0 %v2044
      %2524 = vmatmul.bf16.gmra.mxu0 %v1532
      %v2525 = vpop.f32.mrf.mxu0
      %v2526 = vadd.f32 %v2477, %v2525
      %v2527 = vpop.f32.mrf.mxu0
      %v2528 = vadd.f32 %v2479, %v2527
      %2529 = vmatmul.bf16.gmra.mxu0 %v1533
      %v2530 = vpop.f32.mrf.mxu0
      %v2531 = vadd.f32 %v2482, %v2530
      %v2532 = vpop.f32.mrf.mxu0
      %v2533 = vadd.f32 %v2484, %v2532
      %2534 = vmatmul.bf16.gmra.mxu0 %v1534
      %v2535 = vpop.f32.mrf.mxu0
      %v2536 = vadd.f32 %v2487, %v2535
      %v2537 = vpop.f32.mrf.mxu0
      %v2538 = vadd.f32 %v2489, %v2537
      %2539 = vmatmul.bf16.gmra.mxu0 %v1535
      %v2540 = vpop.f32.mrf.mxu0
      %v2541 = vadd.f32 %v2492, %v2540
      %v2542 = vpop.f32.mrf.mxu0
      %v2543 = vadd.f32 %v2494, %v2542
      %2544 = vmatmul.bf16.gmra.mxu0 %v1536
      %v2545 = vpop.f32.mrf.mxu0
      %v2546 = vadd.f32 %v2497, %v2545
      %v2547 = vpop.f32.mrf.mxu0
      %v2548 = vadd.f32 %v2499, %v2547
      %2549 = vmatmul.bf16.gmra.mxu0 %v1537
      %v2550 = vpop.f32.mrf.mxu0
      %v2551 = vadd.f32 %v2502, %v2550
      %v2552 = vpop.f32.mrf.mxu0
      %v2553 = vadd.f32 %v2504, %v2552
      %2554 = vmatmul.bf16.gmra.mxu0 %v1538
      %v2555 = vpop.f32.mrf.mxu0
      %v2556 = vadd.f32 %v2507, %v2555
      %v2557 = vpop.f32.mrf.mxu0
      %v2558 = vadd.f32 %v2509, %v2557
      %2559 = vmatmul.bf16.gmra.mxu0 %v1539
      %v2560 = vpop.f32.mrf.mxu0
      %v2561 = vadd.f32 %v2512, %v2560
      %v2562 = vpop.f32.mrf.mxu0
      %v2563 = vadd.f32 %v2514, %v2562
      %2564 = vdwg.mxu0
      %v2565 = vpack.c.bf16 %v2526, %v2526
      %v2566 = vpack.c.bf16 %v2528, %v2528
      %v2567 = vpack.c.bf16 %v2531, %v2531
      %v2568 = vpack.c.bf16 %v2533, %v2533
      %v2569 = vpack.c.bf16 %v2536, %v2536
      %v2570 = vpack.c.bf16 %v2538, %v2538
      %v2571 = vpack.c.bf16 %v2541, %v2541
      %v2572 = vpack.c.bf16 %v2543, %v2543
      %v2573 = vpack.c.bf16 %v2546, %v2546
      %v2574 = vpack.c.bf16 %v2548, %v2548
      %v2575 = vpack.c.bf16 %v2551, %v2551
      %v2576 = vpack.c.bf16 %v2553, %v2553
      %v2577 = vpack.c.bf16 %v2556, %v2556
      %v2578 = vpack.c.bf16 %v2558, %v2558
      %v2579 = vpack.c.bf16 %v2561, %v2561
      %v2580 = vpack.c.bf16 %v2563, %v2563
      %2581 = vst [vmem:[%s282] sm:$0xf] %v2565
      %2582 = vst [vmem:[%s282 + $0x4] sm:$0xf] %v2566
      %2583 = vst [vmem:[%s282 + $0x8] sm:$0xf] %v2567
      %2584 = vst [vmem:[%s282 + $0xc] sm:$0xf] %v2568
      %2585 = vst [vmem:[%s282 + $0x10] sm:$0xf] %v2569
      %2586 = vst [vmem:[%s282 + $0x14] sm:$0xf] %v2570
      %2587 = vst [vmem:[%s282 + $0x18] sm:$0xf] %v2571
      %2588 = vst [vmem:[%s282 + $0x1c] sm:$0xf] %v2572
      %2589 = vst [vmem:[%s282 + $0x20] sm:$0xf] %v2573
      %2590 = vst [vmem:[%s282 + $0x24] sm:$0xf] %v2574
      %2591 = vst [vmem:[%s282 + $0x28] sm:$0xf] %v2575
      %2592 = vst [vmem:[%s282 + $0x2c] sm:$0xf] %v2576
      %2593 = vst [vmem:[%s282 + $0x30] sm:$0xf] %v2577
      %2594 = vst [vmem:[%s282 + $0x34] sm:$0xf] %v2578
      %2595 = vst [vmem:[%s282 + $0x38] sm:$0xf] %v2579
      %2596 = vst [vmem:[%s282 + $0x3c] sm:$0xf] %v2580
      %v2597 = vadd.f32 %v2526, %v2528
      %v2598 = vadd.f32 %v2597, %v2531
      %v2599 = vadd.f32 %v2598, %v2533
      %v2600 = vadd.f32 %v2599, %v2536
      %v2601 = vadd.f32 %v2600, %v2538
      %v2602 = vadd.f32 %v2601, %v2541
      %v2603 = vadd.f32 %v2602, %v2543
      %v2604 = vadd.f32 %v2603, %v2546
      %v2605 = vadd.f32 %v2604, %v2548
      %v2606 = vadd.f32 %v2605, %v2551
      %v2607 = vadd.f32 %v2606, %v2553
      %v2608 = vadd.f32 %v2607, %v2556
      %v2609 = vadd.f32 %v2608, %v2558
      %v2610 = vadd.f32 %v2609, %v2561
      %v2611 = vadd.f32 %v2610, %v2563
      %v2612 = vrot.slane %v2611, 4
      %v2613 = vadd.f32 %v2611, %v2612
      %v2614 = vrot.slane %v2613, 2
      %v2615 = vadd.f32 %v2613, %v2614
      %v2616 = vrot.slane %v2615, 1
      %v2617 = vadd.f32 %v2615, %v2616
      %2618 = vst [vmem:[%s293] sm:$0x1] %v2617
      %v2619 = vmul.f32 %v2526, %v2526
      %v2620 = vmul.f32 %v2528, %v2528
      %v2621 = vmul.f32 %v2531, %v2531
      %v2622 = vmul.f32 %v2533, %v2533
      %v2623 = vmul.f32 %v2536, %v2536
      %v2624 = vmul.f32 %v2538, %v2538
      %v2625 = vmul.f32 %v2541, %v2541
      %v2626 = vmul.f32 %v2543, %v2543
      %v2627 = vmul.f32 %v2546, %v2546
      %v2628 = vmul.f32 %v2548, %v2548
      %v2629 = vmul.f32 %v2551, %v2551
      %v2630 = vmul.f32 %v2553, %v2553
      %v2631 = vmul.f32 %v2556, %v2556
      %v2632 = vmul.f32 %v2558, %v2558
      %v2633 = vmul.f32 %v2561, %v2561
      %v2634 = vmul.f32 %v2563, %v2563
      %v2635 = vadd.f32 %v2619, %v2620
      %v2636 = vadd.f32 %v2635, %v2621
      %v2637 = vadd.f32 %v2636, %v2622
      %v2638 = vadd.f32 %v2637, %v2623
      %v2639 = vadd.f32 %v2638, %v2624
      %v2640 = vadd.f32 %v2639, %v2625
      %v2641 = vadd.f32 %v2640, %v2626
      %v2642 = vadd.f32 %v2641, %v2627
      %v2643 = vadd.f32 %v2642, %v2628
      %v2644 = vadd.f32 %v2643, %v2629
      %v2645 = vadd.f32 %v2644, %v2630
      %v2646 = vadd.f32 %v2645, %v2631
      %v2647 = vadd.f32 %v2646, %v2632
      %v2648 = vadd.f32 %v2647, %v2633
      %v2649 = vadd.f32 %v2648, %v2634
      %v2650 = vrot.slane %v2649, 4
      %v2651 = vadd.f32 %v2649, %v2650
      %v2652 = vrot.slane %v2651, 2
      %v2653 = vadd.f32 %v2651, %v2652
      %v2654 = vrot.slane %v2653, 1
      %v2655 = vadd.f32 %v2653, %v2654
      %2656 = vst [vmem:[%s303] sm:$0x1] %v2655
      %s2657 = smul.u32 %s21, 2
      %s2658 = sadd.s32 %s2657, %s23
      %s2659 = smul.u32 16, %s2658
      %p2660 = scmp.lt.s32.totalorder %s2659, 63
      %s2661 = scalar_select %p2660, %s2659, 63
      %p2662 = scmp.lt.s32.totalorder %s22, 0
      %s2663 = scalar_select %p2662, %s22, 0
      %s2664 = sadd.s32 %s2663, %s2661
      %s2665 = smul.addr %s2664, 4
      %s2666 = scalar_lea.vmem %s2, %s2665
      %s2667 = smul.u32 %s21, 2
      %s2668 = sadd.s32 %s2667, %s23
      %p2669 = scmp.lt.s32.totalorder %s2668, 3
      %s2670 = scalar_select %p2669, %s2668, 3
      %p2671 = scmp.lt.s32.totalorder %s22, 0
      %s2672 = scalar_select %p2671, %s22, 0
      %s2673 = sadd.s32 %s2672, %s2670
      %s2674 = scalar_lea.vmem %s3, %s2673
      %s2675 = smul.u32 %s21, 2
      %s2676 = sadd.s32 %s2675, %s23
      %p2677 = scmp.lt.s32.totalorder %s2676, 3
      %s2678 = scalar_select %p2677, %s2676, 3
      %p2679 = scmp.lt.s32.totalorder %s22, 0
      %s2680 = scalar_select %p2679, %s22, 0
      %s2681 = sadd.s32 %s2680, %s2678
      %s2682 = scalar_lea.vmem %s4, %s2681
      // Predicated region
      $region29: #{residual_forward.4} parent=27 // pred_check
        %p2683 = pneg %p111
      $region30: #{residual_forward.4} parent=27 // pred_check_branch
        %2685 = sbr.rel (%p2683) target = $region32
      $region31: #{residual_forward.4} parent=27 // pred_region
        %s2686 = smul.u32 %s21, 2
        %s2687 = sadd.s32 %s2686, %s23
        %s2688 = smul.u32 16, %s2687
      $region32: #{residual_forward.4} parent=27 // pred_fallthru
        _
      // Predicated region
      $region33: #{residual_forward.4} parent=27 // pred_check
        %p2689 = pneg %p143
      $region34: #{residual_forward.4} parent=27 // pred_check_branch
        %2691 = sbr.rel (%p2689) target = $region36
      $region35: #{residual_forward.4} parent=27 // pred_region
        %s2692 = smul.u32 %s21, 2
        %s2693 = sadd.s32 %s2692, %s23
      $region36: #{residual_forward.4} parent=27 // pred_fallthru
        _
      // Predicated region
      $region37: #{residual_forward.4} parent=27 // pred_check
        %p2694 = pneg %p175
      $region38: #{residual_forward.4} parent=27 // pred_check_branch
        %2696 = sbr.rel (%p2694) target = $region40
      $region39: #{residual_forward.4} parent=27 // pred_region
        %s2697 = smul.u32 %s21, 2
        %s2698 = sadd.s32 %s2697, %s23
      $region40: #{residual_forward.4} parent=27 // pred_fallthru
        _
    $region28: #{residual_forward.4} parent=5 // pred_fallthru
      _
    %p2699 = scmp.le.s32.totalorder 2, %s11
    // Predicated region
    $region41: #{residual_forward.4} parent=5 // pred_check
      %p2700 = pneg %p2699
    $region42: #{residual_forward.4} parent=5 // pred_check_branch
      %2702 = sbr.rel (%p2700) target = $region44
    $region43: #{residual_forward.4} parent=5 // pred_region
      %s2703 = ssub.s32 %s11, 2
      // Predicated region
      $region45: #{residual_forward.4} parent=43 // pred_check
        %p2704 = pneg %p117
      $region46: #{residual_forward.4} parent=43 // pred_check_branch
        %2706 = sbr.rel (%p2704) target = $region48
      $region47: #{residual_forward.4} parent=43 // pred_region
        %s2707 = smul.u32 %s24, 2
        %s2708 = sadd.s32 %s2707, %s26
        %s2709 = smul.u32 16, %s2708
        %p2710 = scmp.lt.s32.totalorder %s2709, 63
        %s2711 = scalar_select %p2710, %s2709, 63
        %p2712 = scmp.lt.s32.totalorder %s25, 0
        %s2713 = scalar_select %p2712, %s25, 0
        %s2714 = sadd.s32 %s2713, %s2711
        %s2715 = smul.addr %s2714, 4
        %s2716 = scalar_lea.vmem %s2, %s2715
      $region48: #{residual_forward.4} parent=43 // pred_fallthru
        _
      // Predicated region
      $region49: #{residual_forward.4} parent=43 // pred_check
        %p2717 = pneg %p149
      $region50: #{residual_forward.4} parent=43 // pred_check_branch
        %2719 = sbr.rel (%p2717) target = $region52
      $region51: #{residual_forward.4} parent=43 // pred_region
        %s2720 = smul.u32 %s24, 2
        %s2721 = sadd.s32 %s2720, %s26
        %p2722 = scmp.lt.s32.totalorder %s2721, 3
        %s2723 = scalar_select %p2722, %s2721, 3
        %p2724 = scmp.lt.s32.totalorder %s25, 0
        %s2725 = scalar_select %p2724, %s25, 0
        %s2726 = sadd.s32 %s2725, %s2723
        %s2727 = scalar_lea.vmem %s3, %s2726
      $region52: #{residual_forward.4} parent=43 // pred_fallthru
        _
      // Predicated region
      $region53: #{residual_forward.4} parent=43 // pred_check
        %p2728 = pneg %p181
      $region54: #{residual_forward.4} parent=43 // pred_check_branch
        %2730 = sbr.rel (%p2728) target = $region56
      $region55: #{residual_forward.4} parent=43 // pred_region
        %s2731 = smul.u32 %s24, 2
        %s2732 = sadd.s32 %s2731, %s26
        %p2733 = scmp.lt.s32.totalorder %s2732, 3
        %s2734 = scalar_select %p2733, %s2732, 3
        %p2735 = scmp.lt.s32.totalorder %s25, 0
        %s2736 = scalar_select %p2735, %s25, 0
        %s2737 = sadd.s32 %s2736, %s2734
        %s2738 = scalar_lea.vmem %s4, %s2737
      $region56: #{residual_forward.4} parent=43 // pred_fallthru
        _
    $region44: #{residual_forward.4} parent=5 // pred_fallthru
      _
  $region6: #{residual_forward.4} parent=0 // loop_footer
    %s15 = sadd.s32 1, %s11
  $region7: #{residual_forward.4} parent=0 // loop_footer_branch
    %10 = sbr.rel target = $region3
  $region8: #{residual_forward.4} parent=0 // loop_exit
    _

</llo_original>
